<compile_context>
chip_gen: v5e
topology: v5e:2x2
jax: 0.10.0
libtpu: 0.0.40
codegen_flags: <defaults>
</compile_context>

<pallas_src>
import jax
import jax.numpy as jnp
from jax import lax
from jax.experimental import pallas as pl
from jax.experimental.pallas import tpu as pltpu

# ----------------------------- config ("args") ------------------------------
H          = 32    # args.hidden_dim
EDGE_DIM   = 16    # args.edge_embeddings_dim
NUM_STEPS  = 2     # args.msg_passing_steps
BOARD_SIZE = 4
BATCH_SIZE = 2     # raise to >=4 (N>=256) to fill the v6e/v7x 256-wide MXU; kernel is batch-agnostic
# share_lt_edges=True -> 4 edge types; share_all_msg_passing_mlp=False; layer_norm=False
EDGE_TYPES = ('intra_diff', 'inter_diff', 'intra_lt', 'intra_gt')
NT = len(EDGE_TYPES)

# TODO(synk): the real DGL heterograph construction lives outside this module; the
# per-type edges synthesized here are intra-puzzle cyclic shifts (dst is a bijection),
# which is what lets the kernel express "scatter-add over dst" as sublane rolls.
# General lt/gt graphs with variable in-degree need per-edge messages + adjacency matmul.
OFFSETS = (1, 4, 16, 5)       # cyclic-shift offset per edge type (same order as EDGE_TYPES)

P  = BOARD_SIZE ** 3          # binary-encoded cells per puzzle = 64 (power of 2)
N  = BATCH_SIZE * P           # total cell nodes = 128
GH = NT * H                   # packed per-type hidden width = 128 (lane-dense)


# ------------------- fused forward kernel (one pallas_call) ------------------
def _fused_rrcn_kernel(x_ref, wA_ref, wB_ref, b1_ref, w2_ref, b2_ref,
                       w3_ref, b3_ref, w4_ref, b4_ref, wm_ref, ws_ref,
                       h_out_ref, logits_ref):
    f32, bf16 = jnp.float32, jnp.bfloat16

    # constants for the per-type dst<-src permutation (rolls + puzzle-wrap select)
    row_local = lax.broadcasted_iota(jnp.int32, (N, GH), 0) & (P - 1)   # node index within its puzzle
    lane      = lax.broadcasted_iota(jnp.int32, (N, GH), 1)

    # biases read once (reused across steps)
    b1 = b1_ref[...]; b2 = b2_ref[...]; b3 = b3_ref[...]; b4 = b4_ref[...]
    ws = ws_ref[...]                                   # (1, H) score head

    h = x_ref[...]                                     # (N, H); step-0 state == cell_x == LSTM 'x'
    rnn_c = None
    xw = None                                          # x @ W_ih^T[:H] (loop-invariant)

    for step in range(NUM_STEPS):
        # ---- ONE wide K=32 bf16 matmul per step: [src | dst | (x@wx or rnn_h@wh)] ----
        wref = wA_ref if step == 0 else wB_ref
        wide = jnp.dot(h.astype(bf16), wref[...], preferred_element_type=f32)   # (N, 3*GH)
        S = wide[:, 0 * GH:1 * GH]        # per-type src contributions (rows still un-permuted)
        D = wide[:, 1 * GH:2 * GH]        # per-type dst contributions
        T = wide[:, 2 * GH:3 * GH]        # step 0: x@wx (hoisted) ; step>=1: rnn_h@wh
        if step == 0:
            xw = T                        # x never changes -> reuse in later steps

        # ---- per-type permutation of S's 32-lane blocks via XLU sublane rolls --------
        # perm_t(h) @ w1src_t == perm_t(h @ w1src_t), so rolling S is equivalent and
        # moves the work off the MXU onto the (idle) XLU.
        PS = None
        for t, off in enumerate(OFFSETS):
            rolled = jnp.where(row_local >= off,
                               pltpu.roll(S, shift=off, axis=0),
                               pltpu.roll(S, shift=(off - P) % N, axis=0))
            PS = rolled if PS is None else jnp.where(lane < t * H, PS, rolled)

        # ---- 4-layer per-type message MLPs, packed lane-dense (layers 2-4 block-diag) -
        a = jnp.maximum(PS + D + b1, 0.0)
        a = jnp.maximum(jnp.dot(a.astype(bf16), w2_ref[...], preferred_element_type=f32) + b2, 0.0)
        a = jnp.maximum(jnp.dot(a.astype(bf16), w3_ref[...], preferred_element_type=f32) + b3, 0.0)
        m = jnp.dot(a.astype(bf16), w4_ref[...], preferred_element_type=f32) + b4   # aggregated msgs (N, 4H)

        # ---- LSTMCell (bias=False); gates / state kept in f32 on the VPU/EUP ---------
        gates = xw + jnp.dot(m.astype(bf16), wm_ref[...], preferred_element_type=f32)
        if step > 0:
            gates = gates + T             # rnn_h @ W_hh^T (already inside the wide matmul)
        i_g = jax.nn.sigmoid(gates[:, 0 * H:1 * H])
        g_g = jnp.tanh(gates[:, 2 * H:3 * H])
        o_g = jax.nn.sigmoid(gates[:, 3 * H:4 * H])
        if step == 0:
            rnn_c = i_g * g_g                                   # rnn_c == 0 at step 0
        else:
            f_g = jax.nn.sigmoid(gates[:, 1 * H:2 * H])
            rnn_c = f_g * rnn_c + i_g * g_g
        h = o_g * jnp.tanh(rnn_c)

        h_out_ref[step] = h
        # fused score head: Linear(H, 1, bias=0) -> avoids a separate XLA dispatch
        logits_ref[step] = jnp.sum(h * ws, axis=-1, keepdims=True)   # (N, 1)


def rrcn_fused_pallas(cell_x, pk):
    """All NUM_STEPS of message passing + LSTM update + score head in one kernel."""
    vmem = lambda: pl.BlockSpec(memory_space=pltpu.MemorySpace.VMEM)
    args = (cell_x, pk['wA'], pk['wB'], pk['b1'], pk['w2'], pk['b2'],
            pk['w3'], pk['b3'], pk['w4'], pk['b4'], pk['wm'], pk['ws'])
    cell_embed, logits = pl.pallas_call(
        _fused_rrcn_kernel,
        out_shape=(jax.ShapeDtypeStruct((NUM_STEPS, N, H), jnp.float32),
                   jax.ShapeDtypeStruct((NUM_STEPS, N, 1), jnp.float32)),
        in_specs=[vmem() for _ in args],
        out_specs=(vmem(), vmem()),
        # no grid: whole problem (~0.3 MB weights + activations) is VMEM-resident on
        # all generations (v5e/v6e 128 MiB, v7x 64 MiB), so no tiling is needed.
    )(*args)
    return cell_embed, logits


# ------------------------------ parameter init -------------------------------
def _uniform(key, shape, bound):
    return jax.random.uniform(key, shape, jnp.float32, -bound, bound)


def init_params(key):
    n_keys = 2 + 8 * NT + 3
    keys = list(jax.random.split(key, n_keys))
    pop = lambda: keys.pop(0)

    digit_embed = jax.random.normal(pop(), (3, H), jnp.float32)            # nn.Embedding(3, H)
    # TODO(synk): edge-type embeddings live inside the (unshown) RRCN module; synthesized here.
    edge_embed_tbl = jax.random.normal(pop(), (NT, EDGE_DIM), jnp.float32)

    msg_params = {}
    fin = 2 * H + EDGE_DIM
    for et in EDGE_TYPES:
        b1w = 1.0 / jnp.sqrt(fin)
        bhw = 1.0 / jnp.sqrt(H)
        msg_params[et] = (
            _uniform(pop(), (fin, H), b1w), _uniform(pop(), (1, H), b1w),
            _uniform(pop(), (H, H), bhw),   _uniform(pop(), (1, H), bhw),
            _uniform(pop(), (H, H), bhw),   _uniform(pop(), (1, H), bhw),
            _uniform(pop(), (H, H), bhw),   _uniform(pop(), (1, H), bhw),
        )

    lstm_in = (NT + 1) * H                               # 5*H = 160
    bl = 1.0 / jnp.sqrt(H)
    lstm_wih_t = _uniform(pop(), (lstm_in, 4 * H), bl)   # transposed W_ih
    lstm_whh_t = _uniform(pop(), (H, 4 * H), bl)         # transposed W_hh
    w_score = _uniform(pop(), (H, 1), 1.0 / jnp.sqrt(H)) # Linear(H, 1, bias=0), transposed

    return dict(digit_embed=digit_embed, edge_embed_tbl=edge_embed_tbl,
                msg_params=msg_params, lstm_wih_t=lstm_wih_t,
                lstm_whh_t=lstm_whh_t, w_score=w_score)


# ------------------------------- graph structure -----------------------------
def build_edges():
    """Synthesized bijective (cyclic-shift) edges; used by the pure-JAX reference."""
    local = jnp.arange(N, dtype=jnp.int32) % P
    base = (jnp.arange(N, dtype=jnp.int32) // P) * P
    edges = {}
    for et, off in zip(EDGE_TYPES, OFFSETS):
        src = jnp.arange(N, dtype=jnp.int32)
        dst = base + (local + off) % P
        edges[et] = (src, dst)
    return edges


# ------------------- pack parameters for the fused kernel --------------------
def pack_params(params):
    w1s_cols, w1d_cols, b1_cols = [], [], []
    w2_blocks, w3_blocks, w4_blocks = [], [], []
    b2_cols, b3_cols, b4_cols = [], [], []
    for t, et in enumerate(EDGE_TYPES):
        w1, b1, w2, b2, w3, b3, w4, b4 = params['msg_params'][et]
        e_emb = params['edge_embed_tbl'][t][None, :]                 # (1, EDGE_DIM)
        w1_src, w1_dst, w1_emb = w1[:H], w1[H:2 * H], w1[2 * H:]
        w1s_cols.append(w1_src)                                      # un-padded (H, H)
        w1d_cols.append(w1_dst)
        b1_cols.append(b1 + e_emb @ w1_emb)       # fold constant edge embedding into bias
        w2_blocks.append(w2); b2_cols.append(b2)
        w3_blocks.append(w3); b3_cols.append(b3)
        w4_blocks.append(w4); b4_cols.append(b4)

    w1s = jnp.concatenate(w1s_cols, axis=1)       # (H, GH) lane-dense src weights
    w1d = jnp.concatenate(w1d_cols, axis=1)       # (H, GH) lane-dense dst weights
    wx = params['lstm_wih_t'][:H]                 # (H, 4H)   rows multiplying x
    wm = params['lstm_wih_t'][H:]                 # (4H, 4H)  rows multiplying m
    wh = params['lstm_whh_t']                     # (H, 4H)

    bd = jax.scipy.linalg.block_diag
    bf16 = jnp.bfloat16
    return dict(
        # one wide K=H matmul per step: step 0 ends in wx (x@wx, hoisted), steps>=1 in wh
        wA=jnp.concatenate([w1s, w1d, wx], axis=1).astype(bf16),     # (H, 3*GH)
        wB=jnp.concatenate([w1s, w1d, wh], axis=1).astype(bf16),     # (H, 3*GH)
        b1=jnp.concatenate(b1_cols, axis=1),                         # (1, GH) f32
        w2=bd(*w2_blocks).astype(bf16), b2=jnp.concatenate(b2_cols, axis=1),
        w3=bd(*w3_blocks).astype(bf16), b3=jnp.concatenate(b3_cols, axis=1),
        w4=bd(*w4_blocks).astype(bf16), b4=jnp.concatenate(b4_cols, axis=1),
        wm=wm.astype(bf16),                                          # (4H, 4H)
        ws=params['w_score'].T,                                      # (1, H) f32 score head
    )


# --------------------------------- forward -----------------------------------
def futoshiki_bin_forward_pallas(params, packed, cell_q):
    # cell_idx += 3 * (cell_idx == -1)   ==>  -1 maps to 2
    idx = jnp.where(cell_q == -1, 2, cell_q).astype(jnp.int32)
    cell_x = jnp.take(params['digit_embed'], idx, axis=0)        # embedding lookup (glue)
    cell_embed, logits = rrcn_fused_pallas(cell_x, packed)       # (steps,N,H), (steps,N,1)
    logits = jnp.squeeze(logits, -1)                             # (steps, N)
    ret_dict = {'cell_embed': cell_embed, 'cell_input': cell_x, 'cell_x': cell_x}
    return ret_dict, logits, 0.0


# ----------------------- pure-JAX reference (spec semantics) -----------------
def futoshiki_bin_forward_ref(params, cell_q, edges):
    idx = jnp.where(cell_q == -1, 2, cell_q).astype(jnp.int32)
    cell_x = jnp.take(params['digit_embed'], idx, axis=0)
    x = cell_x
    h = cell_x
    rnn_h = jnp.zeros_like(cell_x)
    rnn_c = jnp.zeros_like(cell_x)
    outs, scores = [], []
    for _ in range(NUM_STEPS):
        aggs = []
        for t, et in enumerate(EDGE_TYPES):
            src, dst = edges[et]
            e_emb = jnp.broadcast_to(params['edge_embed_tbl'][t], (src.shape[0], EDGE_DIM))
            feat = jnp.concatenate([h[src], h[dst], e_emb], axis=-1)
            w1, b1, w2, b2, w3, b3, w4, b4 = params['msg_params'][et]
            mm = jnp.maximum(feat @ w1 + b1, 0.0)
            mm = jnp.maximum(mm @ w2 + b2, 0.0)
            mm = jnp.maximum(mm @ w3 + b3, 0.0)
            msg = mm @ w4 + b4
            aggs.append(jax.ops.segment_sum(msg, dst, num_segments=N))
        m = jnp.concatenate(aggs, axis=-1)                        # (N, 4H)
        xm = jnp.concatenate([x, m], axis=-1)                     # (N, 5H)
        gates = xm @ params['lstm_wih_t'] + rnn_h @ params['lstm_whh_t']
        i = jax.nn.sigmoid(gates[:, 0 * H:1 * H])
        f = jax.nn.sigmoid(gates[:, 1 * H:2 * H])
        g = jnp.tanh(gates[:, 2 * H:3 * H])
        o = jax.nn.sigmoid(gates[:, 3 * H:4 * H])
        rnn_c = f * rnn_c + i * g
        rnn_h = o * jnp.tanh(rnn_c)
        h = rnn_h
        outs.append(h)
        scores.append((h @ params['w_score'])[:, 0])
    ret = {'cell_embed': jnp.stack(outs, 0), 'cell_input': cell_x, 'cell_x': cell_x}
    return ret, jnp.stack(scores, 0), 0.0


# ----------------------------------- main -------------------------------------
if __name__ == "__main__":
    key = jax.random.PRNGKey(0)
    kp, kq = jax.random.split(key)
    params = init_params(kp)
    edges = build_edges()
    packed = pack_params(params)
    # binary futoshiki queries: values in {-1, 0, 1}
    cell_q = jax.random.randint(kq, (N,), -1, 2, dtype=jnp.int32)

    fwd = jax.jit(futoshiki_bin_forward_pallas)
    ret_dict, logits, _ = fwd(params, packed, cell_q)
    jax.block_until_ready(logits)

    # pure-JAX f32 reference for correctness
    ret_ref, logits_ref, _ = jax.jit(futoshiki_bin_forward_ref)(params, cell_q, edges)
    jax.block_until_ready(logits_ref)

    assert logits.shape == (NUM_STEPS, N)
    assert ret_dict['cell_embed'].shape == (NUM_STEPS, N, H)
    # bf16 MXU operands -> two-tier check against the f32 reference
    for got, ref in ((ret_dict['cell_embed'], ret_ref['cell_embed']),
                     (logits, logits_ref)):
        err = jnp.abs(got - ref)
        assert float(err.max()) < 6e-2, f"max err {float(err.max())}"
        assert float(err.mean()) < 8e-3, f"mean err {float(err.mean())}"

    print("KERNEL_OK")
</pallas_src>

<mosaic_0001>
module attributes {stable_mosaic.version = 11 : i64} {
  func.func @_fused_rrcn_kernel(%arg0: memref<128x32xf32, #tpu.memory_space<vmem>>, %arg1: memref<32x384xbf16, #tpu.memory_space<vmem>>, %arg2: memref<32x384xbf16, #tpu.memory_space<vmem>>, %arg3: memref<1x128xf32, #tpu.memory_space<vmem>>, %arg4: memref<128x128xbf16, #tpu.memory_space<vmem>>, %arg5: memref<1x128xf32, #tpu.memory_space<vmem>>, %arg6: memref<128x128xbf16, #tpu.memory_space<vmem>>, %arg7: memref<1x128xf32, #tpu.memory_space<vmem>>, %arg8: memref<128x128xbf16, #tpu.memory_space<vmem>>, %arg9: memref<1x128xf32, #tpu.memory_space<vmem>>, %arg10: memref<128x128xbf16, #tpu.memory_space<vmem>>, %arg11: memref<1x32xf32, #tpu.memory_space<vmem>>, %arg12: memref<2x128x32xf32, #tpu.memory_space<vmem>>, %arg13: memref<2x128x1xf32, #tpu.memory_space<vmem>>) attributes {dimension_semantics = [], scalar_prefetch = 0 : i64, scratch_operands = 0 : i64, tpu.core_type = #tpu.core_type<tc>} {
    %0 = tpu.iota {dimensions = array<i32: 0>} : vector<128x128xi32>
    %c63_i32 = arith.constant 63 : i32
    %1 = vector.broadcast %c63_i32 : i32 to vector<128x128xi32>
    %2 = arith.andi %0, %1 : vector<128x128xi32>
    %3 = tpu.iota {dimensions = array<i32: 1>} : vector<128x128xi32>
    %c0 = arith.constant 0 : index
    %c0_0 = arith.constant 0 : index
    %4 = vector.load %arg3[%c0, %c0_0] : memref<1x128xf32, #tpu.memory_space<vmem>>, vector<1x128xf32>
    %c0_1 = arith.constant 0 : index
    %c0_2 = arith.constant 0 : index
    %5 = vector.load %arg5[%c0_1, %c0_2] : memref<1x128xf32, #tpu.memory_space<vmem>>, vector<1x128xf32>
    %c0_3 = arith.constant 0 : index
    %c0_4 = arith.constant 0 : index
    %6 = vector.load %arg7[%c0_3, %c0_4] : memref<1x128xf32, #tpu.memory_space<vmem>>, vector<1x128xf32>
    %c0_5 = arith.constant 0 : index
    %c0_6 = arith.constant 0 : index
    %7 = vector.load %arg9[%c0_5, %c0_6] : memref<1x128xf32, #tpu.memory_space<vmem>>, vector<1x128xf32>
    %c0_7 = arith.constant 0 : index
    %c0_8 = arith.constant 0 : index
    %8 = vector.load %arg11[%c0_7, %c0_8] : memref<1x32xf32, #tpu.memory_space<vmem>>, vector<1x32xf32>
    %c0_9 = arith.constant 0 : index
    %c0_10 = arith.constant 0 : index
    %9 = vector.load %arg0[%c0_9, %c0_10] : memref<128x32xf32, #tpu.memory_space<vmem>>, vector<128x32xf32>
    %10 = arith.truncf %9 : vector<128x32xf32> to vector<128x32xbf16>
    %c0_11 = arith.constant 0 : index
    %c0_12 = arith.constant 0 : index
    %11 = vector.load %arg1[%c0_11, %c0_12] : memref<32x384xbf16, #tpu.memory_space<vmem>>, vector<32x384xbf16>
    %cst = arith.constant dense<0.000000e+00> : vector<128x384xf32>
    %12 = tpu.matmul %10, %11, %cst {dimension_numbers = #tpu.dot_dimension_numbers<[1], [0], [0], [1], [0, 0, 1, 1], [], []>} : vector<128x32xbf16>, vector<32x384xbf16>, vector<128x384xf32> -> vector<128x384xf32>
    %13 = vector.extract_strided_slice %12 {offsets = [0, 0], sizes = [128, 128], strides = [1, 1]} : vector<128x384xf32> to vector<128x128xf32>
    %14 = vector.extract_strided_slice %12 {offsets = [0, 128], sizes = [128, 128], strides = [1, 1]} : vector<128x384xf32> to vector<128x128xf32>
    %15 = vector.extract_strided_slice %12 {offsets = [0, 256], sizes = [128, 128], strides = [1, 1]} : vector<128x384xf32> to vector<128x128xf32>
    %c1_i32 = arith.constant 1 : i32
    %16 = vector.broadcast %c1_i32 : i32 to vector<128x128xi32>
    %17 = arith.cmpi sge, %2, %16 : vector<128x128xi32>
    %c1_i32_13 = arith.constant 1 : i32
    %18 = tpu.dynamic_rotate %13 by %c1_i32_13 dim 0 : vector<128x128xf32>, i32 -> vector<128x128xf32>
    %c65_i32 = arith.constant 65 : i32
    %19 = tpu.dynamic_rotate %13 by %c65_i32 dim 0 : vector<128x128xf32>, i32 -> vector<128x128xf32>
    %20 = arith.select %17, %18, %19 : vector<128x128xi1>, vector<128x128xf32>
    %c4_i32 = arith.constant 4 : i32
    %21 = vector.broadcast %c4_i32 : i32 to vector<128x128xi32>
    %22 = arith.cmpi sge, %2, %21 : vector<128x128xi32>
    %c4_i32_14 = arith.constant 4 : i32
    %23 = tpu.dynamic_rotate %13 by %c4_i32_14 dim 0 : vector<128x128xf32>, i32 -> vector<128x128xf32>
    %c68_i32 = arith.constant 68 : i32
    %24 = tpu.dynamic_rotate %13 by %c68_i32 dim 0 : vector<128x128xf32>, i32 -> vector<128x128xf32>
    %25 = arith.select %22, %23, %24 : vector<128x128xi1>, vector<128x128xf32>
    %c32_i32 = arith.constant 32 : i32
    %26 = vector.broadcast %c32_i32 : i32 to vector<128x128xi32>
    %27 = arith.cmpi slt, %3, %26 : vector<128x128xi32>
    %28 = arith.select %27, %20, %25 : vector<128x128xi1>, vector<128x128xf32>
    %c16_i32 = arith.constant 16 : i32
    %29 = vector.broadcast %c16_i32 : i32 to vector<128x128xi32>
    %30 = arith.cmpi sge, %2, %29 : vector<128x128xi32>
    %c16_i32_15 = arith.constant 16 : i32
    %31 = tpu.dynamic_rotate %13 by %c16_i32_15 dim 0 : vector<128x128xf32>, i32 -> vector<128x128xf32>
    %c80_i32 = arith.constant 80 : i32
    %32 = tpu.dynamic_rotate %13 by %c80_i32 dim 0 : vector<128x128xf32>, i32 -> vector<128x128xf32>
    %33 = arith.select %30, %31, %32 : vector<128x128xi1>, vector<128x128xf32>
    %c64_i32 = arith.constant 64 : i32
    %34 = vector.broadcast %c64_i32 : i32 to vector<128x128xi32>
    %35 = arith.cmpi slt, %3, %34 : vector<128x128xi32>
    %36 = arith.select %35, %28, %33 : vector<128x128xi1>, vector<128x128xf32>
    %c5_i32 = arith.constant 5 : i32
    %37 = vector.broadcast %c5_i32 : i32 to vector<128x128xi32>
    %38 = arith.cmpi sge, %2, %37 : vector<128x128xi32>
    %c5_i32_16 = arith.constant 5 : i32
    %39 = tpu.dynamic_rotate %13 by %c5_i32_16 dim 0 : vector<128x128xf32>, i32 -> vector<128x128xf32>
    %c69_i32 = arith.constant 69 : i32
    %40 = tpu.dynamic_rotate %13 by %c69_i32 dim 0 : vector<128x128xf32>, i32 -> vector<128x128xf32>
    %41 = arith.select %38, %39, %40 : vector<128x128xi1>, vector<128x128xf32>
    %c96_i32 = arith.constant 96 : i32
    %42 = vector.broadcast %c96_i32 : i32 to vector<128x128xi32>
    %43 = arith.cmpi slt, %3, %42 : vector<128x128xi32>
    %44 = arith.select %43, %36, %41 : vector<128x128xi1>, vector<128x128xf32>
    %45 = arith.addf %44, %14 : vector<128x128xf32>
    %46 = vector.broadcast %4 : vector<1x128xf32> to vector<128x128xf32>
    %47 = arith.addf %45, %46 : vector<128x128xf32>
    %cst_17 = arith.constant 0.000000e+00 : f32
    %48 = vector.broadcast %cst_17 : f32 to vector<128x128xf32>
    %49 = arith.maximumf %47, %48 : vector<128x128xf32>
    %50 = arith.truncf %49 : vector<128x128xf32> to vector<128x128xbf16>
    %c0_18 = arith.constant 0 : index
    %c0_19 = arith.constant 0 : index
    %51 = vector.load %arg4[%c0_18, %c0_19] : memref<128x128xbf16, #tpu.memory_space<vmem>>, vector<128x128xbf16>
    %cst_20 = arith.constant dense<0.000000e+00> : vector<128x128xf32>
    %52 = tpu.matmul %50, %51, %cst_20 {dimension_numbers = #tpu.dot_dimension_numbers<[1], [0], [0], [1], [0, 0, 1, 1], [], []>} : vector<128x128xbf16>, vector<128x128xbf16>, vector<128x128xf32> -> vector<128x128xf32>
    %53 = vector.broadcast %5 : vector<1x128xf32> to vector<128x128xf32>
    %54 = arith.addf %52, %53 : vector<128x128xf32>
    %cst_21 = arith.constant 0.000000e+00 : f32
    %55 = vector.broadcast %cst_21 : f32 to vector<128x128xf32>
    %56 = arith.maximumf %54, %55 : vector<128x128xf32>
    %57 = arith.truncf %56 : vector<128x128xf32> to vector<128x128xbf16>
    %c0_22 = arith.constant 0 : index
    %c0_23 = arith.constant 0 : index
    %58 = vector.load %arg6[%c0_22, %c0_23] : memref<128x128xbf16, #tpu.memory_space<vmem>>, vector<128x128xbf16>
    %cst_24 = arith.constant dense<0.000000e+00> : vector<128x128xf32>
    %59 = tpu.matmul %57, %58, %cst_24 {dimension_numbers = #tpu.dot_dimension_numbers<[1], [0], [0], [1], [0, 0, 1, 1], [], []>} : vector<128x128xbf16>, vector<128x128xbf16>, vector<128x128xf32> -> vector<128x128xf32>
    %60 = vector.broadcast %6 : vector<1x128xf32> to vector<128x128xf32>
    %61 = arith.addf %59, %60 : vector<128x128xf32>
    %cst_25 = arith.constant 0.000000e+00 : f32
    %62 = vector.broadcast %cst_25 : f32 to vector<128x128xf32>
    %63 = arith.maximumf %61, %62 : vector<128x128xf32>
    %64 = arith.truncf %63 : vector<128x128xf32> to vector<128x128xbf16>
    %c0_26 = arith.constant 0 : index
    %c0_27 = arith.constant 0 : index
    %65 = vector.load %arg8[%c0_26, %c0_27] : memref<128x128xbf16, #tpu.memory_space<vmem>>, vector<128x128xbf16>
    %cst_28 = arith.constant dense<0.000000e+00> : vector<128x128xf32>
    %66 = tpu.matmul %64, %65, %cst_28 {dimension_numbers = #tpu.dot_dimension_numbers<[1], [0], [0], [1], [0, 0, 1, 1], [], []>} : vector<128x128xbf16>, vector<128x128xbf16>, vector<128x128xf32> -> vector<128x128xf32>
    %67 = vector.broadcast %7 : vector<1x128xf32> to vector<128x128xf32>
    %68 = arith.addf %66, %67 : vector<128x128xf32>
    %69 = arith.truncf %68 : vector<128x128xf32> to vector<128x128xbf16>
    %c0_29 = arith.constant 0 : index
    %c0_30 = arith.constant 0 : index
    %70 = vector.load %arg10[%c0_29, %c0_30] : memref<128x128xbf16, #tpu.memory_space<vmem>>, vector<128x128xbf16>
    %cst_31 = arith.constant dense<0.000000e+00> : vector<128x128xf32>
    %71 = tpu.matmul %69, %70, %cst_31 {dimension_numbers = #tpu.dot_dimension_numbers<[1], [0], [0], [1], [0, 0, 1, 1], [], []>} : vector<128x128xbf16>, vector<128x128xbf16>, vector<128x128xf32> -> vector<128x128xf32>
    %72 = arith.addf %15, %71 : vector<128x128xf32>
    %73 = vector.extract_strided_slice %72 {offsets = [0, 0], sizes = [128, 32], strides = [1, 1]} : vector<128x128xf32> to vector<128x32xf32>
    %74 = arith.negf %73 : vector<128x32xf32>
    %75 = math.exp %74 : vector<128x32xf32>
    %cst_32 = arith.constant 1.000000e+00 : f32
    %76 = vector.broadcast %cst_32 : f32 to vector<128x32xf32>
    %77 = arith.addf %76, %75 : vector<128x32xf32>
    %78 = arith.divf %76, %77 : vector<128x32xf32>
    %79 = vector.extract_strided_slice %72 {offsets = [0, 64], sizes = [128, 32], strides = [1, 1]} : vector<128x128xf32> to vector<128x32xf32>
    %80 = math.tanh %79 : vector<128x32xf32>
    %81 = vector.extract_strided_slice %72 {offsets = [0, 96], sizes = [128, 32], strides = [1, 1]} : vector<128x128xf32> to vector<128x32xf32>
    %82 = arith.negf %81 : vector<128x32xf32>
    %83 = math.exp %82 : vector<128x32xf32>
    %cst_33 = arith.constant 1.000000e+00 : f32
    %84 = vector.broadcast %cst_33 : f32 to vector<128x32xf32>
    %85 = arith.addf %84, %83 : vector<128x32xf32>
    %86 = arith.divf %84, %85 : vector<128x32xf32>
    %87 = arith.mulf %78, %80 : vector<128x32xf32>
    %88 = math.tanh %87 : vector<128x32xf32>
    %89 = arith.mulf %86, %88 : vector<128x32xf32>
    %c0_34 = arith.constant 0 : index
    %c0_35 = arith.constant 0 : index
    %c0_36 = arith.constant 0 : index
    %90 = vector.load %arg12[%c0_34, %c0_35, %c0_36] : memref<2x128x32xf32, #tpu.memory_space<vmem>>, vector<1x128x32xf32>
    %91 = vector.shape_cast %90 : vector<1x128x32xf32> to vector<128x32xf32>
    %92 = vector.shape_cast %89 : vector<128x32xf32> to vector<1x128x32xf32>
    tpu.vector_store %arg12[%c0_34, %c0_35, %c0_36], %92 {strides = array<i32>} : memref<2x128x32xf32, #tpu.memory_space<vmem>>, vector<1x128x32xf32>,
    %93 = vector.broadcast %8 : vector<1x32xf32> to vector<128x32xf32>
    %94 = arith.mulf %89, %93 : vector<128x32xf32>
    %cst_37 = arith.constant dense<0.000000e+00> : vector<128xf32>
    %95 = vector.multi_reduction <add>, %94, %cst_37 [1] : vector<128x32xf32> to vector<128xf32>
    %96 = vector.shape_cast %95 : vector<128xf32> to vector<128x1xf32>
    %c0_38 = arith.constant 0 : index
    %c0_39 = arith.constant 0 : index
    %c0_40 = arith.constant 0 : index
    %97 = vector.load %arg13[%c0_38, %c0_39, %c0_40] : memref<2x128x1xf32, #tpu.memory_space<vmem>>, vector<1x128x1xf32>
    %98 = vector.shape_cast %97 : vector<1x128x1xf32> to vector<128x1xf32>
    %99 = vector.shape_cast %96 : vector<128x1xf32> to vector<1x128x1xf32>
    tpu.vector_store %arg13[%c0_38, %c0_39, %c0_40], %99 {strides = array<i32>} : memref<2x128x1xf32, #tpu.memory_space<vmem>>, vector<1x128x1xf32>,
    %100 = arith.truncf %89 : vector<128x32xf32> to vector<128x32xbf16>
    %c0_41 = arith.constant 0 : index
    %c0_42 = arith.constant 0 : index
    %101 = vector.load %arg2[%c0_41, %c0_42] : memref<32x384xbf16, #tpu.memory_space<vmem>>, vector<32x384xbf16>
    %cst_43 = arith.constant dense<0.000000e+00> : vector<128x384xf32>
    %102 = tpu.matmul %100, %101, %cst_43 {dimension_numbers = #tpu.dot_dimension_numbers<[1], [0], [0], [1], [0, 0, 1, 1], [], []>} : vector<128x32xbf16>, vector<32x384xbf16>, vector<128x384xf32> -> vector<128x384xf32>
    %103 = vector.extract_strided_slice %102 {offsets = [0, 0], sizes = [128, 128], strides = [1, 1]} : vector<128x384xf32> to vector<128x128xf32>
    %104 = vector.extract_strided_slice %102 {offsets = [0, 128], sizes = [128, 128], strides = [1, 1]} : vector<128x384xf32> to vector<128x128xf32>
    %105 = vector.extract_strided_slice %102 {offsets = [0, 256], sizes = [128, 128], strides = [1, 1]} : vector<128x384xf32> to vector<128x128xf32>
    %c1_i32_44 = arith.constant 1 : i32
    %106 = vector.broadcast %c1_i32_44 : i32 to vector<128x128xi32>
    %107 = arith.cmpi sge, %2, %106 : vector<128x128xi32>
    %c1_i32_45 = arith.constant 1 : i32
    %108 = tpu.dynamic_rotate %103 by %c1_i32_45 dim 0 : vector<128x128xf32>, i32 -> vector<128x128xf32>
    %c65_i32_46 = arith.constant 65 : i32
    %109 = tpu.dynamic_rotate %103 by %c65_i32_46 dim 0 : vector<128x128xf32>, i32 -> vector<128x128xf32>
    %110 = arith.select %107, %108, %109 : vector<128x128xi1>, vector<128x128xf32>
    %c4_i32_47 = arith.constant 4 : i32
    %111 = vector.broadcast %c4_i32_47 : i32 to vector<128x128xi32>
    %112 = arith.cmpi sge, %2, %111 : vector<128x128xi32>
    %c4_i32_48 = arith.constant 4 : i32
    %113 = tpu.dynamic_rotate %103 by %c4_i32_48 dim 0 : vector<128x128xf32>, i32 -> vector<128x128xf32>
    %c68_i32_49 = arith.constant 68 : i32
    %114 = tpu.dynamic_rotate %103 by %c68_i32_49 dim 0 : vector<128x128xf32>, i32 -> vector<128x128xf32>
    %115 = arith.select %112, %113, %114 : vector<128x128xi1>, vector<128x128xf32>
    %c32_i32_50 = arith.constant 32 : i32
    %116 = vector.broadcast %c32_i32_50 : i32 to vector<128x128xi32>
    %117 = arith.cmpi slt, %3, %116 : vector<128x128xi32>
    %118 = arith.select %117, %110, %115 : vector<128x128xi1>, vector<128x128xf32>
    %c16_i32_51 = arith.constant 16 : i32
    %119 = vector.broadcast %c16_i32_51 : i32 to vector<128x128xi32>
    %120 = arith.cmpi sge, %2, %119 : vector<128x128xi32>
    %c16_i32_52 = arith.constant 16 : i32
    %121 = tpu.dynamic_rotate %103 by %c16_i32_52 dim 0 : vector<128x128xf32>, i32 -> vector<128x128xf32>
    %c80_i32_53 = arith.constant 80 : i32
    %122 = tpu.dynamic_rotate %103 by %c80_i32_53 dim 0 : vector<128x128xf32>, i32 -> vector<128x128xf32>
    %123 = arith.select %120, %121, %122 : vector<128x128xi1>, vector<128x128xf32>
    %c64_i32_54 = arith.constant 64 : i32
    %124 = vector.broadcast %c64_i32_54 : i32 to vector<128x128xi32>
    %125 = arith.cmpi slt, %3, %124 : vector<128x128xi32>
    %126 = arith.select %125, %118, %123 : vector<128x128xi1>, vector<128x128xf32>
    %c5_i32_55 = arith.constant 5 : i32
    %127 = vector.broadcast %c5_i32_55 : i32 to vector<128x128xi32>
    %128 = arith.cmpi sge, %2, %127 : vector<128x128xi32>
    %c5_i32_56 = arith.constant 5 : i32
    %129 = tpu.dynamic_rotate %103 by %c5_i32_56 dim 0 : vector<128x128xf32>, i32 -> vector<128x128xf32>
    %c69_i32_57 = arith.constant 69 : i32
    %130 = tpu.dynamic_rotate %103 by %c69_i32_57 dim 0 : vector<128x128xf32>, i32 -> vector<128x128xf32>
    %131 = arith.select %128, %129, %130 : vector<128x128xi1>, vector<128x128xf32>
    %c96_i32_58 = arith.constant 96 : i32
    %132 = vector.broadcast %c96_i32_58 : i32 to vector<128x128xi32>
    %133 = arith.cmpi slt, %3, %132 : vector<128x128xi32>
    %134 = arith.select %133, %126, %131 : vector<128x128xi1>, vector<128x128xf32>
    %135 = arith.addf %134, %104 : vector<128x128xf32>
    %136 = vector.broadcast %4 : vector<1x128xf32> to vector<128x128xf32>
    %137 = arith.addf %135, %136 : vector<128x128xf32>
    %cst_59 = arith.constant 0.000000e+00 : f32
    %138 = vector.broadcast %cst_59 : f32 to vector<128x128xf32>
    %139 = arith.maximumf %137, %138 : vector<128x128xf32>
    %140 = arith.truncf %139 : vector<128x128xf32> to vector<128x128xbf16>
    %c0_60 = arith.constant 0 : index
    %c0_61 = arith.constant 0 : index
    %141 = vector.load %arg4[%c0_60, %c0_61] : memref<128x128xbf16, #tpu.memory_space<vmem>>, vector<128x128xbf16>
    %cst_62 = arith.constant dense<0.000000e+00> : vector<128x128xf32>
    %142 = tpu.matmul %140, %141, %cst_62 {dimension_numbers = #tpu.dot_dimension_numbers<[1], [0], [0], [1], [0, 0, 1, 1], [], []>} : vector<128x128xbf16>, vector<128x128xbf16>, vector<128x128xf32> -> vector<128x128xf32>
    %143 = vector.broadcast %5 : vector<1x128xf32> to vector<128x128xf32>
    %144 = arith.addf %142, %143 : vector<128x128xf32>
    %cst_63 = arith.constant 0.000000e+00 : f32
    %145 = vector.broadcast %cst_63 : f32 to vector<128x128xf32>
    %146 = arith.maximumf %144, %145 : vector<128x128xf32>
    %147 = arith.truncf %146 : vector<128x128xf32> to vector<128x128xbf16>
    %c0_64 = arith.constant 0 : index
    %c0_65 = arith.constant 0 : index
    %148 = vector.load %arg6[%c0_64, %c0_65] : memref<128x128xbf16, #tpu.memory_space<vmem>>, vector<128x128xbf16>
    %cst_66 = arith.constant dense<0.000000e+00> : vector<128x128xf32>
    %149 = tpu.matmul %147, %148, %cst_66 {dimension_numbers = #tpu.dot_dimension_numbers<[1], [0], [0], [1], [0, 0, 1, 1], [], []>} : vector<128x128xbf16>, vector<128x128xbf16>, vector<128x128xf32> -> vector<128x128xf32>
    %150 = vector.broadcast %6 : vector<1x128xf32> to vector<128x128xf32>
    %151 = arith.addf %149, %150 : vector<128x128xf32>
    %cst_67 = arith.constant 0.000000e+00 : f32
    %152 = vector.broadcast %cst_67 : f32 to vector<128x128xf32>
    %153 = arith.maximumf %151, %152 : vector<128x128xf32>
    %154 = arith.truncf %153 : vector<128x128xf32> to vector<128x128xbf16>
    %c0_68 = arith.constant 0 : index
    %c0_69 = arith.constant 0 : index
    %155 = vector.load %arg8[%c0_68, %c0_69] : memref<128x128xbf16, #tpu.memory_space<vmem>>, vector<128x128xbf16>
    %cst_70 = arith.constant dense<0.000000e+00> : vector<128x128xf32>
    %156 = tpu.matmul %154, %155, %cst_70 {dimension_numbers = #tpu.dot_dimension_numbers<[1], [0], [0], [1], [0, 0, 1, 1], [], []>} : vector<128x128xbf16>, vector<128x128xbf16>, vector<128x128xf32> -> vector<128x128xf32>
    %157 = vector.broadcast %7 : vector<1x128xf32> to vector<128x128xf32>
    %158 = arith.addf %156, %157 : vector<128x128xf32>
    %159 = arith.truncf %158 : vector<128x128xf32> to vector<128x128xbf16>
    %c0_71 = arith.constant 0 : index
    %c0_72 = arith.constant 0 : index
    %160 = vector.load %arg10[%c0_71, %c0_72] : memref<128x128xbf16, #tpu.memory_space<vmem>>, vector<128x128xbf16>
    %cst_73 = arith.constant dense<0.000000e+00> : vector<128x128xf32>
    %161 = tpu.matmul %159, %160, %cst_73 {dimension_numbers = #tpu.dot_dimension_numbers<[1], [0], [0], [1], [0, 0, 1, 1], [], []>} : vector<128x128xbf16>, vector<128x128xbf16>, vector<128x128xf32> -> vector<128x128xf32>
    %162 = arith.addf %15, %161 : vector<128x128xf32>
    %163 = arith.addf %162, %105 : vector<128x128xf32>
    %164 = vector.extract_strided_slice %163 {offsets = [0, 0], sizes = [128, 32], strides = [1, 1]} : vector<128x128xf32> to vector<128x32xf32>
    %165 = arith.negf %164 : vector<128x32xf32>
    %166 = math.exp %165 : vector<128x32xf32>
    %cst_74 = arith.constant 1.000000e+00 : f32
    %167 = vector.broadcast %cst_74 : f32 to vector<128x32xf32>
    %168 = arith.addf %167, %166 : vector<128x32xf32>
    %169 = arith.divf %167, %168 : vector<128x32xf32>
    %170 = vector.extract_strided_slice %163 {offsets = [0, 64], sizes = [128, 32], strides = [1, 1]} : vector<128x128xf32> to vector<128x32xf32>
    %171 = math.tanh %170 : vector<128x32xf32>
    %172 = vector.extract_strided_slice %163 {offsets = [0, 96], sizes = [128, 32], strides = [1, 1]} : vector<128x128xf32> to vector<128x32xf32>
    %173 = arith.negf %172 : vector<128x32xf32>
    %174 = math.exp %173 : vector<128x32xf32>
    %cst_75 = arith.constant 1.000000e+00 : f32
    %175 = vector.broadcast %cst_75 : f32 to vector<128x32xf32>
    %176 = arith.addf %175, %174 : vector<128x32xf32>
    %177 = arith.divf %175, %176 : vector<128x32xf32>
    %178 = vector.extract_strided_slice %163 {offsets = [0, 32], sizes = [128, 32], strides = [1, 1]} : vector<128x128xf32> to vector<128x32xf32>
    %179 = arith.negf %178 : vector<128x32xf32>
    %180 = math.exp %179 : vector<128x32xf32>
    %cst_76 = arith.constant 1.000000e+00 : f32
    %181 = vector.broadcast %cst_76 : f32 to vector<128x32xf32>
    %182 = arith.addf %181, %180 : vector<128x32xf32>
    %183 = arith.divf %181, %182 : vector<128x32xf32>
    %184 = arith.mulf %183, %87 : vector<128x32xf32>
    %185 = arith.mulf %169, %171 : vector<128x32xf32>
    %186 = arith.addf %184, %185 : vector<128x32xf32>
    %187 = math.tanh %186 : vector<128x32xf32>
    %188 = arith.mulf %177, %187 : vector<128x32xf32>
    %c1 = arith.constant 1 : index
    %c0_77 = arith.constant 0 : index
    %c0_78 = arith.constant 0 : index
    %189 = vector.load %arg12[%c1, %c0_77, %c0_78] : memref<2x128x32xf32, #tpu.memory_space<vmem>>, vector<1x128x32xf32>
    %190 = vector.shape_cast %189 : vector<1x128x32xf32> to vector<128x32xf32>
    %191 = vector.shape_cast %188 : vector<128x32xf32> to vector<1x128x32xf32>
    tpu.vector_store %arg12[%c1, %c0_77, %c0_78], %191 {strides = array<i32>} : memref<2x128x32xf32, #tpu.memory_space<vmem>>, vector<1x128x32xf32>,
    %192 = vector.broadcast %8 : vector<1x32xf32> to vector<128x32xf32>
    %193 = arith.mulf %188, %192 : vector<128x32xf32>
    %cst_79 = arith.constant dense<0.000000e+00> : vector<128xf32>
    %194 = vector.multi_reduction <add>, %193, %cst_79 [1] : vector<128x32xf32> to vector<128xf32>
    %195 = vector.shape_cast %194 : vector<128xf32> to vector<128x1xf32>
    %c1_80 = arith.constant 1 : index
    %c0_81 = arith.constant 0 : index
    %c0_82 = arith.constant 0 : index
    %196 = vector.load %arg13[%c1_80, %c0_81, %c0_82] : memref<2x128x1xf32, #tpu.memory_space<vmem>>, vector<1x128x1xf32>
    %197 = vector.shape_cast %196 : vector<1x128x1xf32> to vector<128x1xf32>
    %198 = vector.shape_cast %195 : vector<128x1xf32> to vector<1x128x1xf32>
    tpu.vector_store %arg13[%c1_80, %c0_81, %c0_82], %198 {strides = array<i32>} : memref<2x128x1xf32, #tpu.memory_space<vmem>>, vector<1x128x1xf32>,
    return
  }
}

</mosaic_0001>

<llo_original>
// kernel: futoshiki_bin_forward_pallas.1
$region0: #{futoshiki_bin_forward_pallas.1}
  #allocation0 [shape = 'u32[]', space=smem, size = 0x4, offset = 0x4, fixed_abs, tag = 'smem constant byte address 0x4 - core index']
  #allocation1 [shape = 'u32[72,128]{1,0:T(1,128)}', space=vmem, size = 0x9000, scoped, tag = 'internal scratch']
  %s0 = inlined_call_operand.vmem [shape: f32[128,32], index: 0, kind: input, shape index: {}]
  %s1 = inlined_call_operand.vmem [shape: bf16[32,384], index: 1, kind: input, shape index: {}]
  %s2 = inlined_call_operand.vmem [shape: bf16[32,384], index: 2, kind: input, shape index: {}]
  %s3 = inlined_call_operand.vmem [shape: f32[1,128], index: 3, kind: input, shape index: {}]
  %s4 = inlined_call_operand.vmem [shape: bf16[128,128], index: 4, kind: input, shape index: {}]
  %s5 = inlined_call_operand.vmem [shape: f32[1,128], index: 5, kind: input, shape index: {}]
  %s6 = inlined_call_operand.vmem [shape: bf16[128,128], index: 6, kind: input, shape index: {}]
  %s7 = inlined_call_operand.vmem [shape: f32[1,128], index: 7, kind: input, shape index: {}]
  %s8 = inlined_call_operand.vmem [shape: bf16[128,128], index: 8, kind: input, shape index: {}]
  %s9 = inlined_call_operand.vmem [shape: f32[1,128], index: 9, kind: input, shape index: {}]
  %s10 = inlined_call_operand.vmem [shape: bf16[128,128], index: 10, kind: input, shape index: {}]
  %s11 = inlined_call_operand.vmem [shape: f32[1,32], index: 11, kind: input, shape index: {}]
  %s12 = inlined_call_operand.vmem [shape: f32[2,128,32], index: 12, kind: output, shape index: {0}]
  %s13 = inlined_call_operand.vmem [shape: f32[2,128,1], index: 13, kind: output, shape index: {1}]
  %14 = xla_tuple %s12, %s13
  %s15 = sld [smem:[#allocation0]]
  $region66: #{futoshiki_bin_forward_pallas.1} parent=0
    _
  %s17 = ssub.s32 1, %s15
  %s18 = scalar_select 0, %s17, %s15
  // Predicated region
  $region2: #{futoshiki_bin_forward_pallas.1} parent=0 // pred_check
    _
  $region3: #{futoshiki_bin_forward_pallas.1} parent=0 // pred_check_branch
    %20 = sbr.rel (0) target = $region5
  $region4: #{futoshiki_bin_forward_pallas.1} parent=0 // pred_region
    _
  $region5: #{futoshiki_bin_forward_pallas.1} parent=0 // pred_fallthru
    _
  // Predicated region
  $region6: #{futoshiki_bin_forward_pallas.1} parent=0 // pred_check
    _
  $region7: #{futoshiki_bin_forward_pallas.1} parent=0 // pred_check_branch
    %22 = sbr.rel (0) target = $region9
  $region8: #{futoshiki_bin_forward_pallas.1} parent=0 // pred_region
    _
  $region9: #{futoshiki_bin_forward_pallas.1} parent=0 // pred_fallthru
    _
  // Predicated region
  $region10: #{futoshiki_bin_forward_pallas.1} parent=0 // pred_check
    _
  $region11: #{futoshiki_bin_forward_pallas.1} parent=0 // pred_check_branch
    %24 = sbr.rel (0) target = $region13
  $region12: #{futoshiki_bin_forward_pallas.1} parent=0 // pred_region
    _
  $region13: #{futoshiki_bin_forward_pallas.1} parent=0 // pred_fallthru
    _
  // Predicated region
  $region14: #{futoshiki_bin_forward_pallas.1} parent=0 // pred_check
    _
  $region15: #{futoshiki_bin_forward_pallas.1} parent=0 // pred_check_branch
    %26 = sbr.rel (0) target = $region17
  $region16: #{futoshiki_bin_forward_pallas.1} parent=0 // pred_region
    _
  $region17: #{futoshiki_bin_forward_pallas.1} parent=0 // pred_fallthru
    _
  // Predicated region
  $region18: #{futoshiki_bin_forward_pallas.1} parent=0 // pred_check
    _
  $region19: #{futoshiki_bin_forward_pallas.1} parent=0 // pred_check_branch
    %28 = sbr.rel (0) target = $region21
  $region20: #{futoshiki_bin_forward_pallas.1} parent=0 // pred_region
    _
  $region21: #{futoshiki_bin_forward_pallas.1} parent=0 // pred_fallthru
    _
  // Predicated region
  $region22: #{futoshiki_bin_forward_pallas.1} parent=0 // pred_check
    _
  $region23: #{futoshiki_bin_forward_pallas.1} parent=0 // pred_check_branch
    %30 = sbr.rel (0) target = $region25
  $region24: #{futoshiki_bin_forward_pallas.1} parent=0 // pred_region
    _
  $region25: #{futoshiki_bin_forward_pallas.1} parent=0 // pred_fallthru
    _
  // Predicated region
  $region26: #{futoshiki_bin_forward_pallas.1} parent=0 // pred_check
    _
  $region27: #{futoshiki_bin_forward_pallas.1} parent=0 // pred_check_branch
    %32 = sbr.rel (0) target = $region29
  $region28: #{futoshiki_bin_forward_pallas.1} parent=0 // pred_region
    _
  $region29: #{futoshiki_bin_forward_pallas.1} parent=0 // pred_fallthru
    _
  // Predicated region
  $region30: #{futoshiki_bin_forward_pallas.1} parent=0 // pred_check
    _
  $region31: #{futoshiki_bin_forward_pallas.1} parent=0 // pred_check_branch
    %34 = sbr.rel (0) target = $region33
  $region32: #{futoshiki_bin_forward_pallas.1} parent=0 // pred_region
    _
  $region33: #{futoshiki_bin_forward_pallas.1} parent=0 // pred_fallthru
    _
  // Predicated region
  $region34: #{futoshiki_bin_forward_pallas.1} parent=0 // pred_check
    _
  $region35: #{futoshiki_bin_forward_pallas.1} parent=0 // pred_check_branch
    %36 = sbr.rel (0) target = $region37
  $region36: #{futoshiki_bin_forward_pallas.1} parent=0 // pred_region
    _
  $region37: #{futoshiki_bin_forward_pallas.1} parent=0 // pred_fallthru
    _
  // Predicated region
  $region38: #{futoshiki_bin_forward_pallas.1} parent=0 // pred_check
    _
  $region39: #{futoshiki_bin_forward_pallas.1} parent=0 // pred_check_branch
    %38 = sbr.rel (0) target = $region41
  $region40: #{futoshiki_bin_forward_pallas.1} parent=0 // pred_region
    _
  $region41: #{futoshiki_bin_forward_pallas.1} parent=0 // pred_fallthru
    _
  // Predicated region
  $region42: #{futoshiki_bin_forward_pallas.1} parent=0 // pred_check
    _
  $region43: #{futoshiki_bin_forward_pallas.1} parent=0 // pred_check_branch
    %40 = sbr.rel (0) target = $region45
  $region44: #{futoshiki_bin_forward_pallas.1} parent=0 // pred_region
    _
  $region45: #{futoshiki_bin_forward_pallas.1} parent=0 // pred_fallthru
    _
  // Predicated region
  $region46: #{futoshiki_bin_forward_pallas.1} parent=0 // pred_check
    _
  $region47: #{futoshiki_bin_forward_pallas.1} parent=0 // pred_check_branch
    %42 = sbr.rel (0) target = $region49
  $region48: #{futoshiki_bin_forward_pallas.1} parent=0 // pred_region
    _
  $region49: #{futoshiki_bin_forward_pallas.1} parent=0 // pred_fallthru
    _
  %v44 = vlaneseq
  %v45 = vshrl.u32 %v44, 7
  %v46 = vadd.s32 %v45, 8
  %v47 = vadd.s32 %v45, 16
  %v48 = vadd.s32 %v45, 24
  %v49 = vadd.s32 %v45, 32
  %v50 = vadd.s32 %v45, 40
  %v51 = vadd.s32 %v45, 48
  %v52 = vadd.s32 %v45, 56
  %v53 = vadd.s32 %v45, 64
  %v54 = vadd.s32 %v45, 72
  %v55 = vadd.s32 %v45, 80
  %v56 = vadd.s32 %v45, 88
  %v57 = vadd.s32 %v45, 96
  %v58 = vadd.s32 %v45, 104
  %v59 = vadd.s32 %v45, 112
  %v60 = vadd.s32 %v45, 120
  %v61 = vand.u32 %v45, 63
  %v62 = vand.u32 %v46, 63
  %v63 = vand.u32 %v47, 63
  %v64 = vand.u32 %v48, 63
  %v65 = vand.u32 %v49, 63
  %v66 = vand.u32 %v50, 63
  %v67 = vand.u32 %v51, 63
  %v68 = vand.u32 %v52, 63
  %v69 = vand.u32 %v53, 63
  %v70 = vand.u32 %v54, 63
  %v71 = vand.u32 %v55, 63
  %v72 = vand.u32 %v56, 63
  %v73 = vand.u32 %v57, 63
  %v74 = vand.u32 %v58, 63
  %v75 = vand.u32 %v59, 63
  %v76 = vand.u32 %v60, 63
  %v77 = vlaneseq
  %v78 = vand.u32 %v77, 127
  %v79 = vld [vmem:[%s3] sm:$0x1]
  %v80 = vld [vmem:[%s5] sm:$0x1]
  %v81 = vld [vmem:[%s7] sm:$0x1]
  %v82 = vld [vmem:[%s9] sm:$0x1]
  %v83 = vld [vmem:[%s11] sm:$0x1]
  %v84 = vld [vmem:[%s0] sm:$0xff]
  %v85 = vld [vmem:[%s0 + $0x8] sm:$0xff]
  %v86 = vld [vmem:[%s0 + $0x10] sm:$0xff]
  %v87 = vld [vmem:[%s0 + $0x18] sm:$0xff]
  %v88 = vld [vmem:[%s0 + $0x20] sm:$0xff]
  %v89 = vld [vmem:[%s0 + $0x28] sm:$0xff]
  %v90 = vld [vmem:[%s0 + $0x30] sm:$0xff]
  %v91 = vld [vmem:[%s0 + $0x38] sm:$0xff]
  %v92 = vld [vmem:[%s0 + $0x40] sm:$0xff]
  %v93 = vld [vmem:[%s0 + $0x48] sm:$0xff]
  %v94 = vld [vmem:[%s0 + $0x50] sm:$0xff]
  %v95 = vld [vmem:[%s0 + $0x58] sm:$0xff]
  %v96 = vld [vmem:[%s0 + $0x60] sm:$0xff]
  %v97 = vld [vmem:[%s0 + $0x68] sm:$0xff]
  %v98 = vld [vmem:[%s0 + $0x70] sm:$0xff]
  %v99 = vld [vmem:[%s0 + $0x78] sm:$0xff]
  %v100 = vpack.c.bf16 %v85, %v84
  %v101 = vpack.c.bf16 %v87, %v86
  %v102 = vpack.c.bf16 %v89, %v88
  %v103 = vpack.c.bf16 %v91, %v90
  %v104 = vpack.c.bf16 %v93, %v92
  %v105 = vpack.c.bf16 %v95, %v94
  %v106 = vpack.c.bf16 %v97, %v96
  %v107 = vpack.c.bf16 %v99, %v98
  %v108 = vld [vmem:[%s1] sm:$0xff]
  %v109 = vld [vmem:[%s1 + $0x8] sm:$0xf]
  %v110 = vld [vmem:[%s1 + $0xc] sm:$0xff]
  %v111 = vld [vmem:[%s1 + $0x14] sm:$0xf]
  %v112 = vld [vmem:[%s1 + $0x18] sm:$0xff]
  %v113 = vld [vmem:[%s1 + $0x20] sm:$0xf]
  %v114 = vld [vmem:[%s1 + $0x24] sm:$0xff]
  %v115 = vld [vmem:[%s1 + $0x2c] sm:$0xf]
  %v124 = vunpack.c.l.b16 %v108
  %v125 = vunpack.c.h.b16 %v108
  %v126 = vunpack.c.l.b16 %v109
  %v127 = vunpack.c.l.b16 %v110
  %v128 = vunpack.c.h.b16 %v110
  %v129 = vunpack.c.l.b16 %v111
  %v130 = vunpack.c.l.b16 %v112
  %v131 = vunpack.c.h.b16 %v112
  %v132 = vunpack.c.l.b16 %v113
  %v133 = vunpack.c.l.b16 %v114
  %v134 = vunpack.c.h.b16 %v114
  %v135 = vunpack.c.l.b16 %v115
  %v136 = vpack.c.b16 %v127, %v124
  %v137 = vpack.c.b16 %v128, %v125
  %v138 = vpack.c.b16 %v129, %v126
  %v139 = vpack.c.b16 %v133, %v130
  %v140 = vpack.c.b16 %v134, %v131
  %v141 = vpack.c.b16 %v135, %v132
  %vm148 = vcmask 261120
  %v150 = vsel %vm148, %v100, 0
  %v153 = vsel %vm148, %v101, 0
  %v156 = vsel %vm148, %v102, 0
  %v159 = vsel %vm148, %v103, 0
  %v162 = vsel %vm148, %v104, 0
  %v165 = vsel %vm148, %v105, 0
  %v168 = vsel %vm148, %v106, 0
  %v171 = vsel %vm148, %v107, 0
  %173 = vmatpush.bf16.msra.mxu0 0
  %174 = vmatpush.bf16.msra.mxu0 0
  %175 = vmatpush.bf16.msra.mxu0 0
  %176 = vmatpush.bf16.msra.mxu0 0
  %177 = vmatpush.bf16.msra.mxu0 0
  %178 = vmatpush.bf16.msra.mxu0 0
  %179 = vmatpush.bf16.msra.mxu0 %v139
  %180 = vmatpush.bf16.msra.mxu0 %v136
  %181 = vmatmul.bf16.gmra.mxu0 %v150
  %v182 = vpop.f32.mrf.mxu0
  %v183 = vadd.f32 0.0, %v182
  %v184 = vpop.f32.mrf.mxu0
  %v185 = vadd.f32 0.0, %v184
  %186 = vmatmul.bf16.gmra.mxu0 %v153
  %v187 = vpop.f32.mrf.mxu0
  %v188 = vadd.f32 0.0, %v187
  %v189 = vpop.f32.mrf.mxu0
  %v190 = vadd.f32 0.0, %v189
  %191 = vmatmul.bf16.gmra.mxu0 %v156
  %v192 = vpop.f32.mrf.mxu0
  %v193 = vadd.f32 0.0, %v192
  %v194 = vpop.f32.mrf.mxu0
  %v195 = vadd.f32 0.0, %v194
  %196 = vmatmul.bf16.gmra.mxu0 %v159
  %v197 = vpop.f32.mrf.mxu0
  %v198 = vadd.f32 0.0, %v197
  %v199 = vpop.f32.mrf.mxu0
  %v200 = vadd.f32 0.0, %v199
  %201 = vmatmul.bf16.gmra.mxu0 %v162
  %v202 = vpop.f32.mrf.mxu0
  %v203 = vadd.f32 0.0, %v202
  %v204 = vpop.f32.mrf.mxu0
  %v205 = vadd.f32 0.0, %v204
  %206 = vmatmul.bf16.gmra.mxu0 %v165
  %v207 = vpop.f32.mrf.mxu0
  %v208 = vadd.f32 0.0, %v207
  %v209 = vpop.f32.mrf.mxu0
  %v210 = vadd.f32 0.0, %v209
  %211 = vmatmul.bf16.gmra.mxu0 %v168
  %v212 = vpop.f32.mrf.mxu0
  %v213 = vadd.f32 0.0, %v212
  %v214 = vpop.f32.mrf.mxu0
  %v215 = vadd.f32 0.0, %v214
  %216 = vmatmul.bf16.gmra.mxu0 %v171
  %v217 = vpop.f32.mrf.mxu0
  %v218 = vadd.f32 0.0, %v217
  %v219 = vpop.f32.mrf.mxu0
  %v220 = vadd.f32 0.0, %v219
  %221 = vdwg.mxu0
  %222 = vmatpush.bf16.msra.mxu0 0
  %223 = vmatpush.bf16.msra.mxu0 0
  %224 = vmatpush.bf16.msra.mxu0 0
  %225 = vmatpush.bf16.msra.mxu0 0
  %226 = vmatpush.bf16.msra.mxu0 0
  %227 = vmatpush.bf16.msra.mxu0 0
  %228 = vmatpush.bf16.msra.mxu0 %v140
  %229 = vmatpush.bf16.msra.mxu0 %v137
  %230 = vmatmul.bf16.gmra.mxu0 %v150
  %v231 = vpop.f32.mrf.mxu0
  %v232 = vadd.f32 0.0, %v231
  %v233 = vpop.f32.mrf.mxu0
  %v234 = vadd.f32 0.0, %v233
  %235 = vmatmul.bf16.gmra.mxu0 %v153
  %v236 = vpop.f32.mrf.mxu0
  %v237 = vadd.f32 0.0, %v236
  %v238 = vpop.f32.mrf.mxu0
  %v239 = vadd.f32 0.0, %v238
  %240 = vmatmul.bf16.gmra.mxu0 %v156
  %v241 = vpop.f32.mrf.mxu0
  %v242 = vadd.f32 0.0, %v241
  %v243 = vpop.f32.mrf.mxu0
  %v244 = vadd.f32 0.0, %v243
  %245 = vmatmul.bf16.gmra.mxu0 %v159
  %v246 = vpop.f32.mrf.mxu0
  %v247 = vadd.f32 0.0, %v246
  %v248 = vpop.f32.mrf.mxu0
  %v249 = vadd.f32 0.0, %v248
  %250 = vmatmul.bf16.gmra.mxu0 %v162
  %v251 = vpop.f32.mrf.mxu0
  %v252 = vadd.f32 0.0, %v251
  %v253 = vpop.f32.mrf.mxu0
  %v254 = vadd.f32 0.0, %v253
  %255 = vmatmul.bf16.gmra.mxu0 %v165
  %v256 = vpop.f32.mrf.mxu0
  %v257 = vadd.f32 0.0, %v256
  %v258 = vpop.f32.mrf.mxu0
  %v259 = vadd.f32 0.0, %v258
  %260 = vmatmul.bf16.gmra.mxu0 %v168
  %v261 = vpop.f32.mrf.mxu0
  %v262 = vadd.f32 0.0, %v261
  %v263 = vpop.f32.mrf.mxu0
  %v264 = vadd.f32 0.0, %v263
  %265 = vmatmul.bf16.gmra.mxu0 %v171
  %v266 = vpop.f32.mrf.mxu0
  %v267 = vadd.f32 0.0, %v266
  %v268 = vpop.f32.mrf.mxu0
  %v269 = vadd.f32 0.0, %v268
  %270 = vdwg.mxu0
  %271 = vmatpush.bf16.msra.mxu0 0
  %272 = vmatpush.bf16.msra.mxu0 0
  %273 = vmatpush.bf16.msra.mxu0 0
  %274 = vmatpush.bf16.msra.mxu0 0
  %275 = vmatpush.bf16.msra.mxu0 0
  %276 = vmatpush.bf16.msra.mxu0 0
  %277 = vmatpush.bf16.msra.mxu0 %v141
  %278 = vmatpush.bf16.msra.mxu0 %v138
  %279 = vmatmul.bf16.gmra.mxu0 %v150
  %v280 = vpop.f32.mrf.mxu0
  %v281 = vadd.f32 0.0, %v280
  %v282 = vpop.f32.mrf.mxu0
  %v283 = vadd.f32 0.0, %v282
  %284 = vmatmul.bf16.gmra.mxu0 %v153
  %v285 = vpop.f32.mrf.mxu0
  %v286 = vadd.f32 0.0, %v285
  %v287 = vpop.f32.mrf.mxu0
  %v288 = vadd.f32 0.0, %v287
  %289 = vmatmul.bf16.gmra.mxu0 %v156
  %v290 = vpop.f32.mrf.mxu0
  %v291 = vadd.f32 0.0, %v290
  %v292 = vpop.f32.mrf.mxu0
  %v293 = vadd.f32 0.0, %v292
  %294 = vmatmul.bf16.gmra.mxu0 %v159
  %v295 = vpop.f32.mrf.mxu0
  %v296 = vadd.f32 0.0, %v295
  %v297 = vpop.f32.mrf.mxu0
  %v298 = vadd.f32 0.0, %v297
  %299 = vmatmul.bf16.gmra.mxu0 %v162
  %v300 = vpop.f32.mrf.mxu0
  %v301 = vadd.f32 0.0, %v300
  %v302 = vpop.f32.mrf.mxu0
  %v303 = vadd.f32 0.0, %v302
  %304 = vmatmul.bf16.gmra.mxu0 %v165
  %v305 = vpop.f32.mrf.mxu0
  %v306 = vadd.f32 0.0, %v305
  %v307 = vpop.f32.mrf.mxu0
  %v308 = vadd.f32 0.0, %v307
  %309 = vmatmul.bf16.gmra.mxu0 %v168
  %v310 = vpop.f32.mrf.mxu0
  %v311 = vadd.f32 0.0, %v310
  %v312 = vpop.f32.mrf.mxu0
  %v313 = vadd.f32 0.0, %v312
  %314 = vmatmul.bf16.gmra.mxu0 %v171
  %v315 = vpop.f32.mrf.mxu0
  %v316 = vadd.f32 0.0, %v315
  %v317 = vpop.f32.mrf.mxu0
  %v318 = vadd.f32 0.0, %v317
  %319 = vdwg.mxu0
  %vm320 = vcmp.ge.s32.totalorder %v61, 1
  %vm321 = vcmp.ge.s32.totalorder %v62, 1
  %vm322 = vcmp.ge.s32.totalorder %v63, 1
  %vm323 = vcmp.ge.s32.totalorder %v64, 1
  %vm324 = vcmp.ge.s32.totalorder %v65, 1
  %vm325 = vcmp.ge.s32.totalorder %v66, 1
  %vm326 = vcmp.ge.s32.totalorder %v67, 1
  %vm327 = vcmp.ge.s32.totalorder %v68, 1
  %vm328 = vcmp.ge.s32.totalorder %v69, 1
  %vm329 = vcmp.ge.s32.totalorder %v70, 1
  %vm330 = vcmp.ge.s32.totalorder %v71, 1
  %vm331 = vcmp.ge.s32.totalorder %v72, 1
  %vm332 = vcmp.ge.s32.totalorder %v73, 1
  %vm333 = vcmp.ge.s32.totalorder %v74, 1
  %vm334 = vcmp.ge.s32.totalorder %v75, 1
  %vm335 = vcmp.ge.s32.totalorder %v76, 1
  %v336 = vrot.slane %v183, 7
  %v337 = vrot.slane %v185, 7
  %v338 = vrot.slane %v188, 7
  %v339 = vrot.slane %v190, 7
  %v340 = vrot.slane %v193, 7
  %v341 = vrot.slane %v195, 7
  %v342 = vrot.slane %v198, 7
  %v343 = vrot.slane %v200, 7
  %v344 = vrot.slane %v203, 7
  %v345 = vrot.slane %v205, 7
  %v346 = vrot.slane %v208, 7
  %v347 = vrot.slane %v210, 7
  %v348 = vrot.slane %v213, 7
  %v349 = vrot.slane %v215, 7
  %v350 = vrot.slane %v218, 7
  %v351 = vrot.slane %v220, 7
  %vm352 = vcmp.lt.s32.totalorder %v45, 1
  %v353 = vsel %vm352, %v350, %v351
  %v354 = vsel %vm352, %v349, %v350
  %v355 = vsel %vm352, %v348, %v349
  %v356 = vsel %vm352, %v347, %v348
  %v357 = vsel %vm352, %v346, %v347
  %v358 = vsel %vm352, %v345, %v346
  %v359 = vsel %vm352, %v344, %v345
  %v360 = vsel %vm352, %v343, %v344
  %v361 = vsel %vm352, %v342, %v343
  %v362 = vsel %vm352, %v341, %v342
  %v363 = vsel %vm352, %v340, %v341
  %v364 = vsel %vm352, %v339, %v340
  %v365 = vsel %vm352, %v338, %v339
  %v366 = vsel %vm352, %v337, %v338
  %v367 = vsel %vm352, %v336, %v337
  %v368 = vsel %vm352, %v351, %v336
  %v369 = vsel %vm320, %v368, %v360
  %v370 = vsel %vm321, %v367, %v359
  %v371 = vsel %vm322, %v366, %v358
  %v372 = vsel %vm323, %v365, %v357
  %v373 = vsel %vm324, %v364, %v356
  %v374 = vsel %vm325, %v363, %v355
  %v375 = vsel %vm326, %v362, %v354
  %v376 = vsel %vm327, %v361, %v353
  %v377 = vsel %vm328, %v360, %v368
  %v378 = vsel %vm329, %v359, %v367
  %v379 = vsel %vm330, %v358, %v366
  %v380 = vsel %vm331, %v357, %v365
  %v381 = vsel %vm332, %v356, %v364
  %v382 = vsel %vm333, %v355, %v363
  %v383 = vsel %vm334, %v354, %v362
  %v384 = vsel %vm335, %v353, %v361
  %vm385 = vcmp.ge.s32.totalorder %v61, 4
  %vm386 = vcmp.ge.s32.totalorder %v62, 4
  %vm387 = vcmp.ge.s32.totalorder %v63, 4
  %vm388 = vcmp.ge.s32.totalorder %v64, 4
  %vm389 = vcmp.ge.s32.totalorder %v65, 4
  %vm390 = vcmp.ge.s32.totalorder %v66, 4
  %vm391 = vcmp.ge.s32.totalorder %v67, 4
  %vm392 = vcmp.ge.s32.totalorder %v68, 4
  %vm393 = vcmp.ge.s32.totalorder %v69, 4
  %vm394 = vcmp.ge.s32.totalorder %v70, 4
  %vm395 = vcmp.ge.s32.totalorder %v71, 4
  %vm396 = vcmp.ge.s32.totalorder %v72, 4
  %vm397 = vcmp.ge.s32.totalorder %v73, 4
  %vm398 = vcmp.ge.s32.totalorder %v74, 4
  %vm399 = vcmp.ge.s32.totalorder %v75, 4
  %vm400 = vcmp.ge.s32.totalorder %v76, 4
  %v401 = vrot.slane %v183, 4
  %v402 = vrot.slane %v185, 4
  %v403 = vrot.slane %v188, 4
  %v404 = vrot.slane %v190, 4
  %v405 = vrot.slane %v193, 4
  %v406 = vrot.slane %v195, 4
  %v407 = vrot.slane %v198, 4
  %v408 = vrot.slane %v200, 4
  %v409 = vrot.slane %v203, 4
  %v410 = vrot.slane %v205, 4
  %v411 = vrot.slane %v208, 4
  %v412 = vrot.slane %v210, 4
  %v413 = vrot.slane %v213, 4
  %v414 = vrot.slane %v215, 4
  %v415 = vrot.slane %v218, 4
  %v416 = vrot.slane %v220, 4
  %vm417 = vcmp.lt.s32.totalorder %v45, 4
  %v418 = vsel %vm417, %v415, %v416
  %v419 = vsel %vm417, %v414, %v415
  %v420 = vsel %vm417, %v413, %v414
  %v421 = vsel %vm417, %v412, %v413
  %v422 = vsel %vm417, %v411, %v412
  %v423 = vsel %vm417, %v410, %v411
  %v424 = vsel %vm417, %v409, %v410
  %v425 = vsel %vm417, %v408, %v409
  %v426 = vsel %vm417, %v407, %v408
  %v427 = vsel %vm417, %v406, %v407
  %v428 = vsel %vm417, %v405, %v406
  %v429 = vsel %vm417, %v404, %v405
  %v430 = vsel %vm417, %v403, %v404
  %v431 = vsel %vm417, %v402, %v403
  %v432 = vsel %vm417, %v401, %v402
  %v433 = vsel %vm417, %v416, %v401
  %v434 = vsel %vm385, %v433, %v425
  %v435 = vsel %vm386, %v432, %v424
  %v436 = vsel %vm387, %v431, %v423
  %v437 = vsel %vm388, %v430, %v422
  %v438 = vsel %vm389, %v429, %v421
  %v439 = vsel %vm390, %v428, %v420
  %v440 = vsel %vm391, %v427, %v419
  %v441 = vsel %vm392, %v426, %v418
  %v442 = vsel %vm393, %v425, %v433
  %v443 = vsel %vm394, %v424, %v432
  %v444 = vsel %vm395, %v423, %v431
  %v445 = vsel %vm396, %v422, %v430
  %v446 = vsel %vm397, %v421, %v429
  %v447 = vsel %vm398, %v420, %v428
  %v448 = vsel %vm399, %v419, %v427
  %v449 = vsel %vm400, %v418, %v426
  %vm450 = vcmp.lt.s32.totalorder %v78, 32
  %v451 = vsel %vm450, %v369, %v434
  %v452 = vsel %vm450, %v370, %v435
  %v453 = vsel %vm450, %v371, %v436
  %v454 = vsel %vm450, %v372, %v437
  %v455 = vsel %vm450, %v373, %v438
  %v456 = vsel %vm450, %v374, %v439
  %v457 = vsel %vm450, %v375, %v440
  %v458 = vsel %vm450, %v376, %v441
  %v459 = vsel %vm450, %v377, %v442
  %v460 = vsel %vm450, %v378, %v443
  %v461 = vsel %vm450, %v379, %v444
  %v462 = vsel %vm450, %v380, %v445
  %v463 = vsel %vm450, %v381, %v446
  %v464 = vsel %vm450, %v382, %v447
  %v465 = vsel %vm450, %v383, %v448
  %v466 = vsel %vm450, %v384, %v449
  %vm467 = vcmp.ge.s32.totalorder %v61, 16
  %vm468 = vcmp.ge.s32.totalorder %v62, 16
  %vm469 = vcmp.ge.s32.totalorder %v63, 16
  %vm470 = vcmp.ge.s32.totalorder %v64, 16
  %vm471 = vcmp.ge.s32.totalorder %v65, 16
  %vm472 = vcmp.ge.s32.totalorder %v66, 16
  %vm473 = vcmp.ge.s32.totalorder %v67, 16
  %vm474 = vcmp.ge.s32.totalorder %v68, 16
  %vm475 = vcmp.ge.s32.totalorder %v69, 16
  %vm476 = vcmp.ge.s32.totalorder %v70, 16
  %vm477 = vcmp.ge.s32.totalorder %v71, 16
  %vm478 = vcmp.ge.s32.totalorder %v72, 16
  %vm479 = vcmp.ge.s32.totalorder %v73, 16
  %vm480 = vcmp.ge.s32.totalorder %v74, 16
  %vm481 = vcmp.ge.s32.totalorder %v75, 16
  %vm482 = vcmp.ge.s32.totalorder %v76, 16
  %v483 = vsel %vm467, %v218, %v198
  %v484 = vsel %vm468, %v220, %v200
  %v485 = vsel %vm469, %v183, %v203
  %v486 = vsel %vm470, %v185, %v205
  %v487 = vsel %vm471, %v188, %v208
  %v488 = vsel %vm472, %v190, %v210
  %v489 = vsel %vm473, %v193, %v213
  %v490 = vsel %vm474, %v195, %v215
  %v491 = vsel %vm475, %v198, %v218
  %v492 = vsel %vm476, %v200, %v220
  %v493 = vsel %vm477, %v203, %v183
  %v494 = vsel %vm478, %v205, %v185
  %v495 = vsel %vm479, %v208, %v188
  %v496 = vsel %vm480, %v210, %v190
  %v497 = vsel %vm481, %v213, %v193
  %v498 = vsel %vm482, %v215, %v195
  %vm499 = vcmp.lt.s32.totalorder %v78, 64
  %v500 = vsel %vm499, %v451, %v483
  %v501 = vsel %vm499, %v452, %v484
  %v502 = vsel %vm499, %v453, %v485
  %v503 = vsel %vm499, %v454, %v486
  %v504 = vsel %vm499, %v455, %v487
  %v505 = vsel %vm499, %v456, %v488
  %v506 = vsel %vm499, %v457, %v489
  %v507 = vsel %vm499, %v458, %v490
  %v508 = vsel %vm499, %v459, %v491
  %v509 = vsel %vm499, %v460, %v492
  %v510 = vsel %vm499, %v461, %v493
  %v511 = vsel %vm499, %v462, %v494
  %v512 = vsel %vm499, %v463, %v495
  %v513 = vsel %vm499, %v464, %v496
  %v514 = vsel %vm499, %v465, %v497
  %v515 = vsel %vm499, %v466, %v498
  %vm516 = vcmp.ge.s32.totalorder %v61, 5
  %vm517 = vcmp.ge.s32.totalorder %v62, 5
  %vm518 = vcmp.ge.s32.totalorder %v63, 5
  %vm519 = vcmp.ge.s32.totalorder %v64, 5
  %vm520 = vcmp.ge.s32.totalorder %v65, 5
  %vm521 = vcmp.ge.s32.totalorder %v66, 5
  %vm522 = vcmp.ge.s32.totalorder %v67, 5
  %vm523 = vcmp.ge.s32.totalorder %v68, 5
  %vm524 = vcmp.ge.s32.totalorder %v69, 5
  %vm525 = vcmp.ge.s32.totalorder %v70, 5
  %vm526 = vcmp.ge.s32.totalorder %v71, 5
  %vm527 = vcmp.ge.s32.totalorder %v72, 5
  %vm528 = vcmp.ge.s32.totalorder %v73, 5
  %vm529 = vcmp.ge.s32.totalorder %v74, 5
  %vm530 = vcmp.ge.s32.totalorder %v75, 5
  %vm531 = vcmp.ge.s32.totalorder %v76, 5
  %v532 = vrot.slane %v183, 3
  %v533 = vrot.slane %v185, 3
  %v534 = vrot.slane %v188, 3
  %v535 = vrot.slane %v190, 3
  %v536 = vrot.slane %v193, 3
  %v537 = vrot.slane %v195, 3
  %v538 = vrot.slane %v198, 3
  %v539 = vrot.slane %v200, 3
  %v540 = vrot.slane %v203, 3
  %v541 = vrot.slane %v205, 3
  %v542 = vrot.slane %v208, 3
  %v543 = vrot.slane %v210, 3
  %v544 = vrot.slane %v213, 3
  %v545 = vrot.slane %v215, 3
  %v546 = vrot.slane %v218, 3
  %v547 = vrot.slane %v220, 3
  %vm548 = vcmp.lt.s32.totalorder %v45, 5
  %v549 = vsel %vm548, %v546, %v547
  %v550 = vsel %vm548, %v545, %v546
  %v551 = vsel %vm548, %v544, %v545
  %v552 = vsel %vm548, %v543, %v544
  %v553 = vsel %vm548, %v542, %v543
  %v554 = vsel %vm548, %v541, %v542
  %v555 = vsel %vm548, %v540, %v541
  %v556 = vsel %vm548, %v539, %v540
  %v557 = vsel %vm548, %v538, %v539
  %v558 = vsel %vm548, %v537, %v538
  %v559 = vsel %vm548, %v536, %v537
  %v560 = vsel %vm548, %v535, %v536
  %v561 = vsel %vm548, %v534, %v535
  %v562 = vsel %vm548, %v533, %v534
  %v563 = vsel %vm548, %v532, %v533
  %v564 = vsel %vm548, %v547, %v532
  %v565 = vsel %vm516, %v564, %v556
  %v566 = vsel %vm517, %v563, %v555
  %v567 = vsel %vm518, %v562, %v554
  %v568 = vsel %vm519, %v561, %v553
  %v569 = vsel %vm520, %v560, %v552
  %v570 = vsel %vm521, %v559, %v551
  %v571 = vsel %vm522, %v558, %v550
  %v572 = vsel %vm523, %v557, %v549
  %v573 = vsel %vm524, %v556, %v564
  %v574 = vsel %vm525, %v555, %v563
  %v575 = vsel %vm526, %v554, %v562
  %v576 = vsel %vm527, %v553, %v561
  %v577 = vsel %vm528, %v552, %v560
  %v578 = vsel %vm529, %v551, %v559
  %v579 = vsel %vm530, %v550, %v558
  %v580 = vsel %vm531, %v549, %v557
  %vm581 = vcmp.lt.s32.totalorder %v78, 96
  %v582 = vsel %vm581, %v500, %v565
  %v583 = vsel %vm581, %v501, %v566
  %v584 = vsel %vm581, %v502, %v567
  %v585 = vsel %vm581, %v503, %v568
  %v586 = vsel %vm581, %v504, %v569
  %v587 = vsel %vm581, %v505, %v570
  %v588 = vsel %vm581, %v506, %v571
  %v589 = vsel %vm581, %v507, %v572
  %v590 = vsel %vm581, %v508, %v573
  %v591 = vsel %vm581, %v509, %v574
  %v592 = vsel %vm581, %v510, %v575
  %v593 = vsel %vm581, %v511, %v576
  %v594 = vsel %vm581, %v512, %v577
  %v595 = vsel %vm581, %v513, %v578
  %v596 = vsel %vm581, %v514, %v579
  %v597 = vsel %vm581, %v515, %v580
  %v598 = vadd.f32 %v582, %v232
  %v599 = vadd.f32 %v583, %v234
  %v600 = vadd.f32 %v584, %v237
  %v601 = vadd.f32 %v585, %v239
  %v602 = vadd.f32 %v586, %v242
  %v603 = vadd.f32 %v587, %v244
  %v604 = vadd.f32 %v588, %v247
  %v605 = vadd.f32 %v589, %v249
  %v606 = vadd.f32 %v590, %v252
  %v607 = vadd.f32 %v591, %v254
  %v608 = vadd.f32 %v592, %v257
  %v609 = vadd.f32 %v593, %v259
  %v610 = vadd.f32 %v594, %v262
  %v611 = vadd.f32 %v595, %v264
  %v612 = vadd.f32 %v596, %v267
  %v613 = vadd.f32 %v597, %v269
  %v615 = vperm.slane %v79, 0
  %v617 = vadd.f32 %v598, %v615
  %v618 = vadd.f32 %v599, %v615
  %v619 = vadd.f32 %v600, %v615
  %v620 = vadd.f32 %v601, %v615
  %v621 = vadd.f32 %v602, %v615
  %v622 = vadd.f32 %v603, %v615
  %v623 = vadd.f32 %v604, %v615
  %v624 = vadd.f32 %v605, %v615
  %v625 = vadd.f32 %v606, %v615
  %v626 = vadd.f32 %v607, %v615
  %v627 = vadd.f32 %v608, %v615
  %v628 = vadd.f32 %v609, %v615
  %v629 = vadd.f32 %v610, %v615
  %v630 = vadd.f32 %v611, %v615
  %v631 = vadd.f32 %v612, %v615
  %v632 = vadd.f32 %v613, %v615
  %v633 = vmax.f32 %v617, 0.0
  %v634 = vmax.f32 %v618, 0.0
  %v635 = vmax.f32 %v619, 0.0
  %v636 = vmax.f32 %v620, 0.0
  %v637 = vmax.f32 %v621, 0.0
  %v638 = vmax.f32 %v622, 0.0
  %v639 = vmax.f32 %v623, 0.0
  %v640 = vmax.f32 %v624, 0.0
  %v641 = vmax.f32 %v625, 0.0
  %v642 = vmax.f32 %v626, 0.0
  %v643 = vmax.f32 %v627, 0.0
  %v644 = vmax.f32 %v628, 0.0
  %v645 = vmax.f32 %v629, 0.0
  %v646 = vmax.f32 %v630, 0.0
  %v647 = vmax.f32 %v631, 0.0
  %v648 = vmax.f32 %v632, 0.0
  %v649 = vpack.c.bf16 %v634, %v633
  %v650 = vpack.c.bf16 %v636, %v635
  %v651 = vpack.c.bf16 %v638, %v637
  %v652 = vpack.c.bf16 %v640, %v639
  %v653 = vpack.c.bf16 %v642, %v641
  %v654 = vpack.c.bf16 %v644, %v643
  %v655 = vpack.c.bf16 %v646, %v645
  %v656 = vpack.c.bf16 %v648, %v647
  %v657 = vld [vmem:[%s4] sm:$0xf]
  %v658 = vld [vmem:[%s4 + $0x4] sm:$0xf]
  %v659 = vld [vmem:[%s4 + $0x8] sm:$0xf]
  %v660 = vld [vmem:[%s4 + $0xc] sm:$0xf]
  %v661 = vld [vmem:[%s4 + $0x10] sm:$0xf]
  %v662 = vld [vmem:[%s4 + $0x14] sm:$0xf]
  %v663 = vld [vmem:[%s4 + $0x18] sm:$0xf]
  %v664 = vld [vmem:[%s4 + $0x1c] sm:$0xf]
  %v665 = vld [vmem:[%s4 + $0x20] sm:$0xf]
  %v666 = vld [vmem:[%s4 + $0x24] sm:$0xf]
  %v667 = vld [vmem:[%s4 + $0x28] sm:$0xf]
  %v668 = vld [vmem:[%s4 + $0x2c] sm:$0xf]
  %v669 = vld [vmem:[%s4 + $0x30] sm:$0xf]
  %v670 = vld [vmem:[%s4 + $0x34] sm:$0xf]
  %v671 = vld [vmem:[%s4 + $0x38] sm:$0xf]
  %v672 = vld [vmem:[%s4 + $0x3c] sm:$0xf]
  %v674 = vperm.slane %v80, 0
  %v692 = vunpack.c.l.b16 %v657
  %v693 = vunpack.c.l.b16 %v658
  %v694 = vunpack.c.l.b16 %v659
  %v695 = vunpack.c.l.b16 %v660
  %v696 = vunpack.c.l.b16 %v661
  %v697 = vunpack.c.l.b16 %v662
  %v698 = vunpack.c.l.b16 %v663
  %v699 = vunpack.c.l.b16 %v664
  %v700 = vunpack.c.l.b16 %v665
  %v701 = vunpack.c.l.b16 %v666
  %v702 = vunpack.c.l.b16 %v667
  %v703 = vunpack.c.l.b16 %v668
  %v704 = vunpack.c.l.b16 %v669
  %v705 = vunpack.c.l.b16 %v670
  %v706 = vunpack.c.l.b16 %v671
  %v707 = vunpack.c.l.b16 %v672
  %v708 = vpack.c.b16 %v693, %v692
  %v709 = vpack.c.b16 %v695, %v694
  %v710 = vpack.c.b16 %v697, %v696
  %v711 = vpack.c.b16 %v699, %v698
  %v712 = vpack.c.b16 %v701, %v700
  %v713 = vpack.c.b16 %v703, %v702
  %v714 = vpack.c.b16 %v705, %v704
  %v715 = vpack.c.b16 %v707, %v706
  %724 = vmatpush.bf16.msra.mxu0 %v715
  %725 = vmatpush.bf16.msra.mxu0 %v714
  %726 = vmatpush.bf16.msra.mxu0 %v713
  %727 = vmatpush.bf16.msra.mxu0 %v712
  %728 = vmatpush.bf16.msra.mxu0 %v711
  %729 = vmatpush.bf16.msra.mxu0 %v710
  %730 = vmatpush.bf16.msra.mxu0 %v709
  %731 = vmatpush.bf16.msra.mxu0 %v708
  %732 = vmatmul.bf16.gmra.mxu0 %v649
  %v733 = vpop.f32.mrf.mxu0
  %v734 = vadd.f32 %v674, %v733
  %v735 = vpop.f32.mrf.mxu0
  %v736 = vadd.f32 %v674, %v735
  %737 = vmatmul.bf16.gmra.mxu0 %v650
  %v738 = vpop.f32.mrf.mxu0
  %v739 = vadd.f32 %v674, %v738
  %v740 = vpop.f32.mrf.mxu0
  %v741 = vadd.f32 %v674, %v740
  %742 = vmatmul.bf16.gmra.mxu0 %v651
  %v743 = vpop.f32.mrf.mxu0
  %v744 = vadd.f32 %v674, %v743
  %v745 = vpop.f32.mrf.mxu0
  %v746 = vadd.f32 %v674, %v745
  %747 = vmatmul.bf16.gmra.mxu0 %v652
  %v748 = vpop.f32.mrf.mxu0
  %v749 = vadd.f32 %v674, %v748
  %v750 = vpop.f32.mrf.mxu0
  %v751 = vadd.f32 %v674, %v750
  %752 = vmatmul.bf16.gmra.mxu0 %v653
  %v753 = vpop.f32.mrf.mxu0
  %v754 = vadd.f32 %v674, %v753
  %v755 = vpop.f32.mrf.mxu0
  %v756 = vadd.f32 %v674, %v755
  %757 = vmatmul.bf16.gmra.mxu0 %v654
  %v758 = vpop.f32.mrf.mxu0
  %v759 = vadd.f32 %v674, %v758
  %v760 = vpop.f32.mrf.mxu0
  %v761 = vadd.f32 %v674, %v760
  %762 = vmatmul.bf16.gmra.mxu0 %v655
  %v763 = vpop.f32.mrf.mxu0
  %v764 = vadd.f32 %v674, %v763
  %v765 = vpop.f32.mrf.mxu0
  %v766 = vadd.f32 %v674, %v765
  %767 = vmatmul.bf16.gmra.mxu0 %v656
  %v768 = vpop.f32.mrf.mxu0
  %v769 = vadd.f32 %v674, %v768
  %v770 = vpop.f32.mrf.mxu0
  %v771 = vadd.f32 %v674, %v770
  %772 = vdwg.mxu0
  %v773 = vmax.f32 %v734, 0.0
  %v774 = vmax.f32 %v736, 0.0
  %v775 = vmax.f32 %v739, 0.0
  %v776 = vmax.f32 %v741, 0.0
  %v777 = vmax.f32 %v744, 0.0
  %v778 = vmax.f32 %v746, 0.0
  %v779 = vmax.f32 %v749, 0.0
  %v780 = vmax.f32 %v751, 0.0
  %v781 = vmax.f32 %v754, 0.0
  %v782 = vmax.f32 %v756, 0.0
  %v783 = vmax.f32 %v759, 0.0
  %v784 = vmax.f32 %v761, 0.0
  %v785 = vmax.f32 %v764, 0.0
  %v786 = vmax.f32 %v766, 0.0
  %v787 = vmax.f32 %v769, 0.0
  %v788 = vmax.f32 %v771, 0.0
  %v789 = vpack.c.bf16 %v774, %v773
  %v790 = vpack.c.bf16 %v776, %v775
  %v791 = vpack.c.bf16 %v778, %v777
  %v792 = vpack.c.bf16 %v780, %v779
  %v793 = vpack.c.bf16 %v782, %v781
  %v794 = vpack.c.bf16 %v784, %v783
  %v795 = vpack.c.bf16 %v786, %v785
  %v796 = vpack.c.bf16 %v788, %v787
  %v797 = vld [vmem:[%s6] sm:$0xf]
  %v798 = vld [vmem:[%s6 + $0x4] sm:$0xf]
  %v799 = vld [vmem:[%s6 + $0x8] sm:$0xf]
  %v800 = vld [vmem:[%s6 + $0xc] sm:$0xf]
  %v801 = vld [vmem:[%s6 + $0x10] sm:$0xf]
  %v802 = vld [vmem:[%s6 + $0x14] sm:$0xf]
  %v803 = vld [vmem:[%s6 + $0x18] sm:$0xf]
  %v804 = vld [vmem:[%s6 + $0x1c] sm:$0xf]
  %v805 = vld [vmem:[%s6 + $0x20] sm:$0xf]
  %v806 = vld [vmem:[%s6 + $0x24] sm:$0xf]
  %v807 = vld [vmem:[%s6 + $0x28] sm:$0xf]
  %v808 = vld [vmem:[%s6 + $0x2c] sm:$0xf]
  %v809 = vld [vmem:[%s6 + $0x30] sm:$0xf]
  %v810 = vld [vmem:[%s6 + $0x34] sm:$0xf]
  %v811 = vld [vmem:[%s6 + $0x38] sm:$0xf]
  %v812 = vld [vmem:[%s6 + $0x3c] sm:$0xf]
  %v814 = vperm.slane %v81, 0
  %v832 = vunpack.c.l.b16 %v797
  %v833 = vunpack.c.l.b16 %v798
  %v834 = vunpack.c.l.b16 %v799
  %v835 = vunpack.c.l.b16 %v800
  %v836 = vunpack.c.l.b16 %v801
  %v837 = vunpack.c.l.b16 %v802
  %v838 = vunpack.c.l.b16 %v803
  %v839 = vunpack.c.l.b16 %v804
  %v840 = vunpack.c.l.b16 %v805
  %v841 = vunpack.c.l.b16 %v806
  %v842 = vunpack.c.l.b16 %v807
  %v843 = vunpack.c.l.b16 %v808
  %v844 = vunpack.c.l.b16 %v809
  %v845 = vunpack.c.l.b16 %v810
  %v846 = vunpack.c.l.b16 %v811
  %v847 = vunpack.c.l.b16 %v812
  %v848 = vpack.c.b16 %v833, %v832
  %v849 = vpack.c.b16 %v835, %v834
  %v850 = vpack.c.b16 %v837, %v836
  %v851 = vpack.c.b16 %v839, %v838
  %v852 = vpack.c.b16 %v841, %v840
  %v853 = vpack.c.b16 %v843, %v842
  %v854 = vpack.c.b16 %v845, %v844
  %v855 = vpack.c.b16 %v847, %v846
  %864 = vmatpush.bf16.msra.mxu0 %v855
  %865 = vmatpush.bf16.msra.mxu0 %v854
  %866 = vmatpush.bf16.msra.mxu0 %v853
  %867 = vmatpush.bf16.msra.mxu0 %v852
  %868 = vmatpush.bf16.msra.mxu0 %v851
  %869 = vmatpush.bf16.msra.mxu0 %v850
  %870 = vmatpush.bf16.msra.mxu0 %v849
  %871 = vmatpush.bf16.msra.mxu0 %v848
  %872 = vmatmul.bf16.gmra.mxu0 %v789
  %v873 = vpop.f32.mrf.mxu0
  %v874 = vadd.f32 %v814, %v873
  %v875 = vpop.f32.mrf.mxu0
  %v876 = vadd.f32 %v814, %v875
  %877 = vmatmul.bf16.gmra.mxu0 %v790
  %v878 = vpop.f32.mrf.mxu0
  %v879 = vadd.f32 %v814, %v878
  %v880 = vpop.f32.mrf.mxu0
  %v881 = vadd.f32 %v814, %v880
  %882 = vmatmul.bf16.gmra.mxu0 %v791
  %v883 = vpop.f32.mrf.mxu0
  %v884 = vadd.f32 %v814, %v883
  %v885 = vpop.f32.mrf.mxu0
  %v886 = vadd.f32 %v814, %v885
  %887 = vmatmul.bf16.gmra.mxu0 %v792
  %v888 = vpop.f32.mrf.mxu0
  %v889 = vadd.f32 %v814, %v888
  %v890 = vpop.f32.mrf.mxu0
  %v891 = vadd.f32 %v814, %v890
  %892 = vmatmul.bf16.gmra.mxu0 %v793
  %v893 = vpop.f32.mrf.mxu0
  %v894 = vadd.f32 %v814, %v893
  %v895 = vpop.f32.mrf.mxu0
  %v896 = vadd.f32 %v814, %v895
  %897 = vmatmul.bf16.gmra.mxu0 %v794
  %v898 = vpop.f32.mrf.mxu0
  %v899 = vadd.f32 %v814, %v898
  %v900 = vpop.f32.mrf.mxu0
  %v901 = vadd.f32 %v814, %v900
  %902 = vmatmul.bf16.gmra.mxu0 %v795
  %v903 = vpop.f32.mrf.mxu0
  %v904 = vadd.f32 %v814, %v903
  %v905 = vpop.f32.mrf.mxu0
  %v906 = vadd.f32 %v814, %v905
  %907 = vmatmul.bf16.gmra.mxu0 %v796
  %v908 = vpop.f32.mrf.mxu0
  %v909 = vadd.f32 %v814, %v908
  %v910 = vpop.f32.mrf.mxu0
  %v911 = vadd.f32 %v814, %v910
  %912 = vdwg.mxu0
  %v913 = vmax.f32 %v874, 0.0
  %v914 = vmax.f32 %v876, 0.0
  %v915 = vmax.f32 %v879, 0.0
  %v916 = vmax.f32 %v881, 0.0
  %v917 = vmax.f32 %v884, 0.0
  %v918 = vmax.f32 %v886, 0.0
  %v919 = vmax.f32 %v889, 0.0
  %v920 = vmax.f32 %v891, 0.0
  %v921 = vmax.f32 %v894, 0.0
  %v922 = vmax.f32 %v896, 0.0
  %v923 = vmax.f32 %v899, 0.0
  %v924 = vmax.f32 %v901, 0.0
  %v925 = vmax.f32 %v904, 0.0
  %v926 = vmax.f32 %v906, 0.0
  %v927 = vmax.f32 %v909, 0.0
  %v928 = vmax.f32 %v911, 0.0
  %v929 = vpack.c.bf16 %v914, %v913
  %v930 = vpack.c.bf16 %v916, %v915
  %v931 = vpack.c.bf16 %v918, %v917
  %v932 = vpack.c.bf16 %v920, %v919
  %v933 = vpack.c.bf16 %v922, %v921
  %v934 = vpack.c.bf16 %v924, %v923
  %v935 = vpack.c.bf16 %v926, %v925
  %v936 = vpack.c.bf16 %v928, %v927
  %v937 = vld [vmem:[%s8] sm:$0xf]
  %v938 = vld [vmem:[%s8 + $0x4] sm:$0xf]
  %v939 = vld [vmem:[%s8 + $0x8] sm:$0xf]
  %v940 = vld [vmem:[%s8 + $0xc] sm:$0xf]
  %v941 = vld [vmem:[%s8 + $0x10] sm:$0xf]
  %v942 = vld [vmem:[%s8 + $0x14] sm:$0xf]
  %v943 = vld [vmem:[%s8 + $0x18] sm:$0xf]
  %v944 = vld [vmem:[%s8 + $0x1c] sm:$0xf]
  %v945 = vld [vmem:[%s8 + $0x20] sm:$0xf]
  %v946 = vld [vmem:[%s8 + $0x24] sm:$0xf]
  %v947 = vld [vmem:[%s8 + $0x28] sm:$0xf]
  %v948 = vld [vmem:[%s8 + $0x2c] sm:$0xf]
  %v949 = vld [vmem:[%s8 + $0x30] sm:$0xf]
  %v950 = vld [vmem:[%s8 + $0x34] sm:$0xf]
  %v951 = vld [vmem:[%s8 + $0x38] sm:$0xf]
  %v952 = vld [vmem:[%s8 + $0x3c] sm:$0xf]
  %v954 = vperm.slane %v82, 0
  %v972 = vunpack.c.l.b16 %v937
  %v973 = vunpack.c.l.b16 %v938
  %v974 = vunpack.c.l.b16 %v939
  %v975 = vunpack.c.l.b16 %v940
  %v976 = vunpack.c.l.b16 %v941
  %v977 = vunpack.c.l.b16 %v942
  %v978 = vunpack.c.l.b16 %v943
  %v979 = vunpack.c.l.b16 %v944
  %v980 = vunpack.c.l.b16 %v945
  %v981 = vunpack.c.l.b16 %v946
  %v982 = vunpack.c.l.b16 %v947
  %v983 = vunpack.c.l.b16 %v948
  %v984 = vunpack.c.l.b16 %v949
  %v985 = vunpack.c.l.b16 %v950
  %v986 = vunpack.c.l.b16 %v951
  %v987 = vunpack.c.l.b16 %v952
  %v988 = vpack.c.b16 %v973, %v972
  %v989 = vpack.c.b16 %v975, %v974
  %v990 = vpack.c.b16 %v977, %v976
  %v991 = vpack.c.b16 %v979, %v978
  %v992 = vpack.c.b16 %v981, %v980
  %v993 = vpack.c.b16 %v983, %v982
  %v994 = vpack.c.b16 %v985, %v984
  %v995 = vpack.c.b16 %v987, %v986
  %1004 = vmatpush.bf16.msra.mxu0 %v995
  %1005 = vmatpush.bf16.msra.mxu0 %v994
  %1006 = vmatpush.bf16.msra.mxu0 %v993
  %1007 = vmatpush.bf16.msra.mxu0 %v992
  %1008 = vmatpush.bf16.msra.mxu0 %v991
  %1009 = vmatpush.bf16.msra.mxu0 %v990
  %1010 = vmatpush.bf16.msra.mxu0 %v989
  %1011 = vmatpush.bf16.msra.mxu0 %v988
  %1012 = vmatmul.bf16.gmra.mxu0 %v929
  %v1013 = vpop.f32.mrf.mxu0
  %v1014 = vadd.f32 %v954, %v1013
  %v1015 = vpop.f32.mrf.mxu0
  %v1016 = vadd.f32 %v954, %v1015
  %1017 = vmatmul.bf16.gmra.mxu0 %v930
  %v1018 = vpop.f32.mrf.mxu0
  %v1019 = vadd.f32 %v954, %v1018
  %v1020 = vpop.f32.mrf.mxu0
  %v1021 = vadd.f32 %v954, %v1020
  %1022 = vmatmul.bf16.gmra.mxu0 %v931
  %v1023 = vpop.f32.mrf.mxu0
  %v1024 = vadd.f32 %v954, %v1023
  %v1025 = vpop.f32.mrf.mxu0
  %v1026 = vadd.f32 %v954, %v1025
  %1027 = vmatmul.bf16.gmra.mxu0 %v932
  %v1028 = vpop.f32.mrf.mxu0
  %v1029 = vadd.f32 %v954, %v1028
  %v1030 = vpop.f32.mrf.mxu0
  %v1031 = vadd.f32 %v954, %v1030
  %1032 = vmatmul.bf16.gmra.mxu0 %v933
  %v1033 = vpop.f32.mrf.mxu0
  %v1034 = vadd.f32 %v954, %v1033
  %v1035 = vpop.f32.mrf.mxu0
  %v1036 = vadd.f32 %v954, %v1035
  %1037 = vmatmul.bf16.gmra.mxu0 %v934
  %v1038 = vpop.f32.mrf.mxu0
  %v1039 = vadd.f32 %v954, %v1038
  %v1040 = vpop.f32.mrf.mxu0
  %v1041 = vadd.f32 %v954, %v1040
  %1042 = vmatmul.bf16.gmra.mxu0 %v935
  %v1043 = vpop.f32.mrf.mxu0
  %v1044 = vadd.f32 %v954, %v1043
  %v1045 = vpop.f32.mrf.mxu0
  %v1046 = vadd.f32 %v954, %v1045
  %1047 = vmatmul.bf16.gmra.mxu0 %v936
  %v1048 = vpop.f32.mrf.mxu0
  %v1049 = vadd.f32 %v954, %v1048
  %v1050 = vpop.f32.mrf.mxu0
  %v1051 = vadd.f32 %v954, %v1050
  %1052 = vdwg.mxu0
  %v1053 = vpack.c.bf16 %v1016, %v1014
  %v1054 = vpack.c.bf16 %v1021, %v1019
  %v1055 = vpack.c.bf16 %v1026, %v1024
  %v1056 = vpack.c.bf16 %v1031, %v1029
  %v1057 = vpack.c.bf16 %v1036, %v1034
  %v1058 = vpack.c.bf16 %v1041, %v1039
  %v1059 = vpack.c.bf16 %v1046, %v1044
  %v1060 = vpack.c.bf16 %v1051, %v1049
  %v1061 = vld [vmem:[%s10] sm:$0xf]
  %v1062 = vld [vmem:[%s10 + $0x4] sm:$0xf]
  %v1063 = vld [vmem:[%s10 + $0x8] sm:$0xf]
  %v1064 = vld [vmem:[%s10 + $0xc] sm:$0xf]
  %v1065 = vld [vmem:[%s10 + $0x10] sm:$0xf]
  %v1066 = vld [vmem:[%s10 + $0x14] sm:$0xf]
  %v1067 = vld [vmem:[%s10 + $0x18] sm:$0xf]
  %v1068 = vld [vmem:[%s10 + $0x1c] sm:$0xf]
  %v1069 = vld [vmem:[%s10 + $0x20] sm:$0xf]
  %v1070 = vld [vmem:[%s10 + $0x24] sm:$0xf]
  %v1071 = vld [vmem:[%s10 + $0x28] sm:$0xf]
  %v1072 = vld [vmem:[%s10 + $0x2c] sm:$0xf]
  %v1073 = vld [vmem:[%s10 + $0x30] sm:$0xf]
  %v1074 = vld [vmem:[%s10 + $0x34] sm:$0xf]
  %v1075 = vld [vmem:[%s10 + $0x38] sm:$0xf]
  %v1076 = vld [vmem:[%s10 + $0x3c] sm:$0xf]
  %v1093 = vunpack.c.l.b16 %v1061
  %v1094 = vunpack.c.l.b16 %v1062
  %v1095 = vunpack.c.l.b16 %v1063
  %v1096 = vunpack.c.l.b16 %v1064
  %v1097 = vunpack.c.l.b16 %v1065
  %v1098 = vunpack.c.l.b16 %v1066
  %v1099 = vunpack.c.l.b16 %v1067
  %v1100 = vunpack.c.l.b16 %v1068
  %v1101 = vunpack.c.l.b16 %v1069
  %v1102 = vunpack.c.l.b16 %v1070
  %v1103 = vunpack.c.l.b16 %v1071
  %v1104 = vunpack.c.l.b16 %v1072
  %v1105 = vunpack.c.l.b16 %v1073
  %v1106 = vunpack.c.l.b16 %v1074
  %v1107 = vunpack.c.l.b16 %v1075
  %v1108 = vunpack.c.l.b16 %v1076
  %v1109 = vpack.c.b16 %v1094, %v1093
  %v1110 = vpack.c.b16 %v1096, %v1095
  %v1111 = vpack.c.b16 %v1098, %v1097
  %v1112 = vpack.c.b16 %v1100, %v1099
  %v1113 = vpack.c.b16 %v1102, %v1101
  %v1114 = vpack.c.b16 %v1104, %v1103
  %v1115 = vpack.c.b16 %v1106, %v1105
  %v1116 = vpack.c.b16 %v1108, %v1107
  %1125 = vmatpush.bf16.msra.mxu0 %v1116
  %1126 = vmatpush.bf16.msra.mxu0 %v1115
  %1127 = vmatpush.bf16.msra.mxu0 %v1114
  %1128 = vmatpush.bf16.msra.mxu0 %v1113
  %1129 = vmatpush.bf16.msra.mxu0 %v1112
  %1130 = vmatpush.bf16.msra.mxu0 %v1111
  %1131 = vmatpush.bf16.msra.mxu0 %v1110
  %1132 = vmatpush.bf16.msra.mxu0 %v1109
  %1133 = vmatmul.bf16.gmra.mxu0 %v1053
  %v1134 = vpop.f32.mrf.mxu0
  %v1135 = vadd.f32 0.0, %v1134
  %v1136 = vpop.f32.mrf.mxu0
  %v1137 = vadd.f32 0.0, %v1136
  %1138 = vmatmul.bf16.gmra.mxu0 %v1054
  %v1139 = vpop.f32.mrf.mxu0
  %v1140 = vadd.f32 0.0, %v1139
  %v1141 = vpop.f32.mrf.mxu0
  %v1142 = vadd.f32 0.0, %v1141
  %1143 = vmatmul.bf16.gmra.mxu0 %v1055
  %v1144 = vpop.f32.mrf.mxu0
  %v1145 = vadd.f32 0.0, %v1144
  %v1146 = vpop.f32.mrf.mxu0
  %v1147 = vadd.f32 0.0, %v1146
  %1148 = vmatmul.bf16.gmra.mxu0 %v1056
  %v1149 = vpop.f32.mrf.mxu0
  %v1150 = vadd.f32 0.0, %v1149
  %v1151 = vpop.f32.mrf.mxu0
  %v1152 = vadd.f32 0.0, %v1151
  %1153 = vmatmul.bf16.gmra.mxu0 %v1057
  %v1154 = vpop.f32.mrf.mxu0
  %v1155 = vadd.f32 0.0, %v1154
  %v1156 = vpop.f32.mrf.mxu0
  %v1157 = vadd.f32 0.0, %v1156
  %1158 = vmatmul.bf16.gmra.mxu0 %v1058
  %v1159 = vpop.f32.mrf.mxu0
  %v1160 = vadd.f32 0.0, %v1159
  %v1161 = vpop.f32.mrf.mxu0
  %v1162 = vadd.f32 0.0, %v1161
  %1163 = vmatmul.bf16.gmra.mxu0 %v1059
  %v1164 = vpop.f32.mrf.mxu0
  %v1165 = vadd.f32 0.0, %v1164
  %v1166 = vpop.f32.mrf.mxu0
  %v1167 = vadd.f32 0.0, %v1166
  %1168 = vmatmul.bf16.gmra.mxu0 %v1060
  %v1169 = vpop.f32.mrf.mxu0
  %v1170 = vadd.f32 0.0, %v1169
  %v1171 = vpop.f32.mrf.mxu0
  %v1172 = vadd.f32 0.0, %v1171
  %1173 = vdwg.mxu0
  %v1174 = vadd.f32 %v281, %v1135
  %v1175 = vadd.f32 %v283, %v1137
  %v1176 = vadd.f32 %v286, %v1140
  %v1177 = vadd.f32 %v288, %v1142
  %v1178 = vadd.f32 %v291, %v1145
  %v1179 = vadd.f32 %v293, %v1147
  %v1180 = vadd.f32 %v296, %v1150
  %v1181 = vadd.f32 %v298, %v1152
  %v1182 = vadd.f32 %v301, %v1155
  %v1183 = vadd.f32 %v303, %v1157
  %v1184 = vadd.f32 %v306, %v1160
  %v1185 = vadd.f32 %v308, %v1162
  %v1186 = vadd.f32 %v311, %v1165
  %v1187 = vadd.f32 %v313, %v1167
  %v1188 = vadd.f32 %v316, %v1170
  %v1189 = vadd.f32 %v318, %v1172
  %v1190 = vxor.u32 %v1174, 2147483648
  %v1191 = vxor.u32 %v1175, 2147483648
  %v1192 = vxor.u32 %v1176, 2147483648
  %v1193 = vxor.u32 %v1177, 2147483648
  %v1194 = vxor.u32 %v1178, 2147483648
  %v1195 = vxor.u32 %v1179, 2147483648
  %v1196 = vxor.u32 %v1180, 2147483648
  %v1197 = vxor.u32 %v1181, 2147483648
  %v1198 = vxor.u32 %v1182, 2147483648
  %v1199 = vxor.u32 %v1183, 2147483648
  %v1200 = vxor.u32 %v1184, 2147483648
  %v1201 = vxor.u32 %v1185, 2147483648
  %v1202 = vxor.u32 %v1186, 2147483648
  %v1203 = vxor.u32 %v1187, 2147483648
  %v1204 = vxor.u32 %v1188, 2147483648
  %v1205 = vxor.u32 %v1189, 2147483648
  %v1206 = vmul.f32 %v1190, 1.442695
  %v1207 = vpow.pop %v1206
  %v1208 = vmul.f32 %v1191, 1.442695
  %v1209 = vpow.pop %v1208
  %v1210 = vmul.f32 %v1192, 1.442695
  %v1211 = vpow.pop %v1210
  %v1212 = vmul.f32 %v1193, 1.442695
  %v1213 = vpow.pop %v1212
  %v1214 = vmul.f32 %v1194, 1.442695
  %v1215 = vpow.pop %v1214
  %v1216 = vmul.f32 %v1195, 1.442695
  %v1217 = vpow.pop %v1216
  %v1218 = vmul.f32 %v1196, 1.442695
  %v1219 = vpow.pop %v1218
  %v1220 = vmul.f32 %v1197, 1.442695
  %v1221 = vpow.pop %v1220
  %v1222 = vmul.f32 %v1198, 1.442695
  %v1223 = vpow.pop %v1222
  %v1224 = vmul.f32 %v1199, 1.442695
  %v1225 = vpow.pop %v1224
  %v1226 = vmul.f32 %v1200, 1.442695
  %v1227 = vpow.pop %v1226
  %v1228 = vmul.f32 %v1201, 1.442695
  %v1229 = vpow.pop %v1228
  %v1230 = vmul.f32 %v1202, 1.442695
  %v1231 = vpow.pop %v1230
  %v1232 = vmul.f32 %v1203, 1.442695
  %v1233 = vpow.pop %v1232
  %v1234 = vmul.f32 %v1204, 1.442695
  %v1235 = vpow.pop %v1234
  %v1236 = vmul.f32 %v1205, 1.442695
  %v1237 = vpow.pop %v1236
  %v1238 = vadd.f32 %v1207, 1.0
  %v1239 = vadd.f32 %v1209, 1.0
  %v1240 = vadd.f32 %v1211, 1.0
  %v1241 = vadd.f32 %v1213, 1.0
  %v1242 = vadd.f32 %v1215, 1.0
  %v1243 = vadd.f32 %v1217, 1.0
  %v1244 = vadd.f32 %v1219, 1.0
  %v1245 = vadd.f32 %v1221, 1.0
  %v1246 = vadd.f32 %v1223, 1.0
  %v1247 = vadd.f32 %v1225, 1.0
  %v1248 = vadd.f32 %v1227, 1.0
  %v1249 = vadd.f32 %v1229, 1.0
  %v1250 = vadd.f32 %v1231, 1.0
  %v1251 = vadd.f32 %v1233, 1.0
  %v1252 = vadd.f32 %v1235, 1.0
  %v1253 = vadd.f32 %v1237, 1.0
  %v1254 = vrcp.pop %v1238
  %v1255 = vmul.f32 %v1238, %v1254
  %v1256 = vsub.f32 1.0, %v1255
  %v1257 = vmul.f32 %v1254, %v1256
  %v1258 = vadd.f32 %v1254, %v1257
  %vm1259 = vweird.f32 %v1238
  %vm1260 = vweird.f32 %v1254
  %vm1261 = vmor %vm1259, %vm1260
  %v1262 = vsel %vm1261, %v1254, %v1258
  %v1263 = vand.u32 2147483647, %v1238
  %vm1264 = vcmp.eq.f32.partialorder %v1263, 8.507059e+37
  %v1265 = vand.u32 %v1238, 2147483648
  %v1266 = vor.u32 1.1754944e-38, %v1265
  %v1267 = vsel %vm1264, %v1266, %v1262
  %v1268 = vmul.f32 1.0, %v1267
  %v1269 = vrcp.pop %v1239
  %v1270 = vmul.f32 %v1239, %v1269
  %v1271 = vsub.f32 1.0, %v1270
  %v1272 = vmul.f32 %v1269, %v1271
  %v1273 = vadd.f32 %v1269, %v1272
  %vm1274 = vweird.f32 %v1239
  %vm1275 = vweird.f32 %v1269
  %vm1276 = vmor %vm1274, %vm1275
  %v1277 = vsel %vm1276, %v1269, %v1273
  %v1278 = vand.u32 2147483647, %v1239
  %vm1279 = vcmp.eq.f32.partialorder %v1278, 8.507059e+37
  %v1280 = vand.u32 %v1239, 2147483648
  %v1281 = vor.u32 1.1754944e-38, %v1280
  %v1282 = vsel %vm1279, %v1281, %v1277
  %v1283 = vmul.f32 1.0, %v1282
  %v1284 = vrcp.pop %v1240
  %v1285 = vmul.f32 %v1240, %v1284
  %v1286 = vsub.f32 1.0, %v1285
  %v1287 = vmul.f32 %v1284, %v1286
  %v1288 = vadd.f32 %v1284, %v1287
  %vm1289 = vweird.f32 %v1240
  %vm1290 = vweird.f32 %v1284
  %vm1291 = vmor %vm1289, %vm1290
  %v1292 = vsel %vm1291, %v1284, %v1288
  %v1293 = vand.u32 2147483647, %v1240
  %vm1294 = vcmp.eq.f32.partialorder %v1293, 8.507059e+37
  %v1295 = vand.u32 %v1240, 2147483648
  %v1296 = vor.u32 1.1754944e-38, %v1295
  %v1297 = vsel %vm1294, %v1296, %v1292
  %v1298 = vmul.f32 1.0, %v1297
  %v1299 = vrcp.pop %v1241
  %v1300 = vmul.f32 %v1241, %v1299
  %v1301 = vsub.f32 1.0, %v1300
  %v1302 = vmul.f32 %v1299, %v1301
  %v1303 = vadd.f32 %v1299, %v1302
  %vm1304 = vweird.f32 %v1241
  %vm1305 = vweird.f32 %v1299
  %vm1306 = vmor %vm1304, %vm1305
  %v1307 = vsel %vm1306, %v1299, %v1303
  %v1308 = vand.u32 2147483647, %v1241
  %vm1309 = vcmp.eq.f32.partialorder %v1308, 8.507059e+37
  %v1310 = vand.u32 %v1241, 2147483648
  %v1311 = vor.u32 1.1754944e-38, %v1310
  %v1312 = vsel %vm1309, %v1311, %v1307
  %v1313 = vmul.f32 1.0, %v1312
  %v1314 = vrcp.pop %v1242
  %v1315 = vmul.f32 %v1242, %v1314
  %v1316 = vsub.f32 1.0, %v1315
  %v1317 = vmul.f32 %v1314, %v1316
  %v1318 = vadd.f32 %v1314, %v1317
  %vm1319 = vweird.f32 %v1242
  %vm1320 = vweird.f32 %v1314
  %vm1321 = vmor %vm1319, %vm1320
  %v1322 = vsel %vm1321, %v1314, %v1318
  %v1323 = vand.u32 2147483647, %v1242
  %vm1324 = vcmp.eq.f32.partialorder %v1323, 8.507059e+37
  %v1325 = vand.u32 %v1242, 2147483648
  %v1326 = vor.u32 1.1754944e-38, %v1325
  %v1327 = vsel %vm1324, %v1326, %v1322
  %v1328 = vmul.f32 1.0, %v1327
  %v1329 = vrcp.pop %v1243
  %v1330 = vmul.f32 %v1243, %v1329
  %v1331 = vsub.f32 1.0, %v1330
  %v1332 = vmul.f32 %v1329, %v1331
  %v1333 = vadd.f32 %v1329, %v1332
  %vm1334 = vweird.f32 %v1243
  %vm1335 = vweird.f32 %v1329
  %vm1336 = vmor %vm1334, %vm1335
  %v1337 = vsel %vm1336, %v1329, %v1333
  %v1338 = vand.u32 2147483647, %v1243
  %vm1339 = vcmp.eq.f32.partialorder %v1338, 8.507059e+37
  %v1340 = vand.u32 %v1243, 2147483648
  %v1341 = vor.u32 1.1754944e-38, %v1340
  %v1342 = vsel %vm1339, %v1341, %v1337
  %v1343 = vmul.f32 1.0, %v1342
  %v1344 = vrcp.pop %v1244
  %v1345 = vmul.f32 %v1244, %v1344
  %v1346 = vsub.f32 1.0, %v1345
  %v1347 = vmul.f32 %v1344, %v1346
  %v1348 = vadd.f32 %v1344, %v1347
  %vm1349 = vweird.f32 %v1244
  %vm1350 = vweird.f32 %v1344
  %vm1351 = vmor %vm1349, %vm1350
  %v1352 = vsel %vm1351, %v1344, %v1348
  %v1353 = vand.u32 2147483647, %v1244
  %vm1354 = vcmp.eq.f32.partialorder %v1353, 8.507059e+37
  %v1355 = vand.u32 %v1244, 2147483648
  %v1356 = vor.u32 1.1754944e-38, %v1355
  %v1357 = vsel %vm1354, %v1356, %v1352
  %v1358 = vmul.f32 1.0, %v1357
  %v1359 = vrcp.pop %v1245
  %v1360 = vmul.f32 %v1245, %v1359
  %v1361 = vsub.f32 1.0, %v1360
  %v1362 = vmul.f32 %v1359, %v1361
  %v1363 = vadd.f32 %v1359, %v1362
  %vm1364 = vweird.f32 %v1245
  %vm1365 = vweird.f32 %v1359
  %vm1366 = vmor %vm1364, %vm1365
  %v1367 = vsel %vm1366, %v1359, %v1363
  %v1368 = vand.u32 2147483647, %v1245
  %vm1369 = vcmp.eq.f32.partialorder %v1368, 8.507059e+37
  %v1370 = vand.u32 %v1245, 2147483648
  %v1371 = vor.u32 1.1754944e-38, %v1370
  %v1372 = vsel %vm1369, %v1371, %v1367
  %v1373 = vmul.f32 1.0, %v1372
  %v1374 = vrcp.pop %v1246
  %v1375 = vmul.f32 %v1246, %v1374
  %v1376 = vsub.f32 1.0, %v1375
  %v1377 = vmul.f32 %v1374, %v1376
  %v1378 = vadd.f32 %v1374, %v1377
  %vm1379 = vweird.f32 %v1246
  %vm1380 = vweird.f32 %v1374
  %vm1381 = vmor %vm1379, %vm1380
  %v1382 = vsel %vm1381, %v1374, %v1378
  %v1383 = vand.u32 2147483647, %v1246
  %vm1384 = vcmp.eq.f32.partialorder %v1383, 8.507059e+37
  %v1385 = vand.u32 %v1246, 2147483648
  %v1386 = vor.u32 1.1754944e-38, %v1385
  %v1387 = vsel %vm1384, %v1386, %v1382
  %v1388 = vmul.f32 1.0, %v1387
  %v1389 = vrcp.pop %v1247
  %v1390 = vmul.f32 %v1247, %v1389
  %v1391 = vsub.f32 1.0, %v1390
  %v1392 = vmul.f32 %v1389, %v1391
  %v1393 = vadd.f32 %v1389, %v1392
  %vm1394 = vweird.f32 %v1247
  %vm1395 = vweird.f32 %v1389
  %vm1396 = vmor %vm1394, %vm1395
  %v1397 = vsel %vm1396, %v1389, %v1393
  %v1398 = vand.u32 2147483647, %v1247
  %vm1399 = vcmp.eq.f32.partialorder %v1398, 8.507059e+37
  %v1400 = vand.u32 %v1247, 2147483648
  %v1401 = vor.u32 1.1754944e-38, %v1400
  %v1402 = vsel %vm1399, %v1401, %v1397
  %v1403 = vmul.f32 1.0, %v1402
  %v1404 = vrcp.pop %v1248
  %v1405 = vmul.f32 %v1248, %v1404
  %v1406 = vsub.f32 1.0, %v1405
  %v1407 = vmul.f32 %v1404, %v1406
  %v1408 = vadd.f32 %v1404, %v1407
  %vm1409 = vweird.f32 %v1248
  %vm1410 = vweird.f32 %v1404
  %vm1411 = vmor %vm1409, %vm1410
  %v1412 = vsel %vm1411, %v1404, %v1408
  %v1413 = vand.u32 2147483647, %v1248
  %vm1414 = vcmp.eq.f32.partialorder %v1413, 8.507059e+37
  %v1415 = vand.u32 %v1248, 2147483648
  %v1416 = vor.u32 1.1754944e-38, %v1415
  %v1417 = vsel %vm1414, %v1416, %v1412
  %v1418 = vmul.f32 1.0, %v1417
  %v1419 = vrcp.pop %v1249
  %v1420 = vmul.f32 %v1249, %v1419
  %v1421 = vsub.f32 1.0, %v1420
  %v1422 = vmul.f32 %v1419, %v1421
  %v1423 = vadd.f32 %v1419, %v1422
  %vm1424 = vweird.f32 %v1249
  %vm1425 = vweird.f32 %v1419
  %vm1426 = vmor %vm1424, %vm1425
  %v1427 = vsel %vm1426, %v1419, %v1423
  %v1428 = vand.u32 2147483647, %v1249
  %vm1429 = vcmp.eq.f32.partialorder %v1428, 8.507059e+37
  %v1430 = vand.u32 %v1249, 2147483648
  %v1431 = vor.u32 1.1754944e-38, %v1430
  %v1432 = vsel %vm1429, %v1431, %v1427
  %v1433 = vmul.f32 1.0, %v1432
  %v1434 = vrcp.pop %v1250
  %v1435 = vmul.f32 %v1250, %v1434
  %v1436 = vsub.f32 1.0, %v1435
  %v1437 = vmul.f32 %v1434, %v1436
  %v1438 = vadd.f32 %v1434, %v1437
  %vm1439 = vweird.f32 %v1250
  %vm1440 = vweird.f32 %v1434
  %vm1441 = vmor %vm1439, %vm1440
  %v1442 = vsel %vm1441, %v1434, %v1438
  %v1443 = vand.u32 2147483647, %v1250
  %vm1444 = vcmp.eq.f32.partialorder %v1443, 8.507059e+37
  %v1445 = vand.u32 %v1250, 2147483648
  %v1446 = vor.u32 1.1754944e-38, %v1445
  %v1447 = vsel %vm1444, %v1446, %v1442
  %v1448 = vmul.f32 1.0, %v1447
  %v1449 = vrcp.pop %v1251
  %v1450 = vmul.f32 %v1251, %v1449
  %v1451 = vsub.f32 1.0, %v1450
  %v1452 = vmul.f32 %v1449, %v1451
  %v1453 = vadd.f32 %v1449, %v1452
  %vm1454 = vweird.f32 %v1251
  %vm1455 = vweird.f32 %v1449
  %vm1456 = vmor %vm1454, %vm1455
  %v1457 = vsel %vm1456, %v1449, %v1453
  %v1458 = vand.u32 2147483647, %v1251
  %vm1459 = vcmp.eq.f32.partialorder %v1458, 8.507059e+37
  %v1460 = vand.u32 %v1251, 2147483648
  %v1461 = vor.u32 1.1754944e-38, %v1460
  %v1462 = vsel %vm1459, %v1461, %v1457
  %v1463 = vmul.f32 1.0, %v1462
  %v1464 = vrcp.pop %v1252
  %v1465 = vmul.f32 %v1252, %v1464
  %v1466 = vsub.f32 1.0, %v1465
  %v1467 = vmul.f32 %v1464, %v1466
  %v1468 = vadd.f32 %v1464, %v1467
  %vm1469 = vweird.f32 %v1252
  %vm1470 = vweird.f32 %v1464
  %vm1471 = vmor %vm1469, %vm1470
  %v1472 = vsel %vm1471, %v1464, %v1468
  %v1473 = vand.u32 2147483647, %v1252
  %vm1474 = vcmp.eq.f32.partialorder %v1473, 8.507059e+37
  %v1475 = vand.u32 %v1252, 2147483648
  %v1476 = vor.u32 1.1754944e-38, %v1475
  %v1477 = vsel %vm1474, %v1476, %v1472
  %v1478 = vmul.f32 1.0, %v1477
  %v1479 = vrcp.pop %v1253
  %v1480 = vmul.f32 %v1253, %v1479
  %v1481 = vsub.f32 1.0, %v1480
  %v1482 = vmul.f32 %v1479, %v1481
  %v1483 = vadd.f32 %v1479, %v1482
  %vm1484 = vweird.f32 %v1253
  %vm1485 = vweird.f32 %v1479
  %vm1486 = vmor %vm1484, %vm1485
  %v1487 = vsel %vm1486, %v1479, %v1483
  %v1488 = vand.u32 2147483647, %v1253
  %vm1489 = vcmp.eq.f32.partialorder %v1488, 8.507059e+37
  %v1490 = vand.u32 %v1253, 2147483648
  %v1491 = vor.u32 1.1754944e-38, %v1490
  %v1492 = vsel %vm1489, %v1491, %v1487
  %v1493 = vmul.f32 1.0, %v1492
  %v1494 = vtanh.pop %v1174
  %v1495 = vtanh.pop %v1175
  %v1496 = vtanh.pop %v1176
  %v1497 = vtanh.pop %v1177
  %v1498 = vtanh.pop %v1178
  %v1499 = vtanh.pop %v1179
  %v1500 = vtanh.pop %v1180
  %v1501 = vtanh.pop %v1181
  %v1502 = vtanh.pop %v1182
  %v1503 = vtanh.pop %v1183
  %v1504 = vtanh.pop %v1184
  %v1505 = vtanh.pop %v1185
  %v1506 = vtanh.pop %v1186
  %v1507 = vtanh.pop %v1187
  %v1508 = vtanh.pop %v1188
  %v1509 = vtanh.pop %v1189
  %1526 = vrot.lane.b32.xlu0 %v1494, 64
  %v1527 = vpop.permute.xlu0 %1526
  %1528 = vrot.lane.b32.xlu0 %v1495, 64
  %v1529 = vpop.permute.xlu0 %1528
  %1530 = vrot.lane.b32.xlu0 %v1496, 64
  %v1531 = vpop.permute.xlu0 %1530
  %1532 = vrot.lane.b32.xlu0 %v1497, 64
  %v1533 = vpop.permute.xlu0 %1532
  %1534 = vrot.lane.b32.xlu0 %v1498, 64
  %v1535 = vpop.permute.xlu0 %1534
  %1536 = vrot.lane.b32.xlu0 %v1499, 64
  %v1537 = vpop.permute.xlu0 %1536
  %1538 = vrot.lane.b32.xlu0 %v1500, 64
  %v1539 = vpop.permute.xlu0 %1538
  %1540 = vrot.lane.b32.xlu0 %v1501, 64
  %v1541 = vpop.permute.xlu0 %1540
  %1542 = vrot.lane.b32.xlu0 %v1502, 64
  %v1543 = vpop.permute.xlu0 %1542
  %1544 = vrot.lane.b32.xlu0 %v1503, 64
  %v1545 = vpop.permute.xlu0 %1544
  %1546 = vrot.lane.b32.xlu0 %v1504, 64
  %v1547 = vpop.permute.xlu0 %1546
  %1548 = vrot.lane.b32.xlu0 %v1505, 64
  %v1549 = vpop.permute.xlu0 %1548
  %1550 = vrot.lane.b32.xlu0 %v1506, 64
  %v1551 = vpop.permute.xlu0 %1550
  %1552 = vrot.lane.b32.xlu0 %v1507, 64
  %v1553 = vpop.permute.xlu0 %1552
  %1554 = vrot.lane.b32.xlu0 %v1508, 64
  %v1555 = vpop.permute.xlu0 %1554
  %1556 = vrot.lane.b32.xlu0 %v1509, 64
  %v1557 = vpop.permute.xlu0 %1556
  %v1574 = vmul.f32 %v1268, %v1527
  %v1575 = vmul.f32 %v1283, %v1529
  %v1576 = vmul.f32 %v1298, %v1531
  %v1577 = vmul.f32 %v1313, %v1533
  %v1578 = vmul.f32 %v1328, %v1535
  %v1579 = vmul.f32 %v1343, %v1537
  %v1580 = vmul.f32 %v1358, %v1539
  %v1581 = vmul.f32 %v1373, %v1541
  %v1582 = vmul.f32 %v1388, %v1543
  %v1583 = vmul.f32 %v1403, %v1545
  %v1584 = vmul.f32 %v1418, %v1547
  %v1585 = vmul.f32 %v1433, %v1549
  %v1586 = vmul.f32 %v1448, %v1551
  %v1587 = vmul.f32 %v1463, %v1553
  %v1588 = vmul.f32 %v1478, %v1555
  %v1589 = vmul.f32 %v1493, %v1557
  %v1590 = vtanh.pop %v1574
  %v1591 = vtanh.pop %v1575
  %v1592 = vtanh.pop %v1576
  %v1593 = vtanh.pop %v1577
  %v1594 = vtanh.pop %v1578
  %v1595 = vtanh.pop %v1579
  %v1596 = vtanh.pop %v1580
  %v1597 = vtanh.pop %v1581
  %v1598 = vtanh.pop %v1582
  %v1599 = vtanh.pop %v1583
  %v1600 = vtanh.pop %v1584
  %v1601 = vtanh.pop %v1585
  %v1602 = vtanh.pop %v1586
  %v1603 = vtanh.pop %v1587
  %v1604 = vtanh.pop %v1588
  %v1605 = vtanh.pop %v1589
  %1622 = vrot.lane.b32.xlu0 %v1590, 96
  %v1623 = vpop.permute.xlu0 %1622
  %1624 = vrot.lane.b32.xlu0 %v1591, 96
  %v1625 = vpop.permute.xlu0 %1624
  %1626 = vrot.lane.b32.xlu0 %v1592, 96
  %v1627 = vpop.permute.xlu0 %1626
  %1628 = vrot.lane.b32.xlu0 %v1593, 96
  %v1629 = vpop.permute.xlu0 %1628
  %1630 = vrot.lane.b32.xlu0 %v1594, 96
  %v1631 = vpop.permute.xlu0 %1630
  %1632 = vrot.lane.b32.xlu0 %v1595, 96
  %v1633 = vpop.permute.xlu0 %1632
  %1634 = vrot.lane.b32.xlu0 %v1596, 96
  %v1635 = vpop.permute.xlu0 %1634
  %1636 = vrot.lane.b32.xlu0 %v1597, 96
  %v1637 = vpop.permute.xlu0 %1636
  %1638 = vrot.lane.b32.xlu0 %v1598, 96
  %v1639 = vpop.permute.xlu0 %1638
  %1640 = vrot.lane.b32.xlu0 %v1599, 96
  %v1641 = vpop.permute.xlu0 %1640
  %1642 = vrot.lane.b32.xlu0 %v1600, 96
  %v1643 = vpop.permute.xlu0 %1642
  %1644 = vrot.lane.b32.xlu0 %v1601, 96
  %v1645 = vpop.permute.xlu0 %1644
  %1646 = vrot.lane.b32.xlu0 %v1602, 96
  %v1647 = vpop.permute.xlu0 %1646
  %1648 = vrot.lane.b32.xlu0 %v1603, 96
  %v1649 = vpop.permute.xlu0 %1648
  %1650 = vrot.lane.b32.xlu0 %v1604, 96
  %v1651 = vpop.permute.xlu0 %1650
  %1652 = vrot.lane.b32.xlu0 %v1605, 96
  %v1653 = vpop.permute.xlu0 %1652
  %v1670 = vmul.f32 %v1268, %v1623
  %v1671 = vmul.f32 %v1283, %v1625
  %v1672 = vmul.f32 %v1298, %v1627
  %v1673 = vmul.f32 %v1313, %v1629
  %v1674 = vmul.f32 %v1328, %v1631
  %v1675 = vmul.f32 %v1343, %v1633
  %v1676 = vmul.f32 %v1358, %v1635
  %v1677 = vmul.f32 %v1373, %v1637
  %v1678 = vmul.f32 %v1388, %v1639
  %v1679 = vmul.f32 %v1403, %v1641
  %v1680 = vmul.f32 %v1418, %v1643
  %v1681 = vmul.f32 %v1433, %v1645
  %v1682 = vmul.f32 %v1448, %v1647
  %v1683 = vmul.f32 %v1463, %v1649
  %v1684 = vmul.f32 %v1478, %v1651
  %v1685 = vmul.f32 %v1493, %v1653
  %1702 = vrot.lane.b32.xlu0 %v1670, 32
  %v1703 = vpop.permute.xlu0 %1702
  %1704 = vrot.lane.b32.xlu0 %v1671, 32
  %v1705 = vpop.permute.xlu0 %1704
  %1706 = vrot.lane.b32.xlu0 %v1672, 32
  %v1707 = vpop.permute.xlu0 %1706
  %1708 = vrot.lane.b32.xlu0 %v1673, 32
  %v1709 = vpop.permute.xlu0 %1708
  %1710 = vrot.lane.b32.xlu0 %v1674, 32
  %v1711 = vpop.permute.xlu0 %1710
  %1712 = vrot.lane.b32.xlu0 %v1675, 32
  %v1713 = vpop.permute.xlu0 %1712
  %1714 = vrot.lane.b32.xlu0 %v1676, 32
  %v1715 = vpop.permute.xlu0 %1714
  %1716 = vrot.lane.b32.xlu0 %v1677, 32
  %v1717 = vpop.permute.xlu0 %1716
  %1718 = vrot.lane.b32.xlu0 %v1678, 32
  %v1719 = vpop.permute.xlu0 %1718
  %1720 = vrot.lane.b32.xlu0 %v1679, 32
  %v1721 = vpop.permute.xlu0 %1720
  %1722 = vrot.lane.b32.xlu0 %v1680, 32
  %v1723 = vpop.permute.xlu0 %1722
  %1724 = vrot.lane.b32.xlu0 %v1681, 32
  %v1725 = vpop.permute.xlu0 %1724
  %1726 = vrot.lane.b32.xlu0 %v1682, 32
  %v1727 = vpop.permute.xlu0 %1726
  %1728 = vrot.lane.b32.xlu0 %v1683, 32
  %v1729 = vpop.permute.xlu0 %1728
  %1730 = vrot.lane.b32.xlu0 %v1684, 32
  %v1731 = vpop.permute.xlu0 %1730
  %1732 = vrot.lane.b32.xlu0 %v1685, 32
  %v1733 = vpop.permute.xlu0 %1732
  %1750 = vst.msk [vmem:[%s12] sm:$0xff] %vm148, %v1703
  %1751 = vst.msk [vmem:[%s12 + $0x8] sm:$0xff] %vm148, %v1705
  %1752 = vst.msk [vmem:[%s12 + $0x10] sm:$0xff] %vm148, %v1707
  %1753 = vst.msk [vmem:[%s12 + $0x18] sm:$0xff] %vm148, %v1709
  %1754 = vst.msk [vmem:[%s12 + $0x20] sm:$0xff] %vm148, %v1711
  %1755 = vst.msk [vmem:[%s12 + $0x28] sm:$0xff] %vm148, %v1713
  %1756 = vst.msk [vmem:[%s12 + $0x30] sm:$0xff] %vm148, %v1715
  %1757 = vst.msk [vmem:[%s12 + $0x38] sm:$0xff] %vm148, %v1717
  %1758 = vst.msk [vmem:[%s12 + $0x40] sm:$0xff] %vm148, %v1719
  %1759 = vst.msk [vmem:[%s12 + $0x48] sm:$0xff] %vm148, %v1721
  %1760 = vst.msk [vmem:[%s12 + $0x50] sm:$0xff] %vm148, %v1723
  %1761 = vst.msk [vmem:[%s12 + $0x58] sm:$0xff] %vm148, %v1725
  %1762 = vst.msk [vmem:[%s12 + $0x60] sm:$0xff] %vm148, %v1727
  %1763 = vst.msk [vmem:[%s12 + $0x68] sm:$0xff] %vm148, %v1729
  %1764 = vst.msk [vmem:[%s12 + $0x70] sm:$0xff] %vm148, %v1731
  %1765 = vst.msk [vmem:[%s12 + $0x78] sm:$0xff] %vm148, %v1733
  %v1767 = vperm.slane %v83, 0
  %1768 = vrot.lane.b32.xlu0 %v1767, 96
  %v1769 = vpop.permute.xlu0 %1768
  %v1771 = vmul.f32 %v1670, %v1769
  %v1772 = vmul.f32 %v1671, %v1769
  %v1773 = vmul.f32 %v1672, %v1769
  %v1774 = vmul.f32 %v1673, %v1769
  %v1775 = vmul.f32 %v1674, %v1769
  %v1776 = vmul.f32 %v1675, %v1769
  %v1777 = vmul.f32 %v1676, %v1769
  %v1778 = vmul.f32 %v1677, %v1769
  %v1779 = vmul.f32 %v1678, %v1769
  %v1780 = vmul.f32 %v1679, %v1769
  %v1781 = vmul.f32 %v1680, %v1769
  %v1782 = vmul.f32 %v1681, %v1769
  %v1783 = vmul.f32 %v1682, %v1769
  %v1784 = vmul.f32 %v1683, %v1769
  %v1785 = vmul.f32 %v1684, %v1769
  %v1786 = vmul.f32 %v1685, %v1769
  %1803 = vrot.lane.b32.xlu0 %v1771, 32
  %v1804 = vpop.permute.xlu0 %1803
  %1805 = vrot.lane.b32.xlu0 %v1772, 32
  %v1806 = vpop.permute.xlu0 %1805
  %1807 = vrot.lane.b32.xlu0 %v1773, 32
  %v1808 = vpop.permute.xlu0 %1807
  %1809 = vrot.lane.b32.xlu0 %v1774, 32
  %v1810 = vpop.permute.xlu0 %1809
  %1811 = vrot.lane.b32.xlu0 %v1775, 32
  %v1812 = vpop.permute.xlu0 %1811
  %1813 = vrot.lane.b32.xlu0 %v1776, 32
  %v1814 = vpop.permute.xlu0 %1813
  %1815 = vrot.lane.b32.xlu0 %v1777, 32
  %v1816 = vpop.permute.xlu0 %1815
  %1817 = vrot.lane.b32.xlu0 %v1778, 32
  %v1818 = vpop.permute.xlu0 %1817
  %1819 = vrot.lane.b32.xlu0 %v1779, 32
  %v1820 = vpop.permute.xlu0 %1819
  %1821 = vrot.lane.b32.xlu0 %v1780, 32
  %v1822 = vpop.permute.xlu0 %1821
  %1823 = vrot.lane.b32.xlu0 %v1781, 32
  %v1824 = vpop.permute.xlu0 %1823
  %1825 = vrot.lane.b32.xlu0 %v1782, 32
  %v1826 = vpop.permute.xlu0 %1825
  %1827 = vrot.lane.b32.xlu0 %v1783, 32
  %v1828 = vpop.permute.xlu0 %1827
  %1829 = vrot.lane.b32.xlu0 %v1784, 32
  %v1830 = vpop.permute.xlu0 %1829
  %1831 = vrot.lane.b32.xlu0 %v1785, 32
  %v1832 = vpop.permute.xlu0 %1831
  %1833 = vrot.lane.b32.xlu0 %v1786, 32
  %v1834 = vpop.permute.xlu0 %1833
  %v1851 = vsel %vm148, %v1804, 0.0
  %1852 = vadd.xlane.f32.xlu0 %v1851
  %v1853 = vpop.xlane.xlu0 %1852
  %v1854 = vsel %vm148, %v1806, 0.0
  %1855 = vadd.xlane.f32.xlu0 %v1854
  %v1856 = vpop.xlane.xlu0 %1855
  %v1857 = vsel %vm148, %v1808, 0.0
  %1858 = vadd.xlane.f32.xlu0 %v1857
  %v1859 = vpop.xlane.xlu0 %1858
  %v1860 = vsel %vm148, %v1810, 0.0
  %1861 = vadd.xlane.f32.xlu0 %v1860
  %v1862 = vpop.xlane.xlu0 %1861
  %v1863 = vsel %vm148, %v1812, 0.0
  %1864 = vadd.xlane.f32.xlu0 %v1863
  %v1865 = vpop.xlane.xlu0 %1864
  %v1866 = vsel %vm148, %v1814, 0.0
  %1867 = vadd.xlane.f32.xlu0 %v1866
  %v1868 = vpop.xlane.xlu0 %1867
  %v1869 = vsel %vm148, %v1816, 0.0
  %1870 = vadd.xlane.f32.xlu0 %v1869
  %v1871 = vpop.xlane.xlu0 %1870
  %v1872 = vsel %vm148, %v1818, 0.0
  %1873 = vadd.xlane.f32.xlu0 %v1872
  %v1874 = vpop.xlane.xlu0 %1873
  %v1875 = vsel %vm148, %v1820, 0.0
  %1876 = vadd.xlane.f32.xlu0 %v1875
  %v1877 = vpop.xlane.xlu0 %1876
  %v1878 = vsel %vm148, %v1822, 0.0
  %1879 = vadd.xlane.f32.xlu0 %v1878
  %v1880 = vpop.xlane.xlu0 %1879
  %v1881 = vsel %vm148, %v1824, 0.0
  %1882 = vadd.xlane.f32.xlu0 %v1881
  %v1883 = vpop.xlane.xlu0 %1882
  %v1884 = vsel %vm148, %v1826, 0.0
  %1885 = vadd.xlane.f32.xlu0 %v1884
  %v1886 = vpop.xlane.xlu0 %1885
  %v1887 = vsel %vm148, %v1828, 0.0
  %1888 = vadd.xlane.f32.xlu0 %v1887
  %v1889 = vpop.xlane.xlu0 %1888
  %v1890 = vsel %vm148, %v1830, 0.0
  %1891 = vadd.xlane.f32.xlu0 %v1890
  %v1892 = vpop.xlane.xlu0 %1891
  %v1893 = vsel %vm148, %v1832, 0.0
  %1894 = vadd.xlane.f32.xlu0 %v1893
  %v1895 = vpop.xlane.xlu0 %1894
  %v1896 = vsel %vm148, %v1834, 0.0
  %1897 = vadd.xlane.f32.xlu0 %v1896
  %v1898 = vpop.xlane.xlu0 %1897
  %vm1899 = vcmask 7168
  %1900 = vst.msk [vmem:[%s13] sm:$0xff] %vm1899, %v1853
  %1901 = vst.msk [vmem:[%s13 + $0x8] sm:$0xff] %vm1899, %v1856
  %1902 = vst.msk [vmem:[%s13 + $0x10] sm:$0xff] %vm1899, %v1859
  %1903 = vst.msk [vmem:[%s13 + $0x18] sm:$0xff] %vm1899, %v1862
  %1904 = vst.msk [vmem:[%s13 + $0x20] sm:$0xff] %vm1899, %v1865
  %1905 = vst.msk [vmem:[%s13 + $0x28] sm:$0xff] %vm1899, %v1868
  %1906 = vst.msk [vmem:[%s13 + $0x30] sm:$0xff] %vm1899, %v1871
  %1907 = vst.msk [vmem:[%s13 + $0x38] sm:$0xff] %vm1899, %v1874
  %1908 = vst.msk [vmem:[%s13 + $0x40] sm:$0xff] %vm1899, %v1877
  %1909 = vst.msk [vmem:[%s13 + $0x48] sm:$0xff] %vm1899, %v1880
  %1910 = vst.msk [vmem:[%s13 + $0x50] sm:$0xff] %vm1899, %v1883
  %1911 = vst.msk [vmem:[%s13 + $0x58] sm:$0xff] %vm1899, %v1886
  %1912 = vst.msk [vmem:[%s13 + $0x60] sm:$0xff] %vm1899, %v1889
  %1913 = vst.msk [vmem:[%s13 + $0x68] sm:$0xff] %vm1899, %v1892
  %1914 = vst.msk [vmem:[%s13 + $0x70] sm:$0xff] %vm1899, %v1895
  %1915 = vst.msk [vmem:[%s13 + $0x78] sm:$0xff] %vm1899, %v1898
  %v1916 = vpack.c.bf16 %v1671, %v1670
  %v1917 = vpack.c.bf16 %v1673, %v1672
  %v1918 = vpack.c.bf16 %v1675, %v1674
  %v1919 = vpack.c.bf16 %v1677, %v1676
  %v1920 = vpack.c.bf16 %v1679, %v1678
  %v1921 = vpack.c.bf16 %v1681, %v1680
  %v1922 = vpack.c.bf16 %v1683, %v1682
  %v1923 = vpack.c.bf16 %v1685, %v1684
  %v1924 = vld [vmem:[%s2] sm:$0xff]
  %v1925 = vld [vmem:[%s2 + $0x8] sm:$0xf]
  %v1926 = vld [vmem:[%s2 + $0xc] sm:$0xff]
  %v1927 = vld [vmem:[%s2 + $0x14] sm:$0xf]
  %v1928 = vld [vmem:[%s2 + $0x18] sm:$0xff]
  %v1929 = vld [vmem:[%s2 + $0x20] sm:$0xf]
  %v1930 = vld [vmem:[%s2 + $0x24] sm:$0xff]
  %v1931 = vld [vmem:[%s2 + $0x2c] sm:$0xf]
  %1940 = vrot.lane.b32.xlu0 %v1916, 32
  %v1941 = vpop.permute.xlu0 %1940
  %1942 = vrot.lane.b32.xlu0 %v1917, 32
  %v1943 = vpop.permute.xlu0 %1942
  %1944 = vrot.lane.b32.xlu0 %v1918, 32
  %v1945 = vpop.permute.xlu0 %1944
  %1946 = vrot.lane.b32.xlu0 %v1919, 32
  %v1947 = vpop.permute.xlu0 %1946
  %1948 = vrot.lane.b32.xlu0 %v1920, 32
  %v1949 = vpop.permute.xlu0 %1948
  %1950 = vrot.lane.b32.xlu0 %v1921, 32
  %v1951 = vpop.permute.xlu0 %1950
  %1952 = vrot.lane.b32.xlu0 %v1922, 32
  %v1953 = vpop.permute.xlu0 %1952
  %1954 = vrot.lane.b32.xlu0 %v1923, 32
  %v1955 = vpop.permute.xlu0 %1954
  %v1964 = vunpack.c.l.b16 %v1924
  %v1965 = vunpack.c.h.b16 %v1924
  %v1966 = vunpack.c.l.b16 %v1925
  %v1967 = vunpack.c.l.b16 %v1926
  %v1968 = vunpack.c.h.b16 %v1926
  %v1969 = vunpack.c.l.b16 %v1927
  %v1970 = vunpack.c.l.b16 %v1928
  %v1971 = vunpack.c.h.b16 %v1928
  %v1972 = vunpack.c.l.b16 %v1929
  %v1973 = vunpack.c.l.b16 %v1930
  %v1974 = vunpack.c.h.b16 %v1930
  %v1975 = vunpack.c.l.b16 %v1931
  %v1976 = vpack.c.b16 %v1967, %v1964
  %v1977 = vpack.c.b16 %v1968, %v1965
  %v1978 = vpack.c.b16 %v1969, %v1966
  %v1979 = vpack.c.b16 %v1973, %v1970
  %v1980 = vpack.c.b16 %v1974, %v1971
  %v1981 = vpack.c.b16 %v1975, %v1972
  %v1989 = vsel %vm148, %v1941, 0
  %v1992 = vsel %vm148, %v1943, 0
  %v1995 = vsel %vm148, %v1945, 0
  %v1998 = vsel %vm148, %v1947, 0
  %v2001 = vsel %vm148, %v1949, 0
  %v2004 = vsel %vm148, %v1951, 0
  %v2007 = vsel %vm148, %v1953, 0
  %v2010 = vsel %vm148, %v1955, 0
  %2012 = vmatpush.bf16.msra.mxu0 0
  %2013 = vmatpush.bf16.msra.mxu0 0
  %2014 = vmatpush.bf16.msra.mxu0 0
  %2015 = vmatpush.bf16.msra.mxu0 0
  %2016 = vmatpush.bf16.msra.mxu0 0
  %2017 = vmatpush.bf16.msra.mxu0 0
  %2018 = vmatpush.bf16.msra.mxu0 %v1979
  %2019 = vmatpush.bf16.msra.mxu0 %v1976
  %2020 = vmatmul.bf16.gmra.mxu0 %v1989
  %v2021 = vpop.f32.mrf.mxu0
  %v2022 = vadd.f32 0.0, %v2021
  %v2023 = vpop.f32.mrf.mxu0
  %v2024 = vadd.f32 0.0, %v2023
  %2025 = vmatmul.bf16.gmra.mxu0 %v1992
  %v2026 = vpop.f32.mrf.mxu0
  %v2027 = vadd.f32 0.0, %v2026
  %v2028 = vpop.f32.mrf.mxu0
  %v2029 = vadd.f32 0.0, %v2028
  %2030 = vmatmul.bf16.gmra.mxu0 %v1995
  %v2031 = vpop.f32.mrf.mxu0
  %v2032 = vadd.f32 0.0, %v2031
  %v2033 = vpop.f32.mrf.mxu0
  %v2034 = vadd.f32 0.0, %v2033
  %2035 = vmatmul.bf16.gmra.mxu0 %v1998
  %v2036 = vpop.f32.mrf.mxu0
  %v2037 = vadd.f32 0.0, %v2036
  %v2038 = vpop.f32.mrf.mxu0
  %v2039 = vadd.f32 0.0, %v2038
  %2040 = vmatmul.bf16.gmra.mxu0 %v2001
  %v2041 = vpop.f32.mrf.mxu0
  %v2042 = vadd.f32 0.0, %v2041
  %v2043 = vpop.f32.mrf.mxu0
  %v2044 = vadd.f32 0.0, %v2043
  %2045 = vmatmul.bf16.gmra.mxu0 %v2004
  %v2046 = vpop.f32.mrf.mxu0
  %v2047 = vadd.f32 0.0, %v2046
  %v2048 = vpop.f32.mrf.mxu0
  %v2049 = vadd.f32 0.0, %v2048
  %2050 = vmatmul.bf16.gmra.mxu0 %v2007
  %v2051 = vpop.f32.mrf.mxu0
  %v2052 = vadd.f32 0.0, %v2051
  %v2053 = vpop.f32.mrf.mxu0
  %v2054 = vadd.f32 0.0, %v2053
  %2055 = vmatmul.bf16.gmra.mxu0 %v2010
  %v2056 = vpop.f32.mrf.mxu0
  %v2057 = vadd.f32 0.0, %v2056
  %v2058 = vpop.f32.mrf.mxu0
  %v2059 = vadd.f32 0.0, %v2058
  %2060 = vdwg.mxu0
  %2061 = vmatpush.bf16.msra.mxu0 0
  %2062 = vmatpush.bf16.msra.mxu0 0
  %2063 = vmatpush.bf16.msra.mxu0 0
  %2064 = vmatpush.bf16.msra.mxu0 0
  %2065 = vmatpush.bf16.msra.mxu0 0
  %2066 = vmatpush.bf16.msra.mxu0 0
  %2067 = vmatpush.bf16.msra.mxu0 %v1980
  %2068 = vmatpush.bf16.msra.mxu0 %v1977
  %2069 = vmatmul.bf16.gmra.mxu0 %v1989
  %v2070 = vpop.f32.mrf.mxu0
  %v2071 = vadd.f32 0.0, %v2070
  %v2072 = vpop.f32.mrf.mxu0
  %v2073 = vadd.f32 0.0, %v2072
  %2074 = vmatmul.bf16.gmra.mxu0 %v1992
  %v2075 = vpop.f32.mrf.mxu0
  %v2076 = vadd.f32 0.0, %v2075
  %v2077 = vpop.f32.mrf.mxu0
  %v2078 = vadd.f32 0.0, %v2077
  %2079 = vmatmul.bf16.gmra.mxu0 %v1995
  %v2080 = vpop.f32.mrf.mxu0
  %v2081 = vadd.f32 0.0, %v2080
  %v2082 = vpop.f32.mrf.mxu0
  %v2083 = vadd.f32 0.0, %v2082
  %2084 = vmatmul.bf16.gmra.mxu0 %v1998
  %v2085 = vpop.f32.mrf.mxu0
  %v2086 = vadd.f32 0.0, %v2085
  %v2087 = vpop.f32.mrf.mxu0
  %v2088 = vadd.f32 0.0, %v2087
  %2089 = vmatmul.bf16.gmra.mxu0 %v2001
  %v2090 = vpop.f32.mrf.mxu0
  %v2091 = vadd.f32 0.0, %v2090
  %v2092 = vpop.f32.mrf.mxu0
  %v2093 = vadd.f32 0.0, %v2092
  %2094 = vmatmul.bf16.gmra.mxu0 %v2004
  %v2095 = vpop.f32.mrf.mxu0
  %v2096 = vadd.f32 0.0, %v2095
  %v2097 = vpop.f32.mrf.mxu0
  %v2098 = vadd.f32 0.0, %v2097
  %2099 = vmatmul.bf16.gmra.mxu0 %v2007
  %v2100 = vpop.f32.mrf.mxu0
  %v2101 = vadd.f32 0.0, %v2100
  %v2102 = vpop.f32.mrf.mxu0
  %v2103 = vadd.f32 0.0, %v2102
  %2104 = vmatmul.bf16.gmra.mxu0 %v2010
  %v2105 = vpop.f32.mrf.mxu0
  %v2106 = vadd.f32 0.0, %v2105
  %v2107 = vpop.f32.mrf.mxu0
  %v2108 = vadd.f32 0.0, %v2107
  %2109 = vdwg.mxu0
  %2110 = vmatpush.bf16.msra.mxu0 0
  %2111 = vmatpush.bf16.msra.mxu0 0
  %2112 = vmatpush.bf16.msra.mxu0 0
  %2113 = vmatpush.bf16.msra.mxu0 0
  %2114 = vmatpush.bf16.msra.mxu0 0
  %2115 = vmatpush.bf16.msra.mxu0 0
  %2116 = vmatpush.bf16.msra.mxu0 %v1981
  %2117 = vmatpush.bf16.msra.mxu0 %v1978
  %2118 = vmatmul.bf16.gmra.mxu0 %v1989
  %v2119 = vpop.f32.mrf.mxu0
  %v2120 = vadd.f32 0.0, %v2119
  %v2121 = vpop.f32.mrf.mxu0
  %v2122 = vadd.f32 0.0, %v2121
  %2123 = vmatmul.bf16.gmra.mxu0 %v1992
  %v2124 = vpop.f32.mrf.mxu0
  %v2125 = vadd.f32 0.0, %v2124
  %v2126 = vpop.f32.mrf.mxu0
  %v2127 = vadd.f32 0.0, %v2126
  %2128 = vmatmul.bf16.gmra.mxu0 %v1995
  %v2129 = vpop.f32.mrf.mxu0
  %v2130 = vadd.f32 0.0, %v2129
  %v2131 = vpop.f32.mrf.mxu0
  %v2132 = vadd.f32 0.0, %v2131
  %2133 = vmatmul.bf16.gmra.mxu0 %v1998
  %v2134 = vpop.f32.mrf.mxu0
  %v2135 = vadd.f32 0.0, %v2134
  %v2136 = vpop.f32.mrf.mxu0
  %v2137 = vadd.f32 0.0, %v2136
  %2138 = vmatmul.bf16.gmra.mxu0 %v2001
  %v2139 = vpop.f32.mrf.mxu0
  %v2140 = vadd.f32 0.0, %v2139
  %v2141 = vpop.f32.mrf.mxu0
  %v2142 = vadd.f32 0.0, %v2141
  %2143 = vmatmul.bf16.gmra.mxu0 %v2004
  %v2144 = vpop.f32.mrf.mxu0
  %v2145 = vadd.f32 0.0, %v2144
  %v2146 = vpop.f32.mrf.mxu0
  %v2147 = vadd.f32 0.0, %v2146
  %2148 = vmatmul.bf16.gmra.mxu0 %v2007
  %v2149 = vpop.f32.mrf.mxu0
  %v2150 = vadd.f32 0.0, %v2149
  %v2151 = vpop.f32.mrf.mxu0
  %v2152 = vadd.f32 0.0, %v2151
  %2153 = vmatmul.bf16.gmra.mxu0 %v2010
  %v2154 = vpop.f32.mrf.mxu0
  %v2155 = vadd.f32 0.0, %v2154
  %v2156 = vpop.f32.mrf.mxu0
  %v2157 = vadd.f32 0.0, %v2156
  %2158 = vdwg.mxu0
  %v2159 = vrot.slane %v2022, 7
  %v2160 = vrot.slane %v2024, 7
  %v2161 = vrot.slane %v2027, 7
  %v2162 = vrot.slane %v2029, 7
  %v2163 = vrot.slane %v2032, 7
  %v2164 = vrot.slane %v2034, 7
  %v2165 = vrot.slane %v2037, 7
  %v2166 = vrot.slane %v2039, 7
  %v2167 = vrot.slane %v2042, 7
  %v2168 = vrot.slane %v2044, 7
  %v2169 = vrot.slane %v2047, 7
  %v2170 = vrot.slane %v2049, 7
  %v2171 = vrot.slane %v2052, 7
  %v2172 = vrot.slane %v2054, 7
  %v2173 = vrot.slane %v2057, 7
  %v2174 = vrot.slane %v2059, 7
  %v2175 = vsel %vm352, %v2173, %v2174
  %v2176 = vsel %vm352, %v2172, %v2173
  %v2177 = vsel %vm352, %v2171, %v2172
  %v2178 = vsel %vm352, %v2170, %v2171
  %v2179 = vsel %vm352, %v2169, %v2170
  %v2180 = vsel %vm352, %v2168, %v2169
  %v2181 = vsel %vm352, %v2167, %v2168
  %v2182 = vsel %vm352, %v2166, %v2167
  %v2183 = vsel %vm352, %v2165, %v2166
  %v2184 = vsel %vm352, %v2164, %v2165
  %v2185 = vsel %vm352, %v2163, %v2164
  %v2186 = vsel %vm352, %v2162, %v2163
  %v2187 = vsel %vm352, %v2161, %v2162
  %v2188 = vsel %vm352, %v2160, %v2161
  %v2189 = vsel %vm352, %v2159, %v2160
  %v2190 = vsel %vm352, %v2174, %v2159
  %v2191 = vsel %vm320, %v2190, %v2182
  %v2192 = vsel %vm321, %v2189, %v2181
  %v2193 = vsel %vm322, %v2188, %v2180
  %v2194 = vsel %vm323, %v2187, %v2179
  %v2195 = vsel %vm324, %v2186, %v2178
  %v2196 = vsel %vm325, %v2185, %v2177
  %v2197 = vsel %vm326, %v2184, %v2176
  %v2198 = vsel %vm327, %v2183, %v2175
  %v2199 = vsel %vm328, %v2182, %v2190
  %v2200 = vsel %vm329, %v2181, %v2189
  %v2201 = vsel %vm330, %v2180, %v2188
  %v2202 = vsel %vm331, %v2179, %v2187
  %v2203 = vsel %vm332, %v2178, %v2186
  %v2204 = vsel %vm333, %v2177, %v2185
  %v2205 = vsel %vm334, %v2176, %v2184
  %v2206 = vsel %vm335, %v2175, %v2183
  %v2207 = vrot.slane %v2022, 4
  %v2208 = vrot.slane %v2024, 4
  %v2209 = vrot.slane %v2027, 4
  %v2210 = vrot.slane %v2029, 4
  %v2211 = vrot.slane %v2032, 4
  %v2212 = vrot.slane %v2034, 4
  %v2213 = vrot.slane %v2037, 4
  %v2214 = vrot.slane %v2039, 4
  %v2215 = vrot.slane %v2042, 4
  %v2216 = vrot.slane %v2044, 4
  %v2217 = vrot.slane %v2047, 4
  %v2218 = vrot.slane %v2049, 4
  %v2219 = vrot.slane %v2052, 4
  %v2220 = vrot.slane %v2054, 4
  %v2221 = vrot.slane %v2057, 4
  %v2222 = vrot.slane %v2059, 4
  %v2223 = vsel %vm417, %v2221, %v2222
  %v2224 = vsel %vm417, %v2220, %v2221
  %v2225 = vsel %vm417, %v2219, %v2220
  %v2226 = vsel %vm417, %v2218, %v2219
  %v2227 = vsel %vm417, %v2217, %v2218
  %v2228 = vsel %vm417, %v2216, %v2217
  %v2229 = vsel %vm417, %v2215, %v2216
  %v2230 = vsel %vm417, %v2214, %v2215
  %v2231 = vsel %vm417, %v2213, %v2214
  %v2232 = vsel %vm417, %v2212, %v2213
  %v2233 = vsel %vm417, %v2211, %v2212
  %v2234 = vsel %vm417, %v2210, %v2211
  %v2235 = vsel %vm417, %v2209, %v2210
  %v2236 = vsel %vm417, %v2208, %v2209
  %v2237 = vsel %vm417, %v2207, %v2208
  %v2238 = vsel %vm417, %v2222, %v2207
  %v2239 = vsel %vm385, %v2238, %v2230
  %v2240 = vsel %vm386, %v2237, %v2229
  %v2241 = vsel %vm387, %v2236, %v2228
  %v2242 = vsel %vm388, %v2235, %v2227
  %v2243 = vsel %vm389, %v2234, %v2226
  %v2244 = vsel %vm390, %v2233, %v2225
  %v2245 = vsel %vm391, %v2232, %v2224
  %v2246 = vsel %vm392, %v2231, %v2223
  %v2247 = vsel %vm393, %v2230, %v2238
  %v2248 = vsel %vm394, %v2229, %v2237
  %v2249 = vsel %vm395, %v2228, %v2236
  %v2250 = vsel %vm396, %v2227, %v2235
  %v2251 = vsel %vm397, %v2226, %v2234
  %v2252 = vsel %vm398, %v2225, %v2233
  %v2253 = vsel %vm399, %v2224, %v2232
  %v2254 = vsel %vm400, %v2223, %v2231
  %v2255 = vsel %vm450, %v2191, %v2239
  %v2256 = vsel %vm450, %v2192, %v2240
  %v2257 = vsel %vm450, %v2193, %v2241
  %v2258 = vsel %vm450, %v2194, %v2242
  %v2259 = vsel %vm450, %v2195, %v2243
  %v2260 = vsel %vm450, %v2196, %v2244
  %v2261 = vsel %vm450, %v2197, %v2245
  %v2262 = vsel %vm450, %v2198, %v2246
  %v2263 = vsel %vm450, %v2199, %v2247
  %v2264 = vsel %vm450, %v2200, %v2248
  %v2265 = vsel %vm450, %v2201, %v2249
  %v2266 = vsel %vm450, %v2202, %v2250
  %v2267 = vsel %vm450, %v2203, %v2251
  %v2268 = vsel %vm450, %v2204, %v2252
  %v2269 = vsel %vm450, %v2205, %v2253
  %v2270 = vsel %vm450, %v2206, %v2254
  %v2271 = vsel %vm467, %v2057, %v2037
  %v2272 = vsel %vm468, %v2059, %v2039
  %v2273 = vsel %vm469, %v2022, %v2042
  %v2274 = vsel %vm470, %v2024, %v2044
  %v2275 = vsel %vm471, %v2027, %v2047
  %v2276 = vsel %vm472, %v2029, %v2049
  %v2277 = vsel %vm473, %v2032, %v2052
  %v2278 = vsel %vm474, %v2034, %v2054
  %v2279 = vsel %vm475, %v2037, %v2057
  %v2280 = vsel %vm476, %v2039, %v2059
  %v2281 = vsel %vm477, %v2042, %v2022
  %v2282 = vsel %vm478, %v2044, %v2024
  %v2283 = vsel %vm479, %v2047, %v2027
  %v2284 = vsel %vm480, %v2049, %v2029
  %v2285 = vsel %vm481, %v2052, %v2032
  %v2286 = vsel %vm482, %v2054, %v2034
  %v2287 = vsel %vm499, %v2255, %v2271
  %v2288 = vsel %vm499, %v2256, %v2272
  %v2289 = vsel %vm499, %v2257, %v2273
  %v2290 = vsel %vm499, %v2258, %v2274
  %v2291 = vsel %vm499, %v2259, %v2275
  %v2292 = vsel %vm499, %v2260, %v2276
  %v2293 = vsel %vm499, %v2261, %v2277
  %v2294 = vsel %vm499, %v2262, %v2278
  %v2295 = vsel %vm499, %v2263, %v2279
  %v2296 = vsel %vm499, %v2264, %v2280
  %v2297 = vsel %vm499, %v2265, %v2281
  %v2298 = vsel %vm499, %v2266, %v2282
  %v2299 = vsel %vm499, %v2267, %v2283
  %v2300 = vsel %vm499, %v2268, %v2284
  %v2301 = vsel %vm499, %v2269, %v2285
  %v2302 = vsel %vm499, %v2270, %v2286
  %v2303 = vrot.slane %v2022, 3
  %v2304 = vrot.slane %v2024, 3
  %v2305 = vrot.slane %v2027, 3
  %v2306 = vrot.slane %v2029, 3
  %v2307 = vrot.slane %v2032, 3
  %v2308 = vrot.slane %v2034, 3
  %v2309 = vrot.slane %v2037, 3
  %v2310 = vrot.slane %v2039, 3
  %v2311 = vrot.slane %v2042, 3
  %v2312 = vrot.slane %v2044, 3
  %v2313 = vrot.slane %v2047, 3
  %v2314 = vrot.slane %v2049, 3
  %v2315 = vrot.slane %v2052, 3
  %v2316 = vrot.slane %v2054, 3
  %v2317 = vrot.slane %v2057, 3
  %v2318 = vrot.slane %v2059, 3
  %v2319 = vsel %vm548, %v2317, %v2318
  %v2320 = vsel %vm548, %v2316, %v2317
  %v2321 = vsel %vm548, %v2315, %v2316
  %v2322 = vsel %vm548, %v2314, %v2315
  %v2323 = vsel %vm548, %v2313, %v2314
  %v2324 = vsel %vm548, %v2312, %v2313
  %v2325 = vsel %vm548, %v2311, %v2312
  %v2326 = vsel %vm548, %v2310, %v2311
  %v2327 = vsel %vm548, %v2309, %v2310
  %v2328 = vsel %vm548, %v2308, %v2309
  %v2329 = vsel %vm548, %v2307, %v2308
  %v2330 = vsel %vm548, %v2306, %v2307
  %v2331 = vsel %vm548, %v2305, %v2306
  %v2332 = vsel %vm548, %v2304, %v2305
  %v2333 = vsel %vm548, %v2303, %v2304
  %v2334 = vsel %vm548, %v2318, %v2303
  %v2335 = vsel %vm516, %v2334, %v2326
  %v2336 = vsel %vm517, %v2333, %v2325
  %v2337 = vsel %vm518, %v2332, %v2324
  %v2338 = vsel %vm519, %v2331, %v2323
  %v2339 = vsel %vm520, %v2330, %v2322
  %v2340 = vsel %vm521, %v2329, %v2321
  %v2341 = vsel %vm522, %v2328, %v2320
  %v2342 = vsel %vm523, %v2327, %v2319
  %v2343 = vsel %vm524, %v2326, %v2334
  %v2344 = vsel %vm525, %v2325, %v2333
  %v2345 = vsel %vm526, %v2324, %v2332
  %v2346 = vsel %vm527, %v2323, %v2331
  %v2347 = vsel %vm528, %v2322, %v2330
  %v2348 = vsel %vm529, %v2321, %v2329
  %v2349 = vsel %vm530, %v2320, %v2328
  %v2350 = vsel %vm531, %v2319, %v2327
  %v2351 = vsel %vm581, %v2287, %v2335
  %v2352 = vsel %vm581, %v2288, %v2336
  %v2353 = vsel %vm581, %v2289, %v2337
  %v2354 = vsel %vm581, %v2290, %v2338
  %v2355 = vsel %vm581, %v2291, %v2339
  %v2356 = vsel %vm581, %v2292, %v2340
  %v2357 = vsel %vm581, %v2293, %v2341
  %v2358 = vsel %vm581, %v2294, %v2342
  %v2359 = vsel %vm581, %v2295, %v2343
  %v2360 = vsel %vm581, %v2296, %v2344
  %v2361 = vsel %vm581, %v2297, %v2345
  %v2362 = vsel %vm581, %v2298, %v2346
  %v2363 = vsel %vm581, %v2299, %v2347
  %v2364 = vsel %vm581, %v2300, %v2348
  %v2365 = vsel %vm581, %v2301, %v2349
  %v2366 = vsel %vm581, %v2302, %v2350
  %v2367 = vadd.f32 %v2351, %v2071
  %v2368 = vadd.f32 %v2352, %v2073
  %v2369 = vadd.f32 %v2353, %v2076
  %v2370 = vadd.f32 %v2354, %v2078
  %v2371 = vadd.f32 %v2355, %v2081
  %v2372 = vadd.f32 %v2356, %v2083
  %v2373 = vadd.f32 %v2357, %v2086
  %v2374 = vadd.f32 %v2358, %v2088
  %v2375 = vadd.f32 %v2359, %v2091
  %v2376 = vadd.f32 %v2360, %v2093
  %v2377 = vadd.f32 %v2361, %v2096
  %v2378 = vadd.f32 %v2362, %v2098
  %v2379 = vadd.f32 %v2363, %v2101
  %v2380 = vadd.f32 %v2364, %v2103
  %v2381 = vadd.f32 %v2365, %v2106
  %v2382 = vadd.f32 %v2366, %v2108
  %v2383 = vadd.f32 %v2367, %v615
  %v2384 = vadd.f32 %v2368, %v615
  %v2385 = vadd.f32 %v2369, %v615
  %v2386 = vadd.f32 %v2370, %v615
  %v2387 = vadd.f32 %v2371, %v615
  %v2388 = vadd.f32 %v2372, %v615
  %v2389 = vadd.f32 %v2373, %v615
  %v2390 = vadd.f32 %v2374, %v615
  %v2391 = vadd.f32 %v2375, %v615
  %v2392 = vadd.f32 %v2376, %v615
  %v2393 = vadd.f32 %v2377, %v615
  %v2394 = vadd.f32 %v2378, %v615
  %v2395 = vadd.f32 %v2379, %v615
  %v2396 = vadd.f32 %v2380, %v615
  %v2397 = vadd.f32 %v2381, %v615
  %v2398 = vadd.f32 %v2382, %v615
  %v2399 = vmax.f32 %v2383, 0.0
  %v2400 = vmax.f32 %v2384, 0.0
  %v2401 = vmax.f32 %v2385, 0.0
  %v2402 = vmax.f32 %v2386, 0.0
  %v2403 = vmax.f32 %v2387, 0.0
  %v2404 = vmax.f32 %v2388, 0.0
  %v2405 = vmax.f32 %v2389, 0.0
  %v2406 = vmax.f32 %v2390, 0.0
  %v2407 = vmax.f32 %v2391, 0.0
  %v2408 = vmax.f32 %v2392, 0.0
  %v2409 = vmax.f32 %v2393, 0.0
  %v2410 = vmax.f32 %v2394, 0.0
  %v2411 = vmax.f32 %v2395, 0.0
  %v2412 = vmax.f32 %v2396, 0.0
  %v2413 = vmax.f32 %v2397, 0.0
  %v2414 = vmax.f32 %v2398, 0.0
  %v2415 = vpack.c.bf16 %v2400, %v2399
  %v2416 = vpack.c.bf16 %v2402, %v2401
  %v2417 = vpack.c.bf16 %v2404, %v2403
  %v2418 = vpack.c.bf16 %v2406, %v2405
  %v2419 = vpack.c.bf16 %v2408, %v2407
  %v2420 = vpack.c.bf16 %v2410, %v2409
  %v2421 = vpack.c.bf16 %v2412, %v2411
  %v2422 = vpack.c.bf16 %v2414, %v2413
  %v2423 = vld [vmem:[%s4] sm:$0xf]
  %v2424 = vld [vmem:[%s4 + $0x4] sm:$0xf]
  %v2425 = vld [vmem:[%s4 + $0x8] sm:$0xf]
  %v2426 = vld [vmem:[%s4 + $0xc] sm:$0xf]
  %v2427 = vld [vmem:[%s4 + $0x10] sm:$0xf]
  %v2428 = vld [vmem:[%s4 + $0x14] sm:$0xf]
  %v2429 = vld [vmem:[%s4 + $0x18] sm:$0xf]
  %v2430 = vld [vmem:[%s4 + $0x1c] sm:$0xf]
  %v2431 = vld [vmem:[%s4 + $0x20] sm:$0xf]
  %v2432 = vld [vmem:[%s4 + $0x24] sm:$0xf]
  %v2433 = vld [vmem:[%s4 + $0x28] sm:$0xf]
  %v2434 = vld [vmem:[%s4 + $0x2c] sm:$0xf]
  %v2435 = vld [vmem:[%s4 + $0x30] sm:$0xf]
  %v2436 = vld [vmem:[%s4 + $0x34] sm:$0xf]
  %v2437 = vld [vmem:[%s4 + $0x38] sm:$0xf]
  %v2438 = vld [vmem:[%s4 + $0x3c] sm:$0xf]
  %v2455 = vunpack.c.l.b16 %v2423
  %v2456 = vunpack.c.l.b16 %v2424
  %v2457 = vunpack.c.l.b16 %v2425
  %v2458 = vunpack.c.l.b16 %v2426
  %v2459 = vunpack.c.l.b16 %v2427
  %v2460 = vunpack.c.l.b16 %v2428
  %v2461 = vunpack.c.l.b16 %v2429
  %v2462 = vunpack.c.l.b16 %v2430
  %v2463 = vunpack.c.l.b16 %v2431
  %v2464 = vunpack.c.l.b16 %v2432
  %v2465 = vunpack.c.l.b16 %v2433
  %v2466 = vunpack.c.l.b16 %v2434
  %v2467 = vunpack.c.l.b16 %v2435
  %v2468 = vunpack.c.l.b16 %v2436
  %v2469 = vunpack.c.l.b16 %v2437
  %v2470 = vunpack.c.l.b16 %v2438
  %v2471 = vpack.c.b16 %v2456, %v2455
  %v2472 = vpack.c.b16 %v2458, %v2457
  %v2473 = vpack.c.b16 %v2460, %v2459
  %v2474 = vpack.c.b16 %v2462, %v2461
  %v2475 = vpack.c.b16 %v2464, %v2463
  %v2476 = vpack.c.b16 %v2466, %v2465
  %v2477 = vpack.c.b16 %v2468, %v2467
  %v2478 = vpack.c.b16 %v2470, %v2469
  %2487 = vmatpush.bf16.msra.mxu0 %v2478
  %2488 = vmatpush.bf16.msra.mxu0 %v2477
  %2489 = vmatpush.bf16.msra.mxu0 %v2476
  %2490 = vmatpush.bf16.msra.mxu0 %v2475
  %2491 = vmatpush.bf16.msra.mxu0 %v2474
  %2492 = vmatpush.bf16.msra.mxu0 %v2473
  %2493 = vmatpush.bf16.msra.mxu0 %v2472
  %2494 = vmatpush.bf16.msra.mxu0 %v2471
  %2495 = vmatmul.bf16.gmra.mxu0 %v2415
  %v2496 = vpop.f32.mrf.mxu0
  %v2497 = vadd.f32 %v674, %v2496
  %v2498 = vpop.f32.mrf.mxu0
  %v2499 = vadd.f32 %v674, %v2498
  %2500 = vmatmul.bf16.gmra.mxu0 %v2416
  %v2501 = vpop.f32.mrf.mxu0
  %v2502 = vadd.f32 %v674, %v2501
  %v2503 = vpop.f32.mrf.mxu0
  %v2504 = vadd.f32 %v674, %v2503
  %2505 = vmatmul.bf16.gmra.mxu0 %v2417
  %v2506 = vpop.f32.mrf.mxu0
  %v2507 = vadd.f32 %v674, %v2506
  %v2508 = vpop.f32.mrf.mxu0
  %v2509 = vadd.f32 %v674, %v2508
  %2510 = vmatmul.bf16.gmra.mxu0 %v2418
  %v2511 = vpop.f32.mrf.mxu0
  %v2512 = vadd.f32 %v674, %v2511
  %v2513 = vpop.f32.mrf.mxu0
  %v2514 = vadd.f32 %v674, %v2513
  %2515 = vmatmul.bf16.gmra.mxu0 %v2419
  %v2516 = vpop.f32.mrf.mxu0
  %v2517 = vadd.f32 %v674, %v2516
  %v2518 = vpop.f32.mrf.mxu0
  %v2519 = vadd.f32 %v674, %v2518
  %2520 = vmatmul.bf16.gmra.mxu0 %v2420
  %v2521 = vpop.f32.mrf.mxu0
  %v2522 = vadd.f32 %v674, %v2521
  %v2523 = vpop.f32.mrf.mxu0
  %v2524 = vadd.f32 %v674, %v2523
  %2525 = vmatmul.bf16.gmra.mxu0 %v2421
  %v2526 = vpop.f32.mrf.mxu0
  %v2527 = vadd.f32 %v674, %v2526
  %v2528 = vpop.f32.mrf.mxu0
  %v2529 = vadd.f32 %v674, %v2528
  %2530 = vmatmul.bf16.gmra.mxu0 %v2422
  %v2531 = vpop.f32.mrf.mxu0
  %v2532 = vadd.f32 %v674, %v2531
  %v2533 = vpop.f32.mrf.mxu0
  %v2534 = vadd.f32 %v674, %v2533
  %2535 = vdwg.mxu0
  %v2536 = vmax.f32 %v2497, 0.0
  %v2537 = vmax.f32 %v2499, 0.0
  %v2538 = vmax.f32 %v2502, 0.0
  %v2539 = vmax.f32 %v2504, 0.0
  %v2540 = vmax.f32 %v2507, 0.0
  %v2541 = vmax.f32 %v2509, 0.0
  %v2542 = vmax.f32 %v2512, 0.0
  %v2543 = vmax.f32 %v2514, 0.0
  %v2544 = vmax.f32 %v2517, 0.0
  %v2545 = vmax.f32 %v2519, 0.0
  %v2546 = vmax.f32 %v2522, 0.0
  %v2547 = vmax.f32 %v2524, 0.0
  %v2548 = vmax.f32 %v2527, 0.0
  %v2549 = vmax.f32 %v2529, 0.0
  %v2550 = vmax.f32 %v2532, 0.0
  %v2551 = vmax.f32 %v2534, 0.0
  %v2552 = vpack.c.bf16 %v2537, %v2536
  %v2553 = vpack.c.bf16 %v2539, %v2538
  %v2554 = vpack.c.bf16 %v2541, %v2540
  %v2555 = vpack.c.bf16 %v2543, %v2542
  %v2556 = vpack.c.bf16 %v2545, %v2544
  %v2557 = vpack.c.bf16 %v2547, %v2546
  %v2558 = vpack.c.bf16 %v2549, %v2548
  %v2559 = vpack.c.bf16 %v2551, %v2550
  %v2560 = vld [vmem:[%s6] sm:$0xf]
  %v2561 = vld [vmem:[%s6 + $0x4] sm:$0xf]
  %v2562 = vld [vmem:[%s6 + $0x8] sm:$0xf]
  %v2563 = vld [vmem:[%s6 + $0xc] sm:$0xf]
  %v2564 = vld [vmem:[%s6 + $0x10] sm:$0xf]
  %v2565 = vld [vmem:[%s6 + $0x14] sm:$0xf]
  %v2566 = vld [vmem:[%s6 + $0x18] sm:$0xf]
  %v2567 = vld [vmem:[%s6 + $0x1c] sm:$0xf]
  %v2568 = vld [vmem:[%s6 + $0x20] sm:$0xf]
  %v2569 = vld [vmem:[%s6 + $0x24] sm:$0xf]
  %v2570 = vld [vmem:[%s6 + $0x28] sm:$0xf]
  %v2571 = vld [vmem:[%s6 + $0x2c] sm:$0xf]
  %v2572 = vld [vmem:[%s6 + $0x30] sm:$0xf]
  %v2573 = vld [vmem:[%s6 + $0x34] sm:$0xf]
  %v2574 = vld [vmem:[%s6 + $0x38] sm:$0xf]
  %v2575 = vld [vmem:[%s6 + $0x3c] sm:$0xf]
  %v2592 = vunpack.c.l.b16 %v2560
  %v2593 = vunpack.c.l.b16 %v2561
  %v2594 = vunpack.c.l.b16 %v2562
  %v2595 = vunpack.c.l.b16 %v2563
  %v2596 = vunpack.c.l.b16 %v2564
  %v2597 = vunpack.c.l.b16 %v2565
  %v2598 = vunpack.c.l.b16 %v2566
  %v2599 = vunpack.c.l.b16 %v2567
  %v2600 = vunpack.c.l.b16 %v2568
  %v2601 = vunpack.c.l.b16 %v2569
  %v2602 = vunpack.c.l.b16 %v2570
  %v2603 = vunpack.c.l.b16 %v2571
  %v2604 = vunpack.c.l.b16 %v2572
  %v2605 = vunpack.c.l.b16 %v2573
  %v2606 = vunpack.c.l.b16 %v2574
  %v2607 = vunpack.c.l.b16 %v2575
  %v2608 = vpack.c.b16 %v2593, %v2592
  %v2609 = vpack.c.b16 %v2595, %v2594
  %v2610 = vpack.c.b16 %v2597, %v2596
  %v2611 = vpack.c.b16 %v2599, %v2598
  %v2612 = vpack.c.b16 %v2601, %v2600
  %v2613 = vpack.c.b16 %v2603, %v2602
  %v2614 = vpack.c.b16 %v2605, %v2604
  %v2615 = vpack.c.b16 %v2607, %v2606
  %2624 = vmatpush.bf16.msra.mxu0 %v2615
  %2625 = vmatpush.bf16.msra.mxu0 %v2614
  %2626 = vmatpush.bf16.msra.mxu0 %v2613
  %2627 = vmatpush.bf16.msra.mxu0 %v2612
  %2628 = vmatpush.bf16.msra.mxu0 %v2611
  %2629 = vmatpush.bf16.msra.mxu0 %v2610
  %2630 = vmatpush.bf16.msra.mxu0 %v2609
  %2631 = vmatpush.bf16.msra.mxu0 %v2608
  %2632 = vmatmul.bf16.gmra.mxu0 %v2552
  %v2633 = vpop.f32.mrf.mxu0
  %v2634 = vadd.f32 %v814, %v2633
  %v2635 = vpop.f32.mrf.mxu0
  %v2636 = vadd.f32 %v814, %v2635
  %2637 = vmatmul.bf16.gmra.mxu0 %v2553
  %v2638 = vpop.f32.mrf.mxu0
  %v2639 = vadd.f32 %v814, %v2638
  %v2640 = vpop.f32.mrf.mxu0
  %v2641 = vadd.f32 %v814, %v2640
  %2642 = vmatmul.bf16.gmra.mxu0 %v2554
  %v2643 = vpop.f32.mrf.mxu0
  %v2644 = vadd.f32 %v814, %v2643
  %v2645 = vpop.f32.mrf.mxu0
  %v2646 = vadd.f32 %v814, %v2645
  %2647 = vmatmul.bf16.gmra.mxu0 %v2555
  %v2648 = vpop.f32.mrf.mxu0
  %v2649 = vadd.f32 %v814, %v2648
  %v2650 = vpop.f32.mrf.mxu0
  %v2651 = vadd.f32 %v814, %v2650
  %2652 = vmatmul.bf16.gmra.mxu0 %v2556
  %v2653 = vpop.f32.mrf.mxu0
  %v2654 = vadd.f32 %v814, %v2653
  %v2655 = vpop.f32.mrf.mxu0
  %v2656 = vadd.f32 %v814, %v2655
  %2657 = vmatmul.bf16.gmra.mxu0 %v2557
  %v2658 = vpop.f32.mrf.mxu0
  %v2659 = vadd.f32 %v814, %v2658
  %v2660 = vpop.f32.mrf.mxu0
  %v2661 = vadd.f32 %v814, %v2660
  %2662 = vmatmul.bf16.gmra.mxu0 %v2558
  %v2663 = vpop.f32.mrf.mxu0
  %v2664 = vadd.f32 %v814, %v2663
  %v2665 = vpop.f32.mrf.mxu0
  %v2666 = vadd.f32 %v814, %v2665
  %2667 = vmatmul.bf16.gmra.mxu0 %v2559
  %v2668 = vpop.f32.mrf.mxu0
  %v2669 = vadd.f32 %v814, %v2668
  %v2670 = vpop.f32.mrf.mxu0
  %v2671 = vadd.f32 %v814, %v2670
  %2672 = vdwg.mxu0
  %v2673 = vmax.f32 %v2634, 0.0
  %v2674 = vmax.f32 %v2636, 0.0
  %v2675 = vmax.f32 %v2639, 0.0
  %v2676 = vmax.f32 %v2641, 0.0
  %v2677 = vmax.f32 %v2644, 0.0
  %v2678 = vmax.f32 %v2646, 0.0
  %v2679 = vmax.f32 %v2649, 0.0
  %v2680 = vmax.f32 %v2651, 0.0
  %v2681 = vmax.f32 %v2654, 0.0
  %v2682 = vmax.f32 %v2656, 0.0
  %v2683 = vmax.f32 %v2659, 0.0
  %v2684 = vmax.f32 %v2661, 0.0
  %v2685 = vmax.f32 %v2664, 0.0
  %v2686 = vmax.f32 %v2666, 0.0
  %v2687 = vmax.f32 %v2669, 0.0
  %v2688 = vmax.f32 %v2671, 0.0
  %v2689 = vpack.c.bf16 %v2674, %v2673
  %v2690 = vpack.c.bf16 %v2676, %v2675
  %v2691 = vpack.c.bf16 %v2678, %v2677
  %v2692 = vpack.c.bf16 %v2680, %v2679
  %v2693 = vpack.c.bf16 %v2682, %v2681
  %v2694 = vpack.c.bf16 %v2684, %v2683
  %v2695 = vpack.c.bf16 %v2686, %v2685
  %v2696 = vpack.c.bf16 %v2688, %v2687
  %v2697 = vld [vmem:[%s8] sm:$0xf]
  %v2698 = vld [vmem:[%s8 + $0x4] sm:$0xf]
  %v2699 = vld [vmem:[%s8 + $0x8] sm:$0xf]
  %v2700 = vld [vmem:[%s8 + $0xc] sm:$0xf]
  %v2701 = vld [vmem:[%s8 + $0x10] sm:$0xf]
  %v2702 = vld [vmem:[%s8 + $0x14] sm:$0xf]
  %v2703 = vld [vmem:[%s8 + $0x18] sm:$0xf]
  %v2704 = vld [vmem:[%s8 + $0x1c] sm:$0xf]
  %v2705 = vld [vmem:[%s8 + $0x20] sm:$0xf]
  %v2706 = vld [vmem:[%s8 + $0x24] sm:$0xf]
  %v2707 = vld [vmem:[%s8 + $0x28] sm:$0xf]
  %v2708 = vld [vmem:[%s8 + $0x2c] sm:$0xf]
  %v2709 = vld [vmem:[%s8 + $0x30] sm:$0xf]
  %v2710 = vld [vmem:[%s8 + $0x34] sm:$0xf]
  %v2711 = vld [vmem:[%s8 + $0x38] sm:$0xf]
  %v2712 = vld [vmem:[%s8 + $0x3c] sm:$0xf]
  %v2729 = vunpack.c.l.b16 %v2697
  %v2730 = vunpack.c.l.b16 %v2698
  %v2731 = vunpack.c.l.b16 %v2699
  %v2732 = vunpack.c.l.b16 %v2700
  %v2733 = vunpack.c.l.b16 %v2701
  %v2734 = vunpack.c.l.b16 %v2702
  %v2735 = vunpack.c.l.b16 %v2703
  %v2736 = vunpack.c.l.b16 %v2704
  %v2737 = vunpack.c.l.b16 %v2705
  %v2738 = vunpack.c.l.b16 %v2706
  %v2739 = vunpack.c.l.b16 %v2707
  %v2740 = vunpack.c.l.b16 %v2708
  %v2741 = vunpack.c.l.b16 %v2709
  %v2742 = vunpack.c.l.b16 %v2710
  %v2743 = vunpack.c.l.b16 %v2711
  %v2744 = vunpack.c.l.b16 %v2712
  %v2745 = vpack.c.b16 %v2730, %v2729
  %v2746 = vpack.c.b16 %v2732, %v2731
  %v2747 = vpack.c.b16 %v2734, %v2733
  %v2748 = vpack.c.b16 %v2736, %v2735
  %v2749 = vpack.c.b16 %v2738, %v2737
  %v2750 = vpack.c.b16 %v2740, %v2739
  %v2751 = vpack.c.b16 %v2742, %v2741
  %v2752 = vpack.c.b16 %v2744, %v2743
  %2761 = vmatpush.bf16.msra.mxu0 %v2752
  %2762 = vmatpush.bf16.msra.mxu0 %v2751
  %2763 = vmatpush.bf16.msra.mxu0 %v2750
  %2764 = vmatpush.bf16.msra.mxu0 %v2749
  %2765 = vmatpush.bf16.msra.mxu0 %v2748
  %2766 = vmatpush.bf16.msra.mxu0 %v2747
  %2767 = vmatpush.bf16.msra.mxu0 %v2746
  %2768 = vmatpush.bf16.msra.mxu0 %v2745
  %2769 = vmatmul.bf16.gmra.mxu0 %v2689
  %v2770 = vpop.f32.mrf.mxu0
  %v2771 = vadd.f32 %v954, %v2770
  %v2772 = vpop.f32.mrf.mxu0
  %v2773 = vadd.f32 %v954, %v2772
  %2774 = vmatmul.bf16.gmra.mxu0 %v2690
  %v2775 = vpop.f32.mrf.mxu0
  %v2776 = vadd.f32 %v954, %v2775
  %v2777 = vpop.f32.mrf.mxu0
  %v2778 = vadd.f32 %v954, %v2777
  %2779 = vmatmul.bf16.gmra.mxu0 %v2691
  %v2780 = vpop.f32.mrf.mxu0
  %v2781 = vadd.f32 %v954, %v2780
  %v2782 = vpop.f32.mrf.mxu0
  %v2783 = vadd.f32 %v954, %v2782
  %2784 = vmatmul.bf16.gmra.mxu0 %v2692
  %v2785 = vpop.f32.mrf.mxu0
  %v2786 = vadd.f32 %v954, %v2785
  %v2787 = vpop.f32.mrf.mxu0
  %v2788 = vadd.f32 %v954, %v2787
  %2789 = vmatmul.bf16.gmra.mxu0 %v2693
  %v2790 = vpop.f32.mrf.mxu0
  %v2791 = vadd.f32 %v954, %v2790
  %v2792 = vpop.f32.mrf.mxu0
  %v2793 = vadd.f32 %v954, %v2792
  %2794 = vmatmul.bf16.gmra.mxu0 %v2694
  %v2795 = vpop.f32.mrf.mxu0
  %v2796 = vadd.f32 %v954, %v2795
  %v2797 = vpop.f32.mrf.mxu0
  %v2798 = vadd.f32 %v954, %v2797
  %2799 = vmatmul.bf16.gmra.mxu0 %v2695
  %v2800 = vpop.f32.mrf.mxu0
  %v2801 = vadd.f32 %v954, %v2800
  %v2802 = vpop.f32.mrf.mxu0
  %v2803 = vadd.f32 %v954, %v2802
  %2804 = vmatmul.bf16.gmra.mxu0 %v2696
  %v2805 = vpop.f32.mrf.mxu0
  %v2806 = vadd.f32 %v954, %v2805
  %v2807 = vpop.f32.mrf.mxu0
  %v2808 = vadd.f32 %v954, %v2807
  %2809 = vdwg.mxu0
  %v2810 = vpack.c.bf16 %v2773, %v2771
  %v2811 = vpack.c.bf16 %v2778, %v2776
  %v2812 = vpack.c.bf16 %v2783, %v2781
  %v2813 = vpack.c.bf16 %v2788, %v2786
  %v2814 = vpack.c.bf16 %v2793, %v2791
  %v2815 = vpack.c.bf16 %v2798, %v2796
  %v2816 = vpack.c.bf16 %v2803, %v2801
  %v2817 = vpack.c.bf16 %v2808, %v2806
  %v2818 = vld [vmem:[%s10] sm:$0xf]
  %v2819 = vld [vmem:[%s10 + $0x4] sm:$0xf]
  %v2820 = vld [vmem:[%s10 + $0x8] sm:$0xf]
  %v2821 = vld [vmem:[%s10 + $0xc] sm:$0xf]
  %v2822 = vld [vmem:[%s10 + $0x10] sm:$0xf]
  %v2823 = vld [vmem:[%s10 + $0x14] sm:$0xf]
  %v2824 = vld [vmem:[%s10 + $0x18] sm:$0xf]
  %v2825 = vld [vmem:[%s10 + $0x1c] sm:$0xf]
  %v2826 = vld [vmem:[%s10 + $0x20] sm:$0xf]
  %v2827 = vld [vmem:[%s10 + $0x24] sm:$0xf]
  %v2828 = vld [vmem:[%s10 + $0x28] sm:$0xf]
  %v2829 = vld [vmem:[%s10 + $0x2c] sm:$0xf]
  %v2830 = vld [vmem:[%s10 + $0x30] sm:$0xf]
  %v2831 = vld [vmem:[%s10 + $0x34] sm:$0xf]
  %v2832 = vld [vmem:[%s10 + $0x38] sm:$0xf]
  %v2833 = vld [vmem:[%s10 + $0x3c] sm:$0xf]
  %v2850 = vunpack.c.l.b16 %v2818
  %v2851 = vunpack.c.l.b16 %v2819
  %v2852 = vunpack.c.l.b16 %v2820
  %v2853 = vunpack.c.l.b16 %v2821
  %v2854 = vunpack.c.l.b16 %v2822
  %v2855 = vunpack.c.l.b16 %v2823
  %v2856 = vunpack.c.l.b16 %v2824
  %v2857 = vunpack.c.l.b16 %v2825
  %v2858 = vunpack.c.l.b16 %v2826
  %v2859 = vunpack.c.l.b16 %v2827
  %v2860 = vunpack.c.l.b16 %v2828
  %v2861 = vunpack.c.l.b16 %v2829
  %v2862 = vunpack.c.l.b16 %v2830
  %v2863 = vunpack.c.l.b16 %v2831
  %v2864 = vunpack.c.l.b16 %v2832
  %v2865 = vunpack.c.l.b16 %v2833
  %v2866 = vpack.c.b16 %v2851, %v2850
  %v2867 = vpack.c.b16 %v2853, %v2852
  %v2868 = vpack.c.b16 %v2855, %v2854
  %v2869 = vpack.c.b16 %v2857, %v2856
  %v2870 = vpack.c.b16 %v2859, %v2858
  %v2871 = vpack.c.b16 %v2861, %v2860
  %v2872 = vpack.c.b16 %v2863, %v2862
  %v2873 = vpack.c.b16 %v2865, %v2864
  %2882 = vmatpush.bf16.msra.mxu0 %v2873
  %2883 = vmatpush.bf16.msra.mxu0 %v2872
  %2884 = vmatpush.bf16.msra.mxu0 %v2871
  %2885 = vmatpush.bf16.msra.mxu0 %v2870
  %2886 = vmatpush.bf16.msra.mxu0 %v2869
  %2887 = vmatpush.bf16.msra.mxu0 %v2868
  %2888 = vmatpush.bf16.msra.mxu0 %v2867
  %2889 = vmatpush.bf16.msra.mxu0 %v2866
  %2890 = vmatmul.bf16.gmra.mxu0 %v2810
  %v2891 = vpop.f32.mrf.mxu0
  %v2892 = vadd.f32 0.0, %v2891
  %v2893 = vpop.f32.mrf.mxu0
  %v2894 = vadd.f32 0.0, %v2893
  %2895 = vmatmul.bf16.gmra.mxu0 %v2811
  %v2896 = vpop.f32.mrf.mxu0
  %v2897 = vadd.f32 0.0, %v2896
  %v2898 = vpop.f32.mrf.mxu0
  %v2899 = vadd.f32 0.0, %v2898
  %2900 = vmatmul.bf16.gmra.mxu0 %v2812
  %v2901 = vpop.f32.mrf.mxu0
  %v2902 = vadd.f32 0.0, %v2901
  %v2903 = vpop.f32.mrf.mxu0
  %v2904 = vadd.f32 0.0, %v2903
  %2905 = vmatmul.bf16.gmra.mxu0 %v2813
  %v2906 = vpop.f32.mrf.mxu0
  %v2907 = vadd.f32 0.0, %v2906
  %v2908 = vpop.f32.mrf.mxu0
  %v2909 = vadd.f32 0.0, %v2908
  %2910 = vmatmul.bf16.gmra.mxu0 %v2814
  %v2911 = vpop.f32.mrf.mxu0
  %v2912 = vadd.f32 0.0, %v2911
  %v2913 = vpop.f32.mrf.mxu0
  %v2914 = vadd.f32 0.0, %v2913
  %2915 = vmatmul.bf16.gmra.mxu0 %v2815
  %v2916 = vpop.f32.mrf.mxu0
  %v2917 = vadd.f32 0.0, %v2916
  %v2918 = vpop.f32.mrf.mxu0
  %v2919 = vadd.f32 0.0, %v2918
  %2920 = vmatmul.bf16.gmra.mxu0 %v2816
  %v2921 = vpop.f32.mrf.mxu0
  %v2922 = vadd.f32 0.0, %v2921
  %v2923 = vpop.f32.mrf.mxu0
  %v2924 = vadd.f32 0.0, %v2923
  %2925 = vmatmul.bf16.gmra.mxu0 %v2817
  %v2926 = vpop.f32.mrf.mxu0
  %v2927 = vadd.f32 0.0, %v2926
  %v2928 = vpop.f32.mrf.mxu0
  %v2929 = vadd.f32 0.0, %v2928
  %2930 = vdwg.mxu0
  %v2931 = vadd.f32 %v281, %v2892
  %v2932 = vadd.f32 %v283, %v2894
  %v2933 = vadd.f32 %v286, %v2897
  %v2934 = vadd.f32 %v288, %v2899
  %v2935 = vadd.f32 %v291, %v2902
  %v2936 = vadd.f32 %v293, %v2904
  %v2937 = vadd.f32 %v296, %v2907
  %v2938 = vadd.f32 %v298, %v2909
  %v2939 = vadd.f32 %v301, %v2912
  %v2940 = vadd.f32 %v303, %v2914
  %v2941 = vadd.f32 %v306, %v2917
  %v2942 = vadd.f32 %v308, %v2919
  %v2943 = vadd.f32 %v311, %v2922
  %v2944 = vadd.f32 %v313, %v2924
  %v2945 = vadd.f32 %v316, %v2927
  %v2946 = vadd.f32 %v318, %v2929
  %v2947 = vadd.f32 %v2931, %v2120
  %v2948 = vadd.f32 %v2932, %v2122
  %v2949 = vadd.f32 %v2933, %v2125
  %v2950 = vadd.f32 %v2934, %v2127
  %v2951 = vadd.f32 %v2935, %v2130
  %v2952 = vadd.f32 %v2936, %v2132
  %v2953 = vadd.f32 %v2937, %v2135
  %v2954 = vadd.f32 %v2938, %v2137
  %v2955 = vadd.f32 %v2939, %v2140
  %v2956 = vadd.f32 %v2940, %v2142
  %v2957 = vadd.f32 %v2941, %v2145
  %v2958 = vadd.f32 %v2942, %v2147
  %v2959 = vadd.f32 %v2943, %v2150
  %v2960 = vadd.f32 %v2944, %v2152
  %v2961 = vadd.f32 %v2945, %v2155
  %v2962 = vadd.f32 %v2946, %v2157
  %v2963 = vxor.u32 %v2947, 2147483648
  %v2964 = vxor.u32 %v2948, 2147483648
  %v2965 = vxor.u32 %v2949, 2147483648
  %v2966 = vxor.u32 %v2950, 2147483648
  %v2967 = vxor.u32 %v2951, 2147483648
  %v2968 = vxor.u32 %v2952, 2147483648
  %v2969 = vxor.u32 %v2953, 2147483648
  %v2970 = vxor.u32 %v2954, 2147483648
  %v2971 = vxor.u32 %v2955, 2147483648
  %v2972 = vxor.u32 %v2956, 2147483648
  %v2973 = vxor.u32 %v2957, 2147483648
  %v2974 = vxor.u32 %v2958, 2147483648
  %v2975 = vxor.u32 %v2959, 2147483648
  %v2976 = vxor.u32 %v2960, 2147483648
  %v2977 = vxor.u32 %v2961, 2147483648
  %v2978 = vxor.u32 %v2962, 2147483648
  %v2979 = vmul.f32 %v2963, 1.442695
  %v2980 = vpow.pop %v2979
  %v2981 = vmul.f32 %v2964, 1.442695
  %v2982 = vpow.pop %v2981
  %v2983 = vmul.f32 %v2965, 1.442695
  %v2984 = vpow.pop %v2983
  %v2985 = vmul.f32 %v2966, 1.442695
  %v2986 = vpow.pop %v2985
  %v2987 = vmul.f32 %v2967, 1.442695
  %v2988 = vpow.pop %v2987
  %v2989 = vmul.f32 %v2968, 1.442695
  %v2990 = vpow.pop %v2989
  %v2991 = vmul.f32 %v2969, 1.442695
  %v2992 = vpow.pop %v2991
  %v2993 = vmul.f32 %v2970, 1.442695
  %v2994 = vpow.pop %v2993
  %v2995 = vmul.f32 %v2971, 1.442695
  %v2996 = vpow.pop %v2995
  %v2997 = vmul.f32 %v2972, 1.442695
  %v2998 = vpow.pop %v2997
  %v2999 = vmul.f32 %v2973, 1.442695
  %v3000 = vpow.pop %v2999
  %v3001 = vmul.f32 %v2974, 1.442695
  %v3002 = vpow.pop %v3001
  %v3003 = vmul.f32 %v2975, 1.442695
  %v3004 = vpow.pop %v3003
  %v3005 = vmul.f32 %v2976, 1.442695
  %v3006 = vpow.pop %v3005
  %v3007 = vmul.f32 %v2977, 1.442695
  %v3008 = vpow.pop %v3007
  %v3009 = vmul.f32 %v2978, 1.442695
  %v3010 = vpow.pop %v3009
  %v3011 = vadd.f32 %v2980, 1.0
  %v3012 = vadd.f32 %v2982, 1.0
  %v3013 = vadd.f32 %v2984, 1.0
  %v3014 = vadd.f32 %v2986, 1.0
  %v3015 = vadd.f32 %v2988, 1.0
  %v3016 = vadd.f32 %v2990, 1.0
  %v3017 = vadd.f32 %v2992, 1.0
  %v3018 = vadd.f32 %v2994, 1.0
  %v3019 = vadd.f32 %v2996, 1.0
  %v3020 = vadd.f32 %v2998, 1.0
  %v3021 = vadd.f32 %v3000, 1.0
  %v3022 = vadd.f32 %v3002, 1.0
  %v3023 = vadd.f32 %v3004, 1.0
  %v3024 = vadd.f32 %v3006, 1.0
  %v3025 = vadd.f32 %v3008, 1.0
  %v3026 = vadd.f32 %v3010, 1.0
  %v3027 = vrcp.pop %v3011
  %v3028 = vmul.f32 %v3011, %v3027
  %v3029 = vsub.f32 1.0, %v3028
  %v3030 = vmul.f32 %v3027, %v3029
  %v3031 = vadd.f32 %v3027, %v3030
  %vm3032 = vweird.f32 %v3011
  %vm3033 = vweird.f32 %v3027
  %vm3034 = vmor %vm3032, %vm3033
  %v3035 = vsel %vm3034, %v3027, %v3031
  %v3036 = vand.u32 2147483647, %v3011
  %vm3037 = vcmp.eq.f32.partialorder %v3036, 8.507059e+37
  %v3038 = vand.u32 %v3011, 2147483648
  %v3039 = vor.u32 1.1754944e-38, %v3038
  %v3040 = vsel %vm3037, %v3039, %v3035
  %v3041 = vmul.f32 1.0, %v3040
  %v3042 = vrcp.pop %v3012
  %v3043 = vmul.f32 %v3012, %v3042
  %v3044 = vsub.f32 1.0, %v3043
  %v3045 = vmul.f32 %v3042, %v3044
  %v3046 = vadd.f32 %v3042, %v3045
  %vm3047 = vweird.f32 %v3012
  %vm3048 = vweird.f32 %v3042
  %vm3049 = vmor %vm3047, %vm3048
  %v3050 = vsel %vm3049, %v3042, %v3046
  %v3051 = vand.u32 2147483647, %v3012
  %vm3052 = vcmp.eq.f32.partialorder %v3051, 8.507059e+37
  %v3053 = vand.u32 %v3012, 2147483648
  %v3054 = vor.u32 1.1754944e-38, %v3053
  %v3055 = vsel %vm3052, %v3054, %v3050
  %v3056 = vmul.f32 1.0, %v3055
  %v3057 = vrcp.pop %v3013
  %v3058 = vmul.f32 %v3013, %v3057
  %v3059 = vsub.f32 1.0, %v3058
  %v3060 = vmul.f32 %v3057, %v3059
  %v3061 = vadd.f32 %v3057, %v3060
  %vm3062 = vweird.f32 %v3013
  %vm3063 = vweird.f32 %v3057
  %vm3064 = vmor %vm3062, %vm3063
  %v3065 = vsel %vm3064, %v3057, %v3061
  %v3066 = vand.u32 2147483647, %v3013
  %vm3067 = vcmp.eq.f32.partialorder %v3066, 8.507059e+37
  %v3068 = vand.u32 %v3013, 2147483648
  %v3069 = vor.u32 1.1754944e-38, %v3068
  %v3070 = vsel %vm3067, %v3069, %v3065
  %v3071 = vmul.f32 1.0, %v3070
  %v3072 = vrcp.pop %v3014
  %v3073 = vmul.f32 %v3014, %v3072
  %v3074 = vsub.f32 1.0, %v3073
  %v3075 = vmul.f32 %v3072, %v3074
  %v3076 = vadd.f32 %v3072, %v3075
  %vm3077 = vweird.f32 %v3014
  %vm3078 = vweird.f32 %v3072
  %vm3079 = vmor %vm3077, %vm3078
  %v3080 = vsel %vm3079, %v3072, %v3076
  %v3081 = vand.u32 2147483647, %v3014
  %vm3082 = vcmp.eq.f32.partialorder %v3081, 8.507059e+37
  %v3083 = vand.u32 %v3014, 2147483648
  %v3084 = vor.u32 1.1754944e-38, %v3083
  %v3085 = vsel %vm3082, %v3084, %v3080
  %v3086 = vmul.f32 1.0, %v3085
  %v3087 = vrcp.pop %v3015
  %v3088 = vmul.f32 %v3015, %v3087
  %v3089 = vsub.f32 1.0, %v3088
  %v3090 = vmul.f32 %v3087, %v3089
  %v3091 = vadd.f32 %v3087, %v3090
  %vm3092 = vweird.f32 %v3015
  %vm3093 = vweird.f32 %v3087
  %vm3094 = vmor %vm3092, %vm3093
  %v3095 = vsel %vm3094, %v3087, %v3091
  %v3096 = vand.u32 2147483647, %v3015
  %vm3097 = vcmp.eq.f32.partialorder %v3096, 8.507059e+37
  %v3098 = vand.u32 %v3015, 2147483648
  %v3099 = vor.u32 1.1754944e-38, %v3098
  %v3100 = vsel %vm3097, %v3099, %v3095
  %v3101 = vmul.f32 1.0, %v3100
  %v3102 = vrcp.pop %v3016
  %v3103 = vmul.f32 %v3016, %v3102
  %v3104 = vsub.f32 1.0, %v3103
  %v3105 = vmul.f32 %v3102, %v3104
  %v3106 = vadd.f32 %v3102, %v3105
  %vm3107 = vweird.f32 %v3016
  %vm3108 = vweird.f32 %v3102
  %vm3109 = vmor %vm3107, %vm3108
  %v3110 = vsel %vm3109, %v3102, %v3106
  %v3111 = vand.u32 2147483647, %v3016
  %vm3112 = vcmp.eq.f32.partialorder %v3111, 8.507059e+37
  %v3113 = vand.u32 %v3016, 2147483648
  %v3114 = vor.u32 1.1754944e-38, %v3113
  %v3115 = vsel %vm3112, %v3114, %v3110
  %v3116 = vmul.f32 1.0, %v3115
  %v3117 = vrcp.pop %v3017
  %v3118 = vmul.f32 %v3017, %v3117
  %v3119 = vsub.f32 1.0, %v3118
  %v3120 = vmul.f32 %v3117, %v3119
  %v3121 = vadd.f32 %v3117, %v3120
  %vm3122 = vweird.f32 %v3017
  %vm3123 = vweird.f32 %v3117
  %vm3124 = vmor %vm3122, %vm3123
  %v3125 = vsel %vm3124, %v3117, %v3121
  %v3126 = vand.u32 2147483647, %v3017
  %vm3127 = vcmp.eq.f32.partialorder %v3126, 8.507059e+37
  %v3128 = vand.u32 %v3017, 2147483648
  %v3129 = vor.u32 1.1754944e-38, %v3128
  %v3130 = vsel %vm3127, %v3129, %v3125
  %v3131 = vmul.f32 1.0, %v3130
  %v3132 = vrcp.pop %v3018
  %v3133 = vmul.f32 %v3018, %v3132
  %v3134 = vsub.f32 1.0, %v3133
  %v3135 = vmul.f32 %v3132, %v3134
  %v3136 = vadd.f32 %v3132, %v3135
  %vm3137 = vweird.f32 %v3018
  %vm3138 = vweird.f32 %v3132
  %vm3139 = vmor %vm3137, %vm3138
  %v3140 = vsel %vm3139, %v3132, %v3136
  %v3141 = vand.u32 2147483647, %v3018
  %vm3142 = vcmp.eq.f32.partialorder %v3141, 8.507059e+37
  %v3143 = vand.u32 %v3018, 2147483648
  %v3144 = vor.u32 1.1754944e-38, %v3143
  %v3145 = vsel %vm3142, %v3144, %v3140
  %v3146 = vmul.f32 1.0, %v3145
  %v3147 = vrcp.pop %v3019
  %v3148 = vmul.f32 %v3019, %v3147
  %v3149 = vsub.f32 1.0, %v3148
  %v3150 = vmul.f32 %v3147, %v3149
  %v3151 = vadd.f32 %v3147, %v3150
  %vm3152 = vweird.f32 %v3019
  %vm3153 = vweird.f32 %v3147
  %vm3154 = vmor %vm3152, %vm3153
  %v3155 = vsel %vm3154, %v3147, %v3151
  %v3156 = vand.u32 2147483647, %v3019
  %vm3157 = vcmp.eq.f32.partialorder %v3156, 8.507059e+37
  %v3158 = vand.u32 %v3019, 2147483648
  %v3159 = vor.u32 1.1754944e-38, %v3158
  %v3160 = vsel %vm3157, %v3159, %v3155
  %v3161 = vmul.f32 1.0, %v3160
  %v3162 = vrcp.pop %v3020
  %v3163 = vmul.f32 %v3020, %v3162
  %v3164 = vsub.f32 1.0, %v3163
  %v3165 = vmul.f32 %v3162, %v3164
  %v3166 = vadd.f32 %v3162, %v3165
  %vm3167 = vweird.f32 %v3020
  %vm3168 = vweird.f32 %v3162
  %vm3169 = vmor %vm3167, %vm3168
  %v3170 = vsel %vm3169, %v3162, %v3166
  %v3171 = vand.u32 2147483647, %v3020
  %vm3172 = vcmp.eq.f32.partialorder %v3171, 8.507059e+37
  %v3173 = vand.u32 %v3020, 2147483648
  %v3174 = vor.u32 1.1754944e-38, %v3173
  %v3175 = vsel %vm3172, %v3174, %v3170
  %v3176 = vmul.f32 1.0, %v3175
  %v3177 = vrcp.pop %v3021
  %v3178 = vmul.f32 %v3021, %v3177
  %v3179 = vsub.f32 1.0, %v3178
  %v3180 = vmul.f32 %v3177, %v3179
  %v3181 = vadd.f32 %v3177, %v3180
  %vm3182 = vweird.f32 %v3021
  %vm3183 = vweird.f32 %v3177
  %vm3184 = vmor %vm3182, %vm3183
  %v3185 = vsel %vm3184, %v3177, %v3181
  %v3186 = vand.u32 2147483647, %v3021
  %vm3187 = vcmp.eq.f32.partialorder %v3186, 8.507059e+37
  %v3188 = vand.u32 %v3021, 2147483648
  %v3189 = vor.u32 1.1754944e-38, %v3188
  %v3190 = vsel %vm3187, %v3189, %v3185
  %v3191 = vmul.f32 1.0, %v3190
  %v3192 = vrcp.pop %v3022
  %v3193 = vmul.f32 %v3022, %v3192
  %v3194 = vsub.f32 1.0, %v3193
  %v3195 = vmul.f32 %v3192, %v3194
  %v3196 = vadd.f32 %v3192, %v3195
  %vm3197 = vweird.f32 %v3022
  %vm3198 = vweird.f32 %v3192
  %vm3199 = vmor %vm3197, %vm3198
  %v3200 = vsel %vm3199, %v3192, %v3196
  %v3201 = vand.u32 2147483647, %v3022
  %vm3202 = vcmp.eq.f32.partialorder %v3201, 8.507059e+37
  %v3203 = vand.u32 %v3022, 2147483648
  %v3204 = vor.u32 1.1754944e-38, %v3203
  %v3205 = vsel %vm3202, %v3204, %v3200
  %v3206 = vmul.f32 1.0, %v3205
  %v3207 = vrcp.pop %v3023
  %v3208 = vmul.f32 %v3023, %v3207
  %v3209 = vsub.f32 1.0, %v3208
  %v3210 = vmul.f32 %v3207, %v3209
  %v3211 = vadd.f32 %v3207, %v3210
  %vm3212 = vweird.f32 %v3023
  %vm3213 = vweird.f32 %v3207
  %vm3214 = vmor %vm3212, %vm3213
  %v3215 = vsel %vm3214, %v3207, %v3211
  %v3216 = vand.u32 2147483647, %v3023
  %vm3217 = vcmp.eq.f32.partialorder %v3216, 8.507059e+37
  %v3218 = vand.u32 %v3023, 2147483648
  %v3219 = vor.u32 1.1754944e-38, %v3218
  %v3220 = vsel %vm3217, %v3219, %v3215
  %v3221 = vmul.f32 1.0, %v3220
  %v3222 = vrcp.pop %v3024
  %v3223 = vmul.f32 %v3024, %v3222
  %v3224 = vsub.f32 1.0, %v3223
  %v3225 = vmul.f32 %v3222, %v3224
  %v3226 = vadd.f32 %v3222, %v3225
  %vm3227 = vweird.f32 %v3024
  %vm3228 = vweird.f32 %v3222
  %vm3229 = vmor %vm3227, %vm3228
  %v3230 = vsel %vm3229, %v3222, %v3226
  %v3231 = vand.u32 2147483647, %v3024
  %vm3232 = vcmp.eq.f32.partialorder %v3231, 8.507059e+37
  %v3233 = vand.u32 %v3024, 2147483648
  %v3234 = vor.u32 1.1754944e-38, %v3233
  %v3235 = vsel %vm3232, %v3234, %v3230
  %v3236 = vmul.f32 1.0, %v3235
  %v3237 = vrcp.pop %v3025
  %v3238 = vmul.f32 %v3025, %v3237
  %v3239 = vsub.f32 1.0, %v3238
  %v3240 = vmul.f32 %v3237, %v3239
  %v3241 = vadd.f32 %v3237, %v3240
  %vm3242 = vweird.f32 %v3025
  %vm3243 = vweird.f32 %v3237
  %vm3244 = vmor %vm3242, %vm3243
  %v3245 = vsel %vm3244, %v3237, %v3241
  %v3246 = vand.u32 2147483647, %v3025
  %vm3247 = vcmp.eq.f32.partialorder %v3246, 8.507059e+37
  %v3248 = vand.u32 %v3025, 2147483648
  %v3249 = vor.u32 1.1754944e-38, %v3248
  %v3250 = vsel %vm3247, %v3249, %v3245
  %v3251 = vmul.f32 1.0, %v3250
  %v3252 = vrcp.pop %v3026
  %v3253 = vmul.f32 %v3026, %v3252
  %v3254 = vsub.f32 1.0, %v3253
  %v3255 = vmul.f32 %v3252, %v3254
  %v3256 = vadd.f32 %v3252, %v3255
  %vm3257 = vweird.f32 %v3026
  %vm3258 = vweird.f32 %v3252
  %vm3259 = vmor %vm3257, %vm3258
  %v3260 = vsel %vm3259, %v3252, %v3256
  %v3261 = vand.u32 2147483647, %v3026
  %vm3262 = vcmp.eq.f32.partialorder %v3261, 8.507059e+37
  %v3263 = vand.u32 %v3026, 2147483648
  %v3264 = vor.u32 1.1754944e-38, %v3263
  %v3265 = vsel %vm3262, %v3264, %v3260
  %v3266 = vmul.f32 1.0, %v3265
  %v3267 = vtanh.pop %v2947
  %v3268 = vtanh.pop %v2948
  %v3269 = vtanh.pop %v2949
  %v3270 = vtanh.pop %v2950
  %v3271 = vtanh.pop %v2951
  %v3272 = vtanh.pop %v2952
  %v3273 = vtanh.pop %v2953
  %v3274 = vtanh.pop %v2954
  %v3275 = vtanh.pop %v2955
  %v3276 = vtanh.pop %v2956
  %v3277 = vtanh.pop %v2957
  %v3278 = vtanh.pop %v2958
  %v3279 = vtanh.pop %v2959
  %v3280 = vtanh.pop %v2960
  %v3281 = vtanh.pop %v2961
  %v3282 = vtanh.pop %v2962
  %3299 = vrot.lane.b32.xlu0 %v1574, 32
  %v3300 = vpop.permute.xlu0 %3299
  %3301 = vrot.lane.b32.xlu0 %v1575, 32
  %v3302 = vpop.permute.xlu0 %3301
  %3303 = vrot.lane.b32.xlu0 %v1576, 32
  %v3304 = vpop.permute.xlu0 %3303
  %3305 = vrot.lane.b32.xlu0 %v1577, 32
  %v3306 = vpop.permute.xlu0 %3305
  %3307 = vrot.lane.b32.xlu0 %v1578, 32
  %v3308 = vpop.permute.xlu0 %3307
  %3309 = vrot.lane.b32.xlu0 %v1579, 32
  %v3310 = vpop.permute.xlu0 %3309
  %3311 = vrot.lane.b32.xlu0 %v1580, 32
  %v3312 = vpop.permute.xlu0 %3311
  %3313 = vrot.lane.b32.xlu0 %v1581, 32
  %v3314 = vpop.permute.xlu0 %3313
  %3315 = vrot.lane.b32.xlu0 %v1582, 32
  %v3316 = vpop.permute.xlu0 %3315
  %3317 = vrot.lane.b32.xlu0 %v1583, 32
  %v3318 = vpop.permute.xlu0 %3317
  %3319 = vrot.lane.b32.xlu0 %v1584, 32
  %v3320 = vpop.permute.xlu0 %3319
  %3321 = vrot.lane.b32.xlu0 %v1585, 32
  %v3322 = vpop.permute.xlu0 %3321
  %3323 = vrot.lane.b32.xlu0 %v1586, 32
  %v3324 = vpop.permute.xlu0 %3323
  %3325 = vrot.lane.b32.xlu0 %v1587, 32
  %v3326 = vpop.permute.xlu0 %3325
  %3327 = vrot.lane.b32.xlu0 %v1588, 32
  %v3328 = vpop.permute.xlu0 %3327
  %3329 = vrot.lane.b32.xlu0 %v1589, 32
  %v3330 = vpop.permute.xlu0 %3329
  %v3347 = vmul.f32 %v3041, %v3300
  %v3348 = vmul.f32 %v3056, %v3302
  %v3349 = vmul.f32 %v3071, %v3304
  %v3350 = vmul.f32 %v3086, %v3306
  %v3351 = vmul.f32 %v3101, %v3308
  %v3352 = vmul.f32 %v3116, %v3310
  %v3353 = vmul.f32 %v3131, %v3312
  %v3354 = vmul.f32 %v3146, %v3314
  %v3355 = vmul.f32 %v3161, %v3316
  %v3356 = vmul.f32 %v3176, %v3318
  %v3357 = vmul.f32 %v3191, %v3320
  %v3358 = vmul.f32 %v3206, %v3322
  %v3359 = vmul.f32 %v3221, %v3324
  %v3360 = vmul.f32 %v3236, %v3326
  %v3361 = vmul.f32 %v3251, %v3328
  %v3362 = vmul.f32 %v3266, %v3330
  %3379 = vrot.lane.b32.xlu0 %v3267, 64
  %v3380 = vpop.permute.xlu0 %3379
  %3381 = vrot.lane.b32.xlu0 %v3268, 64
  %v3382 = vpop.permute.xlu0 %3381
  %3383 = vrot.lane.b32.xlu0 %v3269, 64
  %v3384 = vpop.permute.xlu0 %3383
  %3385 = vrot.lane.b32.xlu0 %v3270, 64
  %v3386 = vpop.permute.xlu0 %3385
  %3387 = vrot.lane.b32.xlu0 %v3271, 64
  %v3388 = vpop.permute.xlu0 %3387
  %3389 = vrot.lane.b32.xlu0 %v3272, 64
  %v3390 = vpop.permute.xlu0 %3389
  %3391 = vrot.lane.b32.xlu0 %v3273, 64
  %v3392 = vpop.permute.xlu0 %3391
  %3393 = vrot.lane.b32.xlu0 %v3274, 64
  %v3394 = vpop.permute.xlu0 %3393
  %3395 = vrot.lane.b32.xlu0 %v3275, 64
  %v3396 = vpop.permute.xlu0 %3395
  %3397 = vrot.lane.b32.xlu0 %v3276, 64
  %v3398 = vpop.permute.xlu0 %3397
  %3399 = vrot.lane.b32.xlu0 %v3277, 64
  %v3400 = vpop.permute.xlu0 %3399
  %3401 = vrot.lane.b32.xlu0 %v3278, 64
  %v3402 = vpop.permute.xlu0 %3401
  %3403 = vrot.lane.b32.xlu0 %v3279, 64
  %v3404 = vpop.permute.xlu0 %3403
  %3405 = vrot.lane.b32.xlu0 %v3280, 64
  %v3406 = vpop.permute.xlu0 %3405
  %3407 = vrot.lane.b32.xlu0 %v3281, 64
  %v3408 = vpop.permute.xlu0 %3407
  %3409 = vrot.lane.b32.xlu0 %v3282, 64
  %v3410 = vpop.permute.xlu0 %3409
  %v3427 = vmul.f32 %v3041, %v3380
  %v3428 = vmul.f32 %v3056, %v3382
  %v3429 = vmul.f32 %v3071, %v3384
  %v3430 = vmul.f32 %v3086, %v3386
  %v3431 = vmul.f32 %v3101, %v3388
  %v3432 = vmul.f32 %v3116, %v3390
  %v3433 = vmul.f32 %v3131, %v3392
  %v3434 = vmul.f32 %v3146, %v3394
  %v3435 = vmul.f32 %v3161, %v3396
  %v3436 = vmul.f32 %v3176, %v3398
  %v3437 = vmul.f32 %v3191, %v3400
  %v3438 = vmul.f32 %v3206, %v3402
  %v3439 = vmul.f32 %v3221, %v3404
  %v3440 = vmul.f32 %v3236, %v3406
  %v3441 = vmul.f32 %v3251, %v3408
  %v3442 = vmul.f32 %v3266, %v3410
  %3459 = vrot.lane.b32.xlu0 %v3427, 32
  %v3460 = vpop.permute.xlu0 %3459
  %3461 = vrot.lane.b32.xlu0 %v3428, 32
  %v3462 = vpop.permute.xlu0 %3461
  %3463 = vrot.lane.b32.xlu0 %v3429, 32
  %v3464 = vpop.permute.xlu0 %3463
  %3465 = vrot.lane.b32.xlu0 %v3430, 32
  %v3466 = vpop.permute.xlu0 %3465
  %3467 = vrot.lane.b32.xlu0 %v3431, 32
  %v3468 = vpop.permute.xlu0 %3467
  %3469 = vrot.lane.b32.xlu0 %v3432, 32
  %v3470 = vpop.permute.xlu0 %3469
  %3471 = vrot.lane.b32.xlu0 %v3433, 32
  %v3472 = vpop.permute.xlu0 %3471
  %3473 = vrot.lane.b32.xlu0 %v3434, 32
  %v3474 = vpop.permute.xlu0 %3473
  %3475 = vrot.lane.b32.xlu0 %v3435, 32
  %v3476 = vpop.permute.xlu0 %3475
  %3477 = vrot.lane.b32.xlu0 %v3436, 32
  %v3478 = vpop.permute.xlu0 %3477
  %3479 = vrot.lane.b32.xlu0 %v3437, 32
  %v3480 = vpop.permute.xlu0 %3479
  %3481 = vrot.lane.b32.xlu0 %v3438, 32
  %v3482 = vpop.permute.xlu0 %3481
  %3483 = vrot.lane.b32.xlu0 %v3439, 32
  %v3484 = vpop.permute.xlu0 %3483
  %3485 = vrot.lane.b32.xlu0 %v3440, 32
  %v3486 = vpop.permute.xlu0 %3485
  %3487 = vrot.lane.b32.xlu0 %v3441, 32
  %v3488 = vpop.permute.xlu0 %3487
  %3489 = vrot.lane.b32.xlu0 %v3442, 32
  %v3490 = vpop.permute.xlu0 %3489
  %v3507 = vadd.f32 %v3347, %v3460
  %v3508 = vadd.f32 %v3348, %v3462
  %v3509 = vadd.f32 %v3349, %v3464
  %v3510 = vadd.f32 %v3350, %v3466
  %v3511 = vadd.f32 %v3351, %v3468
  %v3512 = vadd.f32 %v3352, %v3470
  %v3513 = vadd.f32 %v3353, %v3472
  %v3514 = vadd.f32 %v3354, %v3474
  %v3515 = vadd.f32 %v3355, %v3476
  %v3516 = vadd.f32 %v3356, %v3478
  %v3517 = vadd.f32 %v3357, %v3480
  %v3518 = vadd.f32 %v3358, %v3482
  %v3519 = vadd.f32 %v3359, %v3484
  %v3520 = vadd.f32 %v3360, %v3486
  %v3521 = vadd.f32 %v3361, %v3488
  %v3522 = vadd.f32 %v3362, %v3490
  %v3523 = vtanh.pop %v3507
  %v3524 = vtanh.pop %v3508
  %v3525 = vtanh.pop %v3509
  %v3526 = vtanh.pop %v3510
  %v3527 = vtanh.pop %v3511
  %v3528 = vtanh.pop %v3512
  %v3529 = vtanh.pop %v3513
  %v3530 = vtanh.pop %v3514
  %v3531 = vtanh.pop %v3515
  %v3532 = vtanh.pop %v3516
  %v3533 = vtanh.pop %v3517
  %v3534 = vtanh.pop %v3518
  %v3535 = vtanh.pop %v3519
  %v3536 = vtanh.pop %v3520
  %v3537 = vtanh.pop %v3521
  %v3538 = vtanh.pop %v3522
  %3555 = vrot.lane.b32.xlu0 %v3523, 64
  %v3556 = vpop.permute.xlu0 %3555
  %3557 = vrot.lane.b32.xlu0 %v3524, 64
  %v3558 = vpop.permute.xlu0 %3557
  %3559 = vrot.lane.b32.xlu0 %v3525, 64
  %v3560 = vpop.permute.xlu0 %3559
  %3561 = vrot.lane.b32.xlu0 %v3526, 64
  %v3562 = vpop.permute.xlu0 %3561
  %3563 = vrot.lane.b32.xlu0 %v3527, 64
  %v3564 = vpop.permute.xlu0 %3563
  %3565 = vrot.lane.b32.xlu0 %v3528, 64
  %v3566 = vpop.permute.xlu0 %3565
  %3567 = vrot.lane.b32.xlu0 %v3529, 64
  %v3568 = vpop.permute.xlu0 %3567
  %3569 = vrot.lane.b32.xlu0 %v3530, 64
  %v3570 = vpop.permute.xlu0 %3569
  %3571 = vrot.lane.b32.xlu0 %v3531, 64
  %v3572 = vpop.permute.xlu0 %3571
  %3573 = vrot.lane.b32.xlu0 %v3532, 64
  %v3574 = vpop.permute.xlu0 %3573
  %3575 = vrot.lane.b32.xlu0 %v3533, 64
  %v3576 = vpop.permute.xlu0 %3575
  %3577 = vrot.lane.b32.xlu0 %v3534, 64
  %v3578 = vpop.permute.xlu0 %3577
  %3579 = vrot.lane.b32.xlu0 %v3535, 64
  %v3580 = vpop.permute.xlu0 %3579
  %3581 = vrot.lane.b32.xlu0 %v3536, 64
  %v3582 = vpop.permute.xlu0 %3581
  %3583 = vrot.lane.b32.xlu0 %v3537, 64
  %v3584 = vpop.permute.xlu0 %3583
  %3585 = vrot.lane.b32.xlu0 %v3538, 64
  %v3586 = vpop.permute.xlu0 %3585
  %v3603 = vmul.f32 %v3041, %v3556
  %v3604 = vmul.f32 %v3056, %v3558
  %v3605 = vmul.f32 %v3071, %v3560
  %v3606 = vmul.f32 %v3086, %v3562
  %v3607 = vmul.f32 %v3101, %v3564
  %v3608 = vmul.f32 %v3116, %v3566
  %v3609 = vmul.f32 %v3131, %v3568
  %v3610 = vmul.f32 %v3146, %v3570
  %v3611 = vmul.f32 %v3161, %v3572
  %v3612 = vmul.f32 %v3176, %v3574
  %v3613 = vmul.f32 %v3191, %v3576
  %v3614 = vmul.f32 %v3206, %v3578
  %v3615 = vmul.f32 %v3221, %v3580
  %v3616 = vmul.f32 %v3236, %v3582
  %v3617 = vmul.f32 %v3251, %v3584
  %v3618 = vmul.f32 %v3266, %v3586
  %3635 = vrot.lane.b32.xlu0 %v3603, 32
  %v3636 = vpop.permute.xlu0 %3635
  %3637 = vrot.lane.b32.xlu0 %v3604, 32
  %v3638 = vpop.permute.xlu0 %3637
  %3639 = vrot.lane.b32.xlu0 %v3605, 32
  %v3640 = vpop.permute.xlu0 %3639
  %3641 = vrot.lane.b32.xlu0 %v3606, 32
  %v3642 = vpop.permute.xlu0 %3641
  %3643 = vrot.lane.b32.xlu0 %v3607, 32
  %v3644 = vpop.permute.xlu0 %3643
  %3645 = vrot.lane.b32.xlu0 %v3608, 32
  %v3646 = vpop.permute.xlu0 %3645
  %3647 = vrot.lane.b32.xlu0 %v3609, 32
  %v3648 = vpop.permute.xlu0 %3647
  %3649 = vrot.lane.b32.xlu0 %v3610, 32
  %v3650 = vpop.permute.xlu0 %3649
  %3651 = vrot.lane.b32.xlu0 %v3611, 32
  %v3652 = vpop.permute.xlu0 %3651
  %3653 = vrot.lane.b32.xlu0 %v3612, 32
  %v3654 = vpop.permute.xlu0 %3653
  %3655 = vrot.lane.b32.xlu0 %v3613, 32
  %v3656 = vpop.permute.xlu0 %3655
  %3657 = vrot.lane.b32.xlu0 %v3614, 32
  %v3658 = vpop.permute.xlu0 %3657
  %3659 = vrot.lane.b32.xlu0 %v3615, 32
  %v3660 = vpop.permute.xlu0 %3659
  %3661 = vrot.lane.b32.xlu0 %v3616, 32
  %v3662 = vpop.permute.xlu0 %3661
  %3663 = vrot.lane.b32.xlu0 %v3617, 32
  %v3664 = vpop.permute.xlu0 %3663
  %3665 = vrot.lane.b32.xlu0 %v3618, 32
  %v3666 = vpop.permute.xlu0 %3665
  %s3683 = scalar_lea.vmem %s12, 128
  %3684 = vst.msk [vmem:[%s3683] sm:$0xff] %vm148, %v3636
  %3685 = vst.msk [vmem:[%s3683 + $0x8] sm:$0xff] %vm148, %v3638
  %3686 = vst.msk [vmem:[%s3683 + $0x10] sm:$0xff] %vm148, %v3640
  %3687 = vst.msk [vmem:[%s3683 + $0x18] sm:$0xff] %vm148, %v3642
  %3688 = vst.msk [vmem:[%s3683 + $0x20] sm:$0xff] %vm148, %v3644
  %3689 = vst.msk [vmem:[%s3683 + $0x28] sm:$0xff] %vm148, %v3646
  %3690 = vst.msk [vmem:[%s3683 + $0x30] sm:$0xff] %vm148, %v3648
  %3691 = vst.msk [vmem:[%s3683 + $0x38] sm:$0xff] %vm148, %v3650
  %3692 = vst.msk [vmem:[%s3683 + $0x40] sm:$0xff] %vm148, %v3652
  %3693 = vst.msk [vmem:[%s3683 + $0x48] sm:$0xff] %vm148, %v3654
  %3694 = vst.msk [vmem:[%s3683 + $0x50] sm:$0xff] %vm148, %v3656
  %3695 = vst.msk [vmem:[%s3683 + $0x58] sm:$0xff] %vm148, %v3658
  %3696 = vst.msk [vmem:[%s3683 + $0x60] sm:$0xff] %vm148, %v3660
  %3697 = vst.msk [vmem:[%s3683 + $0x68] sm:$0xff] %vm148, %v3662
  %3698 = vst.msk [vmem:[%s3683 + $0x70] sm:$0xff] %vm148, %v3664
  %3699 = vst.msk [vmem:[%s3683 + $0x78] sm:$0xff] %vm148, %v3666
  %v3700 = vmul.f32 %v3603, %v1769
  %v3701 = vmul.f32 %v3604, %v1769
  %v3702 = vmul.f32 %v3605, %v1769
  %v3703 = vmul.f32 %v3606, %v1769
  %v3704 = vmul.f32 %v3607, %v1769
  %v3705 = vmul.f32 %v3608, %v1769
  %v3706 = vmul.f32 %v3609, %v1769
  %v3707 = vmul.f32 %v3610, %v1769
  %v3708 = vmul.f32 %v3611, %v1769
  %v3709 = vmul.f32 %v3612, %v1769
  %v3710 = vmul.f32 %v3613, %v1769
  %v3711 = vmul.f32 %v3614, %v1769
  %v3712 = vmul.f32 %v3615, %v1769
  %v3713 = vmul.f32 %v3616, %v1769
  %v3714 = vmul.f32 %v3617, %v1769
  %v3715 = vmul.f32 %v3618, %v1769
  %3732 = vrot.lane.b32.xlu0 %v3700, 32
  %v3733 = vpop.permute.xlu0 %3732
  %3734 = vrot.lane.b32.xlu0 %v3701, 32
  %v3735 = vpop.permute.xlu0 %3734
  %3736 = vrot.lane.b32.xlu0 %v3702, 32
  %v3737 = vpop.permute.xlu0 %3736
  %3738 = vrot.lane.b32.xlu0 %v3703, 32
  %v3739 = vpop.permute.xlu0 %3738
  %3740 = vrot.lane.b32.xlu0 %v3704, 32
  %v3741 = vpop.permute.xlu0 %3740
  %3742 = vrot.lane.b32.xlu0 %v3705, 32
  %v3743 = vpop.permute.xlu0 %3742
  %3744 = vrot.lane.b32.xlu0 %v3706, 32
  %v3745 = vpop.permute.xlu0 %3744
  %3746 = vrot.lane.b32.xlu0 %v3707, 32
  %v3747 = vpop.permute.xlu0 %3746
  %3748 = vrot.lane.b32.xlu0 %v3708, 32
  %v3749 = vpop.permute.xlu0 %3748
  %3750 = vrot.lane.b32.xlu0 %v3709, 32
  %v3751 = vpop.permute.xlu0 %3750
  %3752 = vrot.lane.b32.xlu0 %v3710, 32
  %v3753 = vpop.permute.xlu0 %3752
  %3754 = vrot.lane.b32.xlu0 %v3711, 32
  %v3755 = vpop.permute.xlu0 %3754
  %3756 = vrot.lane.b32.xlu0 %v3712, 32
  %v3757 = vpop.permute.xlu0 %3756
  %3758 = vrot.lane.b32.xlu0 %v3713, 32
  %v3759 = vpop.permute.xlu0 %3758
  %3760 = vrot.lane.b32.xlu0 %v3714, 32
  %v3761 = vpop.permute.xlu0 %3760
  %3762 = vrot.lane.b32.xlu0 %v3715, 32
  %v3763 = vpop.permute.xlu0 %3762
  %v3780 = vsel %vm148, %v3733, 0.0
  %3781 = vadd.xlane.f32.xlu0 %v3780
  %v3782 = vpop.xlane.xlu0 %3781
  %v3783 = vsel %vm148, %v3735, 0.0
  %3784 = vadd.xlane.f32.xlu0 %v3783
  %v3785 = vpop.xlane.xlu0 %3784
  %v3786 = vsel %vm148, %v3737, 0.0
  %3787 = vadd.xlane.f32.xlu0 %v3786
  %v3788 = vpop.xlane.xlu0 %3787
  %v3789 = vsel %vm148, %v3739, 0.0
  %3790 = vadd.xlane.f32.xlu0 %v3789
  %v3791 = vpop.xlane.xlu0 %3790
  %v3792 = vsel %vm148, %v3741, 0.0
  %3793 = vadd.xlane.f32.xlu0 %v3792
  %v3794 = vpop.xlane.xlu0 %3793
  %v3795 = vsel %vm148, %v3743, 0.0
  %3796 = vadd.xlane.f32.xlu0 %v3795
  %v3797 = vpop.xlane.xlu0 %3796
  %v3798 = vsel %vm148, %v3745, 0.0
  %3799 = vadd.xlane.f32.xlu0 %v3798
  %v3800 = vpop.xlane.xlu0 %3799
  %v3801 = vsel %vm148, %v3747, 0.0
  %3802 = vadd.xlane.f32.xlu0 %v3801
  %v3803 = vpop.xlane.xlu0 %3802
  %v3804 = vsel %vm148, %v3749, 0.0
  %3805 = vadd.xlane.f32.xlu0 %v3804
  %v3806 = vpop.xlane.xlu0 %3805
  %v3807 = vsel %vm148, %v3751, 0.0
  %3808 = vadd.xlane.f32.xlu0 %v3807
  %v3809 = vpop.xlane.xlu0 %3808
  %v3810 = vsel %vm148, %v3753, 0.0
  %3811 = vadd.xlane.f32.xlu0 %v3810
  %v3812 = vpop.xlane.xlu0 %3811
  %v3813 = vsel %vm148, %v3755, 0.0
  %3814 = vadd.xlane.f32.xlu0 %v3813
  %v3815 = vpop.xlane.xlu0 %3814
  %v3816 = vsel %vm148, %v3757, 0.0
  %3817 = vadd.xlane.f32.xlu0 %v3816
  %v3818 = vpop.xlane.xlu0 %3817
  %v3819 = vsel %vm148, %v3759, 0.0
  %3820 = vadd.xlane.f32.xlu0 %v3819
  %v3821 = vpop.xlane.xlu0 %3820
  %v3822 = vsel %vm148, %v3761, 0.0
  %3823 = vadd.xlane.f32.xlu0 %v3822
  %v3824 = vpop.xlane.xlu0 %3823
  %v3825 = vsel %vm148, %v3763, 0.0
  %3826 = vadd.xlane.f32.xlu0 %v3825
  %v3827 = vpop.xlane.xlu0 %3826
  %s3828 = scalar_lea.vmem %s13, 128
  %3829 = vst.msk [vmem:[%s3828] sm:$0xff] %vm1899, %v3782
  %3830 = vst.msk [vmem:[%s3828 + $0x8] sm:$0xff] %vm1899, %v3785
  %3831 = vst.msk [vmem:[%s3828 + $0x10] sm:$0xff] %vm1899, %v3788
  %3832 = vst.msk [vmem:[%s3828 + $0x18] sm:$0xff] %vm1899, %v3791
  %3833 = vst.msk [vmem:[%s3828 + $0x20] sm:$0xff] %vm1899, %v3794
  %3834 = vst.msk [vmem:[%s3828 + $0x28] sm:$0xff] %vm1899, %v3797
  %3835 = vst.msk [vmem:[%s3828 + $0x30] sm:$0xff] %vm1899, %v3800
  %3836 = vst.msk [vmem:[%s3828 + $0x38] sm:$0xff] %vm1899, %v3803
  %3837 = vst.msk [vmem:[%s3828 + $0x40] sm:$0xff] %vm1899, %v3806
  %3838 = vst.msk [vmem:[%s3828 + $0x48] sm:$0xff] %vm1899, %v3809
  %3839 = vst.msk [vmem:[%s3828 + $0x50] sm:$0xff] %vm1899, %v3812
  %3840 = vst.msk [vmem:[%s3828 + $0x58] sm:$0xff] %vm1899, %v3815
  %3841 = vst.msk [vmem:[%s3828 + $0x60] sm:$0xff] %vm1899, %v3818
  %3842 = vst.msk [vmem:[%s3828 + $0x68] sm:$0xff] %vm1899, %v3821
  %3843 = vst.msk [vmem:[%s3828 + $0x70] sm:$0xff] %vm1899, %v3824
  %3844 = vst.msk [vmem:[%s3828 + $0x78] sm:$0xff] %vm1899, %v3827
  // Predicated region
  $region50: #{futoshiki_bin_forward_pallas.1} parent=0 // pred_check
    _
  $region51: #{futoshiki_bin_forward_pallas.1} parent=0 // pred_check_branch
    %3846 = sbr.rel (0) target = $region53
  $region52: #{futoshiki_bin_forward_pallas.1} parent=0 // pred_region
    _
  $region53: #{futoshiki_bin_forward_pallas.1} parent=0 // pred_fallthru
    _
  // Predicated region
  $region54: #{futoshiki_bin_forward_pallas.1} parent=0 // pred_check
    _
  $region55: #{futoshiki_bin_forward_pallas.1} parent=0 // pred_check_branch
    %3848 = sbr.rel (0) target = $region57
  $region56: #{futoshiki_bin_forward_pallas.1} parent=0 // pred_region
    _
  $region57: #{futoshiki_bin_forward_pallas.1} parent=0 // pred_fallthru
    _
  // Predicated region
  $region58: #{futoshiki_bin_forward_pallas.1} parent=0 // pred_check
    _
  $region59: #{futoshiki_bin_forward_pallas.1} parent=0 // pred_check_branch
    %3850 = sbr.rel (0) target = $region61
  $region60: #{futoshiki_bin_forward_pallas.1} parent=0 // pred_region
    _
  $region61: #{futoshiki_bin_forward_pallas.1} parent=0 // pred_fallthru
    _
  // Predicated region
  $region62: #{futoshiki_bin_forward_pallas.1} parent=0 // pred_check
    _
  $region63: #{futoshiki_bin_forward_pallas.1} parent=0 // pred_check_branch
    %3852 = sbr.rel (0) target = $region65
  $region64: #{futoshiki_bin_forward_pallas.1} parent=0 // pred_region
    _
  $region65: #{futoshiki_bin_forward_pallas.1} parent=0 // pred_fallthru
    _

</llo_original>
